<compile_context>
chip_gen: v6e
topology: v6e:2x2x1
jax: 0.10.0
libtpu: 0.0.40
codegen_flags: <defaults>
</compile_context>

<pallas_src>
import jax
import jax.numpy as jnp
from jax import lax
from jax.experimental import pallas as pl
from jax.experimental.pallas import tpu as pltpu


# ----------------- plain-JAX glue (pytorch3d-style sampling ops) -----------------
# TODO(synk): farthest-point sampling / ball query are data-dependent sort/gather
# ops with no clean rectangular-tile Pallas formulation; kept as plain JAX glue.

def sample_farthest_points(points, K):
    """points: (B, N, 3). Deterministic start at index 0 (random_start_point=False)."""
    def per_batch(pts):
        N = pts.shape[0]

        def body(i, state):
            idxs, mind = state
            last = idxs[i - 1]
            d = jnp.sum((pts - pts[last]) ** 2, axis=-1)
            mind = jnp.minimum(mind, d)
            nxt = jnp.argmax(mind).astype(jnp.int32)
            return idxs.at[i].set(nxt), mind

        idxs0 = jnp.zeros((K,), jnp.int32)
        mind0 = jnp.full((N,), jnp.inf, dtype=pts.dtype)
        idxs, _ = lax.fori_loop(1, K, body, (idxs0, mind0))
        return idxs

    idx = jax.vmap(per_batch)(points)
    sampled = jnp.take_along_axis(points, idx[..., None], axis=1)
    return sampled, idx


def masked_gather(points, idx):
    mask = idx >= 0
    safe = jnp.where(mask, idx, 0)
    g = jnp.take_along_axis(points, safe[..., None], axis=1)
    return jnp.where(mask[..., None], g, 0.0)


def ball_query(p1, p2, K, radius):
    """p1: (B,P,D) queries, p2: (B,N,D). First K points (original order) with
    dist^2 < radius^2; missing slots have idx=-1 and nn=0 (like pytorch3d)."""
    B, P, D = p1.shape
    N = p2.shape[1]
    d2 = jnp.sum((p1[:, :, None, :] - p2[:, None, :, :]) ** 2, axis=-1)  # (B,P,N)
    within = d2 < radius * radius
    order = jnp.where(within, jnp.arange(N), N + jnp.arange(N))
    sort_idx = jnp.argsort(order, axis=-1)[..., :K]
    valid = jnp.take_along_axis(within, sort_idx, axis=-1)
    idx = jnp.where(valid, sort_idx, -1)
    dists = jnp.where(valid, jnp.take_along_axis(d2, sort_idx, axis=-1), 0.0)
    b_ix = jnp.arange(B)[:, None, None]
    nn = jnp.where(valid[..., None], p2[b_ix, jnp.where(valid, sort_idx, 0), :], 0.0)
    return dists, idx, nn


# ------------------------- conv padding / pooling bookkeeping ---------------------

def fold_bn_params(params):
    """(w, b, scale, shift) -> (w', b') so relu(bn(conv(x))) == relu(x @ w' + b')."""
    return [(w * sc, b * sc + sh) for (w, b, sc, sh) in params]


def _adaptive_windows(P, L):
    """PyTorch AdaptiveMaxPool2d row windows over the (P + 2L)-row padded grid."""
    Hf = P + 2 * L
    wins = []
    for i in range(P):
        s = (i * Hf) // P
        e = ((i + 1) * Hf + P - 1) // P
        wins.append((s, e))
    return Hf, wins


def _border_cum(folded):
    """Cumulative border-ring constants of a Conv2d(1x1, padding=1)+BN+ReLU stack.

    The ring at edge distance d of the final grid was injected (as zero padding)
    at layer L-1-d and then flows through the remaining layers as a per-channel
    constant v[d].  Returns (L, C_L) where row d = max(v[0..d])."""
    L = len(folded)
    v = []
    for d in range(L):
        start = L - 1 - d
        c = jnp.maximum(folded[start][1], 0.0)        # relu(b'_{start}), (1, C)
        for l in range(start + 1, L):
            w, b = folded[l]
            c = jnp.maximum(jnp.dot(c, w) + b, 0.0)
        v.append(c[0])                                # (C_L,)
    cum = [v[0]]
    for d in range(1, L):
        cum.append(jnp.maximum(cum[-1], v[d]))
    return jnp.stack(cum, axis=0)                     # (L, C_L)


# ----------------------------- Pallas hot path -----------------------------------

def _pick_row_tile(m, cap=512):
    """Largest sublane-aligned divisor of m (prefer multiples of 16, then 8),
    capped, preferring >= 2 grid steps for megacore / pipelining granularity."""
    for step in (16, 8):
        cands = [t for t in range(step, min(m, cap) + 1, step) if m % t == 0]
        if cands:
            multi = [t for t in cands if m // t >= 2]
            return max(multi) if multi else max(cands)
    return m


def _pick_k_chunk(k, cap=8):
    for kb in range(min(k, cap), 0, -1):
        if k % kb == 0:
            return kb
    return 1


def _make_chain_kernel(L, KB):
    """fg_ref: (KB, TR, C0) bf16 slab; params: 2L refs (w_l bf16, b_l f32);
    out_ref: (TR, C_L) f32 resident max-accumulator across the k grid axis."""

    def kernel(fg_ref, *refs):
        out_ref = refs[-1]
        prm = refs[:-1]
        kc = pl.program_id(1)

        ws = [prm[2 * l][...] for l in range(L)]          # (C_l, C_{l+1}) bf16
        bs = [prm[2 * l + 1][...] for l in range(L)]      # (1, C_{l+1})   f32

        def chain(x):                                     # x: (TR, C0) bf16
            for l in range(L):
                y = jnp.dot(x, ws[l], preferred_element_type=jnp.float32)
                y = jnp.maximum(y + bs[l], 0.0)
                x = y.astype(jnp.bfloat16) if l + 1 < L else y
            return x                                      # (TR, C_L) f32

        acc = chain(fg_ref[0])
        for j in range(1, KB):
            acc = jnp.maximum(acc, chain(fg_ref[j]))

        @pl.when(kc == 0)
        def _():
            out_ref[...] = acc                            # init on first k chunk

        @pl.when(kc > 0)
        def _():
            out_ref[...] = jnp.maximum(out_ref[...], acc)

    return kernel


def conv_chain_pool(fg, folded, border_cum):
    """fg: (B, P, K, C0) grouped features (channels-last) for one radius scale.
    Applies the shared conv stack (1x1, padding=1, BN folded, ReLU) and
    AdaptiveMaxPool2d((P, 1)); returns (B, P, C_L)."""
    B, P, K, C0 = map(int, fg.shape)
    L = len(folded)
    CL = int(folded[-1][0].shape[1])
    M = P * B

    TR = _pick_row_tile(M)
    KB = _pick_k_chunk(K)
    n_row, n_k = M // TR, K // KB

    # k-major layout, row = p*B + b; fed to the MXU in bf16 (halves the HBM read).
    fg_flat = jnp.transpose(fg, (2, 1, 0, 3)).reshape(K, M, C0).astype(jnp.bfloat16)

    w_in = [w.astype(jnp.bfloat16) for (w, _) in folded]
    b_in = [b.astype(jnp.float32) for (_, b) in folded]

    in_specs = [pl.BlockSpec((KB, TR, C0), lambda r, kc: (kc, r, 0))]
    inputs = [fg_flat]
    for w, b in zip(w_in, b_in):
        inputs += [w, b]
        in_specs += [pl.BlockSpec(w.shape, lambda r, kc: (0, 0)),
                     pl.BlockSpec(b.shape, lambda r, kc: (0, 0))]

    layer_flops = 2 * sum(int(w.shape[0]) * int(w.shape[1]) for w in w_in)
    cost = pl.CostEstimate(
        flops=M * K * layer_flops,
        transcendentals=0,
        bytes_accessed=fg_flat.size * 2 + M * CL * 4
        + sum(w.size * 2 for w in w_in) + sum(b.size * 4 for b in b_in),
    )

    pooled = pl.pallas_call(
        _make_chain_kernel(L, KB),
        out_shape=jax.ShapeDtypeStruct((M, CL), jnp.float32),
        grid_spec=pltpu.PrefetchScalarGridSpec(
            num_scalar_prefetch=0,
            grid=(n_row, n_k),                      # reduction (k) axis last
            in_specs=in_specs,
            out_specs=pl.BlockSpec((TR, CL), lambda r, kc: (r, 0)),
        ),
        compiler_params=pltpu.CompilerParams(
            dimension_semantics=("parallel", "arbitrary"),
            vmem_limit_bytes=32 * 1024 * 1024,      # explicit budget (v7x: 64 MiB phys)
        ),
        cost_estimate=cost,
    )(*inputs)                                      # (P*B, C_L): max over neighbours

    # ---- tiny adaptive-pool epilogue (static gather; fused by XLA) ----
    vfull = border_cum[L - 1]                       # max over all W-border ring consts
    interior = jnp.maximum(pooled.reshape(P, B, CL), vfull[None, None, :])
    top = jnp.broadcast_to(border_cum[:, None, :], (L, B, CL))   # row h=d -> cum[d]
    rowfull = jnp.concatenate([top, interior, top[::-1]], axis=0)  # (P+2L, B, C_L)

    _, wins = _adaptive_windows(P, L)
    wmax = max(e - s for s, e in wins)
    idx = jnp.asarray([[min(s + j, e - 1) for j in range(wmax)] for (s, e) in wins],
                      dtype=jnp.int32)              # (P, wmax) static window rows
    out = jnp.max(rowfull[idx], axis=1)             # (P, B, C_L)
    return jnp.transpose(out, (1, 0, 2))            # (B, P, C_L)


# ----------------------------- parameters & forward --------------------------------

def init_params(key, channels, eps=1e-5):
    """Deterministic synthetic Conv2d(1x1)+BatchNorm2d params, BN as scale/shift."""
    params = []
    for cin, cout in zip(channels[:-1], channels[1:]):
        key, k1, k2, k3, k4, k5, k6 = jax.random.split(key, 7)
        w = jax.random.normal(k1, (cin, cout), jnp.float32) * 0.2
        b = jax.random.normal(k2, (1, cout), jnp.float32) * 0.1
        gamma = jax.random.uniform(k3, (1, cout), jnp.float32, minval=0.5, maxval=1.5)
        beta = jax.random.normal(k4, (1, cout), jnp.float32) * 0.1
        rmean = jax.random.normal(k5, (1, cout), jnp.float32) * 0.1
        rvar = jax.random.uniform(k6, (1, cout), jnp.float32, minval=0.5, maxval=1.5)
        scale = gamma / jnp.sqrt(rvar + eps)
        shift = beta - rmean * scale
        params.append((w, b, scale, shift))
    return params


def pointnet_forward(pointcloud, params, *, num_points, feat_in_dim, n_sample, radius):
    """pointcloud: (B, N, 3 + D). Returns (B, num_points, 3 + C_last * len(radius))."""
    position = pointcloud[:, :, :3]
    features = pointcloud[:, :, -feat_in_dim:]               # use_xyz=False path
    sample_position, idx = sample_farthest_points(position, K=num_points)
    sample_features = masked_gather(features, idx)
    folded = fold_bn_params(params)
    border_cum = _border_cum(folded)
    feature_list = []
    for r, k in zip(radius, n_sample):
        _, _, fg = ball_query(sample_features, features, K=k, radius=r)  # (B,P,k,D)
        feature_list.append(conv_chain_pool(fg, folded, border_cum))     # (B,P,CL)
    return jnp.concatenate([sample_position] + feature_list, axis=2)


# ----------------------------- dense reference (check) -----------------------------

def _reference_conv_pool(fg, folded):
    """Dense padded-grid reference for ConvBlk + AdaptiveMaxPool2d((P, 1)); mirrors
    the kernel's bf16-matmul / f32-accumulate dtype strategy."""
    B, P, K, C0 = fg.shape
    L = len(folded)
    x = fg.astype(jnp.bfloat16)
    for i, (w, b) in enumerate(folded):
        x = jnp.pad(x, ((0, 0), (1, 1), (1, 1), (0, 0)))
        y = jnp.dot(x.astype(jnp.bfloat16), w.astype(jnp.bfloat16),
                    preferred_element_type=jnp.float32)
        x = jnp.maximum(y + b, 0.0)
        if i + 1 < L:
            x = x.astype(jnp.bfloat16)
    Hf = x.shape[1]
    rows = []
    for i in range(P):
        s = (i * Hf) // P
        e = ((i + 1) * Hf + P - 1) // P
        rows.append(jnp.max(x[:, s:e, :, :], axis=(1, 2)))
    return jnp.stack(rows, axis=1)                  # (B, P, C_L)


def reference_forward(pointcloud, params, *, num_points, feat_in_dim, n_sample, radius):
    position = pointcloud[:, :, :3]
    features = pointcloud[:, :, -feat_in_dim:]
    sample_position, idx = sample_farthest_points(position, K=num_points)
    sample_features = masked_gather(features, idx)
    folded = fold_bn_params(params)
    feats = []
    for r, k in zip(radius, n_sample):
        _, _, fg = ball_query(sample_features, features, K=k, radius=r)
        feats.append(_reference_conv_pool(fg, folded))
    return jnp.concatenate([sample_position] + feats, axis=2)


if __name__ == "__main__":
    key = jax.random.PRNGKey(0)
    B, N, D = 2, 64, 8
    num_points = 16
    n_sample = [8, 16]
    radius = [3.0, 5.0]
    conv_out_channels = [16, 32]

    k_pc, k_prm = jax.random.split(key)
    pointcloud = jax.random.normal(k_pc, (B, N, 3 + D), jnp.float32)
    params = init_params(k_prm, [D] + conv_out_channels)

    @jax.jit
    def fwd(pc, prms):
        return pointnet_forward(
            pc, prms,
            num_points=num_points, feat_in_dim=D, n_sample=n_sample, radius=radius,
        )

    @jax.jit
    def fwd_ref(pc, prms):
        return reference_forward(
            pc, prms,
            num_points=num_points, feat_in_dim=D, n_sample=n_sample, radius=radius,
        )

    out = fwd(pointcloud, params)
    jax.block_until_ready(out)
    assert out.shape == (B, num_points, 3 + conv_out_channels[-1] * len(radius)), out.shape

    ref = fwd_ref(pointcloud, params)
    jax.block_until_ready(ref)
    err = float(jnp.max(jnp.abs(out - ref)))
    assert jnp.allclose(out, ref, rtol=2e-2, atol=2e-2), err

    print("KERNEL_OK")
</pallas_src>

<mosaic_0001>
module attributes {stable_mosaic.version = 11 : i64} {
  func.func @kernel(%arg0: i32, %arg1: i32, %arg2: memref<8x16x8xbf16, #tpu.memory_space<vmem>>, %arg3: memref<8x16xbf16, #tpu.memory_space<vmem>>, %arg4: memref<1x16xf32, #tpu.memory_space<vmem>>, %arg5: memref<16x32xbf16, #tpu.memory_space<vmem>>, %arg6: memref<1x32xf32, #tpu.memory_space<vmem>>, %arg7: memref<16x32xf32, #tpu.memory_space<vmem>>) attributes {dimension_semantics = [#tpu.dimension_semantics<parallel>, #tpu.dimension_semantics<arbitrary>], iteration_bounds = array<i64: 2, 1>, scalar_prefetch = 0 : i64, scratch_operands = 0 : i64, tpu.core_type = #tpu.core_type<tc>, window_params = [{transform_indices = @transform_0, window_bounds = array<i64: 8, 16, 8>}, {pipeline_mode = #tpu.pipeline_mode<synchronous>, transform_indices = @transform_1, window_bounds = array<i64: 8, 16>}, {pipeline_mode = #tpu.pipeline_mode<synchronous>, transform_indices = @transform_2, window_bounds = array<i64: 1, 16>}, {pipeline_mode = #tpu.pipeline_mode<synchronous>, transform_indices = @transform_3, window_bounds = array<i64: 16, 32>}, {pipeline_mode = #tpu.pipeline_mode<synchronous>, transform_indices = @transform_4, window_bounds = array<i64: 1, 32>}, {transform_indices = @transform_5, window_bounds = array<i64: 16, 32>}]} {
    %c0 = arith.constant 0 : index
    %c0_0 = arith.constant 0 : index
    %0 = vector.load %arg3[%c0, %c0_0] : memref<8x16xbf16, #tpu.memory_space<vmem>>, vector<8x16xbf16>
    %c0_1 = arith.constant 0 : index
    %c0_2 = arith.constant 0 : index
    %1 = vector.load %arg5[%c0_1, %c0_2] : memref<16x32xbf16, #tpu.memory_space<vmem>>, vector<16x32xbf16>
    %c0_3 = arith.constant 0 : index
    %c0_4 = arith.constant 0 : index
    %2 = vector.load %arg4[%c0_3, %c0_4] : memref<1x16xf32, #tpu.memory_space<vmem>>, vector<1x16xf32>
    %c0_5 = arith.constant 0 : index
    %c0_6 = arith.constant 0 : index
    %3 = vector.load %arg6[%c0_5, %c0_6] : memref<1x32xf32, #tpu.memory_space<vmem>>, vector<1x32xf32>
    %c0_7 = arith.constant 0 : index
    %c0_8 = arith.constant 0 : index
    %c0_9 = arith.constant 0 : index
    %4 = vector.load %arg2[%c0_7, %c0_8, %c0_9] : memref<8x16x8xbf16, #tpu.memory_space<vmem>>, vector<1x16x8xbf16>
    %5 = vector.shape_cast %4 : vector<1x16x8xbf16> to vector<16x8xbf16>
    %cst = arith.constant dense<0.000000e+00> : vector<16x16xf32>
    %6 = tpu.matmul %5, %0, %cst {dimension_numbers = #tpu.dot_dimension_numbers<[1], [0], [0], [1], [0, 0, 1, 1], [], []>} : vector<16x8xbf16>, vector<8x16xbf16>, vector<16x16xf32> -> vector<16x16xf32>
    %7 = vector.broadcast %2 : vector<1x16xf32> to vector<16x16xf32>
    %8 = arith.addf %6, %7 : vector<16x16xf32>
    %cst_10 = arith.constant 0.000000e+00 : f32
    %9 = vector.broadcast %cst_10 : f32 to vector<16x16xf32>
    %10 = arith.maximumf %8, %9 : vector<16x16xf32>
    %11 = arith.truncf %10 : vector<16x16xf32> to vector<16x16xbf16>
    %cst_11 = arith.constant dense<0.000000e+00> : vector<16x32xf32>
    %12 = tpu.matmul %11, %1, %cst_11 {dimension_numbers = #tpu.dot_dimension_numbers<[1], [0], [0], [1], [0, 0, 1, 1], [], []>} : vector<16x16xbf16>, vector<16x32xbf16>, vector<16x32xf32> -> vector<16x32xf32>
    %13 = vector.broadcast %3 : vector<1x32xf32> to vector<16x32xf32>
    %14 = arith.addf %12, %13 : vector<16x32xf32>
    %cst_12 = arith.constant 0.000000e+00 : f32
    %15 = vector.broadcast %cst_12 : f32 to vector<16x32xf32>
    %16 = arith.maximumf %14, %15 : vector<16x32xf32>
    %c1 = arith.constant 1 : index
    %c0_13 = arith.constant 0 : index
    %c0_14 = arith.constant 0 : index
    %17 = vector.load %arg2[%c1, %c0_13, %c0_14] : memref<8x16x8xbf16, #tpu.memory_space<vmem>>, vector<1x16x8xbf16>
    %18 = vector.shape_cast %17 : vector<1x16x8xbf16> to vector<16x8xbf16>
    %cst_15 = arith.constant dense<0.000000e+00> : vector<16x16xf32>
    %19 = tpu.matmul %18, %0, %cst_15 {dimension_numbers = #tpu.dot_dimension_numbers<[1], [0], [0], [1], [0, 0, 1, 1], [], []>} : vector<16x8xbf16>, vector<8x16xbf16>, vector<16x16xf32> -> vector<16x16xf32>
    %20 = vector.broadcast %2 : vector<1x16xf32> to vector<16x16xf32>
    %21 = arith.addf %19, %20 : vector<16x16xf32>
    %cst_16 = arith.constant 0.000000e+00 : f32
    %22 = vector.broadcast %cst_16 : f32 to vector<16x16xf32>
    %23 = arith.maximumf %21, %22 : vector<16x16xf32>
    %24 = arith.truncf %23 : vector<16x16xf32> to vector<16x16xbf16>
    %cst_17 = arith.constant dense<0.000000e+00> : vector<16x32xf32>
    %25 = tpu.matmul %24, %1, %cst_17 {dimension_numbers = #tpu.dot_dimension_numbers<[1], [0], [0], [1], [0, 0, 1, 1], [], []>} : vector<16x16xbf16>, vector<16x32xbf16>, vector<16x32xf32> -> vector<16x32xf32>
    %26 = vector.broadcast %3 : vector<1x32xf32> to vector<16x32xf32>
    %27 = arith.addf %25, %26 : vector<16x32xf32>
    %cst_18 = arith.constant 0.000000e+00 : f32
    %28 = vector.broadcast %cst_18 : f32 to vector<16x32xf32>
    %29 = arith.maximumf %27, %28 : vector<16x32xf32>
    %30 = arith.maximumf %16, %29 : vector<16x32xf32>
    %c2 = arith.constant 2 : index
    %c0_19 = arith.constant 0 : index
    %c0_20 = arith.constant 0 : index
    %31 = vector.load %arg2[%c2, %c0_19, %c0_20] : memref<8x16x8xbf16, #tpu.memory_space<vmem>>, vector<1x16x8xbf16>
    %32 = vector.shape_cast %31 : vector<1x16x8xbf16> to vector<16x8xbf16>
    %cst_21 = arith.constant dense<0.000000e+00> : vector<16x16xf32>
    %33 = tpu.matmul %32, %0, %cst_21 {dimension_numbers = #tpu.dot_dimension_numbers<[1], [0], [0], [1], [0, 0, 1, 1], [], []>} : vector<16x8xbf16>, vector<8x16xbf16>, vector<16x16xf32> -> vector<16x16xf32>
    %34 = vector.broadcast %2 : vector<1x16xf32> to vector<16x16xf32>
    %35 = arith.addf %33, %34 : vector<16x16xf32>
    %cst_22 = arith.constant 0.000000e+00 : f32
    %36 = vector.broadcast %cst_22 : f32 to vector<16x16xf32>
    %37 = arith.maximumf %35, %36 : vector<16x16xf32>
    %38 = arith.truncf %37 : vector<16x16xf32> to vector<16x16xbf16>
    %cst_23 = arith.constant dense<0.000000e+00> : vector<16x32xf32>
    %39 = tpu.matmul %38, %1, %cst_23 {dimension_numbers = #tpu.dot_dimension_numbers<[1], [0], [0], [1], [0, 0, 1, 1], [], []>} : vector<16x16xbf16>, vector<16x32xbf16>, vector<16x32xf32> -> vector<16x32xf32>
    %40 = vector.broadcast %3 : vector<1x32xf32> to vector<16x32xf32>
    %41 = arith.addf %39, %40 : vector<16x32xf32>
    %cst_24 = arith.constant 0.000000e+00 : f32
    %42 = vector.broadcast %cst_24 : f32 to vector<16x32xf32>
    %43 = arith.maximumf %41, %42 : vector<16x32xf32>
    %44 = arith.maximumf %30, %43 : vector<16x32xf32>
    %c3 = arith.constant 3 : index
    %c0_25 = arith.constant 0 : index
    %c0_26 = arith.constant 0 : index
    %45 = vector.load %arg2[%c3, %c0_25, %c0_26] : memref<8x16x8xbf16, #tpu.memory_space<vmem>>, vector<1x16x8xbf16>
    %46 = vector.shape_cast %45 : vector<1x16x8xbf16> to vector<16x8xbf16>
    %cst_27 = arith.constant dense<0.000000e+00> : vector<16x16xf32>
    %47 = tpu.matmul %46, %0, %cst_27 {dimension_numbers = #tpu.dot_dimension_numbers<[1], [0], [0], [1], [0, 0, 1, 1], [], []>} : vector<16x8xbf16>, vector<8x16xbf16>, vector<16x16xf32> -> vector<16x16xf32>
    %48 = vector.broadcast %2 : vector<1x16xf32> to vector<16x16xf32>
    %49 = arith.addf %47, %48 : vector<16x16xf32>
    %cst_28 = arith.constant 0.000000e+00 : f32
    %50 = vector.broadcast %cst_28 : f32 to vector<16x16xf32>
    %51 = arith.maximumf %49, %50 : vector<16x16xf32>
    %52 = arith.truncf %51 : vector<16x16xf32> to vector<16x16xbf16>
    %cst_29 = arith.constant dense<0.000000e+00> : vector<16x32xf32>
    %53 = tpu.matmul %52, %1, %cst_29 {dimension_numbers = #tpu.dot_dimension_numbers<[1], [0], [0], [1], [0, 0, 1, 1], [], []>} : vector<16x16xbf16>, vector<16x32xbf16>, vector<16x32xf32> -> vector<16x32xf32>
    %54 = vector.broadcast %3 : vector<1x32xf32> to vector<16x32xf32>
    %55 = arith.addf %53, %54 : vector<16x32xf32>
    %cst_30 = arith.constant 0.000000e+00 : f32
    %56 = vector.broadcast %cst_30 : f32 to vector<16x32xf32>
    %57 = arith.maximumf %55, %56 : vector<16x32xf32>
    %58 = arith.maximumf %44, %57 : vector<16x32xf32>
    %c4 = arith.constant 4 : index
    %c0_31 = arith.constant 0 : index
    %c0_32 = arith.constant 0 : index
    %59 = vector.load %arg2[%c4, %c0_31, %c0_32] : memref<8x16x8xbf16, #tpu.memory_space<vmem>>, vector<1x16x8xbf16>
    %60 = vector.shape_cast %59 : vector<1x16x8xbf16> to vector<16x8xbf16>
    %cst_33 = arith.constant dense<0.000000e+00> : vector<16x16xf32>
    %61 = tpu.matmul %60, %0, %cst_33 {dimension_numbers = #tpu.dot_dimension_numbers<[1], [0], [0], [1], [0, 0, 1, 1], [], []>} : vector<16x8xbf16>, vector<8x16xbf16>, vector<16x16xf32> -> vector<16x16xf32>
    %62 = vector.broadcast %2 : vector<1x16xf32> to vector<16x16xf32>
    %63 = arith.addf %61, %62 : vector<16x16xf32>
    %cst_34 = arith.constant 0.000000e+00 : f32
    %64 = vector.broadcast %cst_34 : f32 to vector<16x16xf32>
    %65 = arith.maximumf %63, %64 : vector<16x16xf32>
    %66 = arith.truncf %65 : vector<16x16xf32> to vector<16x16xbf16>
    %cst_35 = arith.constant dense<0.000000e+00> : vector<16x32xf32>
    %67 = tpu.matmul %66, %1, %cst_35 {dimension_numbers = #tpu.dot_dimension_numbers<[1], [0], [0], [1], [0, 0, 1, 1], [], []>} : vector<16x16xbf16>, vector<16x32xbf16>, vector<16x32xf32> -> vector<16x32xf32>
    %68 = vector.broadcast %3 : vector<1x32xf32> to vector<16x32xf32>
    %69 = arith.addf %67, %68 : vector<16x32xf32>
    %cst_36 = arith.constant 0.000000e+00 : f32
    %70 = vector.broadcast %cst_36 : f32 to vector<16x32xf32>
    %71 = arith.maximumf %69, %70 : vector<16x32xf32>
    %72 = arith.maximumf %58, %71 : vector<16x32xf32>
    %c5 = arith.constant 5 : index
    %c0_37 = arith.constant 0 : index
    %c0_38 = arith.constant 0 : index
    %73 = vector.load %arg2[%c5, %c0_37, %c0_38] : memref<8x16x8xbf16, #tpu.memory_space<vmem>>, vector<1x16x8xbf16>
    %74 = vector.shape_cast %73 : vector<1x16x8xbf16> to vector<16x8xbf16>
    %cst_39 = arith.constant dense<0.000000e+00> : vector<16x16xf32>
    %75 = tpu.matmul %74, %0, %cst_39 {dimension_numbers = #tpu.dot_dimension_numbers<[1], [0], [0], [1], [0, 0, 1, 1], [], []>} : vector<16x8xbf16>, vector<8x16xbf16>, vector<16x16xf32> -> vector<16x16xf32>
    %76 = vector.broadcast %2 : vector<1x16xf32> to vector<16x16xf32>
    %77 = arith.addf %75, %76 : vector<16x16xf32>
    %cst_40 = arith.constant 0.000000e+00 : f32
    %78 = vector.broadcast %cst_40 : f32 to vector<16x16xf32>
    %79 = arith.maximumf %77, %78 : vector<16x16xf32>
    %80 = arith.truncf %79 : vector<16x16xf32> to vector<16x16xbf16>
    %cst_41 = arith.constant dense<0.000000e+00> : vector<16x32xf32>
    %81 = tpu.matmul %80, %1, %cst_41 {dimension_numbers = #tpu.dot_dimension_numbers<[1], [0], [0], [1], [0, 0, 1, 1], [], []>} : vector<16x16xbf16>, vector<16x32xbf16>, vector<16x32xf32> -> vector<16x32xf32>
    %82 = vector.broadcast %3 : vector<1x32xf32> to vector<16x32xf32>
    %83 = arith.addf %81, %82 : vector<16x32xf32>
    %cst_42 = arith.constant 0.000000e+00 : f32
    %84 = vector.broadcast %cst_42 : f32 to vector<16x32xf32>
    %85 = arith.maximumf %83, %84 : vector<16x32xf32>
    %86 = arith.maximumf %72, %85 : vector<16x32xf32>
    %c6 = arith.constant 6 : index
    %c0_43 = arith.constant 0 : index
    %c0_44 = arith.constant 0 : index
    %87 = vector.load %arg2[%c6, %c0_43, %c0_44] : memref<8x16x8xbf16, #tpu.memory_space<vmem>>, vector<1x16x8xbf16>
    %88 = vector.shape_cast %87 : vector<1x16x8xbf16> to vector<16x8xbf16>
    %cst_45 = arith.constant dense<0.000000e+00> : vector<16x16xf32>
    %89 = tpu.matmul %88, %0, %cst_45 {dimension_numbers = #tpu.dot_dimension_numbers<[1], [0], [0], [1], [0, 0, 1, 1], [], []>} : vector<16x8xbf16>, vector<8x16xbf16>, vector<16x16xf32> -> vector<16x16xf32>
    %90 = vector.broadcast %2 : vector<1x16xf32> to vector<16x16xf32>
    %91 = arith.addf %89, %90 : vector<16x16xf32>
    %cst_46 = arith.constant 0.000000e+00 : f32
    %92 = vector.broadcast %cst_46 : f32 to vector<16x16xf32>
    %93 = arith.maximumf %91, %92 : vector<16x16xf32>
    %94 = arith.truncf %93 : vector<16x16xf32> to vector<16x16xbf16>
    %cst_47 = arith.constant dense<0.000000e+00> : vector<16x32xf32>
    %95 = tpu.matmul %94, %1, %cst_47 {dimension_numbers = #tpu.dot_dimension_numbers<[1], [0], [0], [1], [0, 0, 1, 1], [], []>} : vector<16x16xbf16>, vector<16x32xbf16>, vector<16x32xf32> -> vector<16x32xf32>
    %96 = vector.broadcast %3 : vector<1x32xf32> to vector<16x32xf32>
    %97 = arith.addf %95, %96 : vector<16x32xf32>
    %cst_48 = arith.constant 0.000000e+00 : f32
    %98 = vector.broadcast %cst_48 : f32 to vector<16x32xf32>
    %99 = arith.maximumf %97, %98 : vector<16x32xf32>
    %100 = arith.maximumf %86, %99 : vector<16x32xf32>
    %c7 = arith.constant 7 : index
    %c0_49 = arith.constant 0 : index
    %c0_50 = arith.constant 0 : index
    %101 = vector.load %arg2[%c7, %c0_49, %c0_50] : memref<8x16x8xbf16, #tpu.memory_space<vmem>>, vector<1x16x8xbf16>
    %102 = vector.shape_cast %101 : vector<1x16x8xbf16> to vector<16x8xbf16>
    %cst_51 = arith.constant dense<0.000000e+00> : vector<16x16xf32>
    %103 = tpu.matmul %102, %0, %cst_51 {dimension_numbers = #tpu.dot_dimension_numbers<[1], [0], [0], [1], [0, 0, 1, 1], [], []>} : vector<16x8xbf16>, vector<8x16xbf16>, vector<16x16xf32> -> vector<16x16xf32>
    %104 = vector.broadcast %2 : vector<1x16xf32> to vector<16x16xf32>
    %105 = arith.addf %103, %104 : vector<16x16xf32>
    %cst_52 = arith.constant 0.000000e+00 : f32
    %106 = vector.broadcast %cst_52 : f32 to vector<16x16xf32>
    %107 = arith.maximumf %105, %106 : vector<16x16xf32>
    %108 = arith.truncf %107 : vector<16x16xf32> to vector<16x16xbf16>
    %cst_53 = arith.constant dense<0.000000e+00> : vector<16x32xf32>
    %109 = tpu.matmul %108, %1, %cst_53 {dimension_numbers = #tpu.dot_dimension_numbers<[1], [0], [0], [1], [0, 0, 1, 1], [], []>} : vector<16x16xbf16>, vector<16x32xbf16>, vector<16x32xf32> -> vector<16x32xf32>
    %110 = vector.broadcast %3 : vector<1x32xf32> to vector<16x32xf32>
    %111 = arith.addf %109, %110 : vector<16x32xf32>
    %cst_54 = arith.constant 0.000000e+00 : f32
    %112 = vector.broadcast %cst_54 : f32 to vector<16x32xf32>
    %113 = arith.maximumf %111, %112 : vector<16x32xf32>
    %114 = arith.maximumf %100, %113 : vector<16x32xf32>
    %c0_i32 = arith.constant 0 : i32
    %115 = arith.cmpi eq, %arg1, %c0_i32 : i32
    %116 = arith.extui %115 : i1 to i32
    %c0_i32_55 = arith.constant 0 : i32
    %117 = arith.cmpi ne, %116, %c0_i32_55 : i32
    scf.if %117 {
      %c0_58 = arith.constant 0 : index
      %c0_59 = arith.constant 0 : index
      %121 = vector.load %arg7[%c0_58, %c0_59] : memref<16x32xf32, #tpu.memory_space<vmem>>, vector<16x32xf32>
      tpu.vector_store %arg7[%c0_58, %c0_59], %114 {strides = array<i32>} : memref<16x32xf32, #tpu.memory_space<vmem>>, vector<16x32xf32>,
    } else {
    }
    %c0_i32_56 = arith.constant 0 : i32
    %118 = arith.cmpi sgt, %arg1, %c0_i32_56 : i32
    %119 = arith.extui %118 : i1 to i32
    %c0_i32_57 = arith.constant 0 : i32
    %120 = arith.cmpi ne, %119, %c0_i32_57 : i32
    scf.if %120 {
      %c0_58 = arith.constant 0 : index
      %c0_59 = arith.constant 0 : index
      %121 = vector.load %arg7[%c0_58, %c0_59] : memref<16x32xf32, #tpu.memory_space<vmem>>, vector<16x32xf32>
      %122 = arith.maximumf %121, %114 : vector<16x32xf32>
      %c0_60 = arith.constant 0 : index
      %c0_61 = arith.constant 0 : index
      %123 = vector.load %arg7[%c0_60, %c0_61] : memref<16x32xf32, #tpu.memory_space<vmem>>, vector<16x32xf32>
      tpu.vector_store %arg7[%c0_60, %c0_61], %122 {strides = array<i32>} : memref<16x32xf32, #tpu.memory_space<vmem>>, vector<16x32xf32>,
    } else {
    }
    return
  }
  func.func @transform_0(%arg0: i32, %arg1: i32) -> (i32, i32, i32) {
    %c0_i32 = arith.constant 0 : i32
    %c0_i32_0 = arith.constant 0 : i32
    return %arg1, %arg0, %c0_i32 : i32, i32, i32
  }
  func.func @transform_1(%arg0: i32, %arg1: i32) -> (i32, i32) {
    %c0_i32 = arith.constant 0 : i32
    %c0_i32_0 = arith.constant 0 : i32
    %c0_i32_1 = arith.constant 0 : i32
    return %c0_i32, %c0_i32_0 : i32, i32
  }
  func.func @transform_2(%arg0: i32, %arg1: i32) -> (i32, i32) {
    %c0_i32 = arith.constant 0 : i32
    %c0_i32_0 = arith.constant 0 : i32
    %c0_i32_1 = arith.constant 0 : i32
    return %c0_i32, %c0_i32_0 : i32, i32
  }
  func.func @transform_3(%arg0: i32, %arg1: i32) -> (i32, i32) {
    %c0_i32 = arith.constant 0 : i32
    %c0_i32_0 = arith.constant 0 : i32
    %c0_i32_1 = arith.constant 0 : i32
    return %c0_i32, %c0_i32_0 : i32, i32
  }
  func.func @transform_4(%arg0: i32, %arg1: i32) -> (i32, i32) {
    %c0_i32 = arith.constant 0 : i32
    %c0_i32_0 = arith.constant 0 : i32
    %c0_i32_1 = arith.constant 0 : i32
    return %c0_i32, %c0_i32_0 : i32, i32
  }
  func.func @transform_5(%arg0: i32, %arg1: i32) -> (i32, i32) {
    %c0_i32 = arith.constant 0 : i32
    %c0_i32_0 = arith.constant 0 : i32
    return %arg0, %c0_i32 : i32, i32
  }
}

module attributes {stable_mosaic.version = 11 : i64} {
  func.func @kernel(%arg0: i32, %arg1: i32, %arg2: memref<8x16x8xbf16, #tpu.memory_space<vmem>>, %arg3: memref<8x16xbf16, #tpu.memory_space<vmem>>, %arg4: memref<1x16xf32, #tpu.memory_space<vmem>>, %arg5: memref<16x32xbf16, #tpu.memory_space<vmem>>, %arg6: memref<1x32xf32, #tpu.memory_space<vmem>>, %arg7: memref<16x32xf32, #tpu.memory_space<vmem>>) attributes {dimension_semantics = [#tpu.dimension_semantics<parallel>, #tpu.dimension_semantics<arbitrary>], iteration_bounds = array<i64: 2, 2>, scalar_prefetch = 0 : i64, scratch_operands = 0 : i64, tpu.core_type = #tpu.core_type<tc>, window_params = [{transform_indices = @transform_0, window_bounds = array<i64: 8, 16, 8>}, {pipeline_mode = #tpu.pipeline_mode<synchronous>, transform_indices = @transform_1, window_bounds = array<i64: 8, 16>}, {pipeline_mode = #tpu.pipeline_mode<synchronous>, transform_indices = @transform_2, window_bounds = array<i64: 1, 16>}, {pipeline_mode = #tpu.pipeline_mode<synchronous>, transform_indices = @transform_3, window_bounds = array<i64: 16, 32>}, {pipeline_mode = #tpu.pipeline_mode<synchronous>, transform_indices = @transform_4, window_bounds = array<i64: 1, 32>}, {transform_indices = @transform_5, window_bounds = array<i64: 16, 32>}]} {
    %c0 = arith.constant 0 : index
    %c0_0 = arith.constant 0 : index
    %0 = vector.load %arg3[%c0, %c0_0] : memref<8x16xbf16, #tpu.memory_space<vmem>>, vector<8x16xbf16>
    %c0_1 = arith.constant 0 : index
    %c0_2 = arith.constant 0 : index
    %1 = vector.load %arg5[%c0_1, %c0_2] : memref<16x32xbf16, #tpu.memory_space<vmem>>, vector<16x32xbf16>
    %c0_3 = arith.constant 0 : index
    %c0_4 = arith.constant 0 : index
    %2 = vector.load %arg4[%c0_3, %c0_4] : memref<1x16xf32, #tpu.memory_space<vmem>>, vector<1x16xf32>
    %c0_5 = arith.constant 0 : index
    %c0_6 = arith.constant 0 : index
    %3 = vector.load %arg6[%c0_5, %c0_6] : memref<1x32xf32, #tpu.memory_space<vmem>>, vector<1x32xf32>
    %c0_7 = arith.constant 0 : index
    %c0_8 = arith.constant 0 : index
    %c0_9 = arith.constant 0 : index
    %4 = vector.load %arg2[%c0_7, %c0_8, %c0_9] : memref<8x16x8xbf16, #tpu.memory_space<vmem>>, vector<1x16x8xbf16>
    %5 = vector.shape_cast %4 : vector<1x16x8xbf16> to vector<16x8xbf16>
    %cst = arith.constant dense<0.000000e+00> : vector<16x16xf32>
    %6 = tpu.matmul %5, %0, %cst {dimension_numbers = #tpu.dot_dimension_numbers<[1], [0], [0], [1], [0, 0, 1, 1], [], []>} : vector<16x8xbf16>, vector<8x16xbf16>, vector<16x16xf32> -> vector<16x16xf32>
    %7 = vector.broadcast %2 : vector<1x16xf32> to vector<16x16xf32>
    %8 = arith.addf %6, %7 : vector<16x16xf32>
    %cst_10 = arith.constant 0.000000e+00 : f32
    %9 = vector.broadcast %cst_10 : f32 to vector<16x16xf32>
    %10 = arith.maximumf %8, %9 : vector<16x16xf32>
    %11 = arith.truncf %10 : vector<16x16xf32> to vector<16x16xbf16>
    %cst_11 = arith.constant dense<0.000000e+00> : vector<16x32xf32>
    %12 = tpu.matmul %11, %1, %cst_11 {dimension_numbers = #tpu.dot_dimension_numbers<[1], [0], [0], [1], [0, 0, 1, 1], [], []>} : vector<16x16xbf16>, vector<16x32xbf16>, vector<16x32xf32> -> vector<16x32xf32>
    %13 = vector.broadcast %3 : vector<1x32xf32> to vector<16x32xf32>
    %14 = arith.addf %12, %13 : vector<16x32xf32>
    %cst_12 = arith.constant 0.000000e+00 : f32
    %15 = vector.broadcast %cst_12 : f32 to vector<16x32xf32>
    %16 = arith.maximumf %14, %15 : vector<16x32xf32>
    %c1 = arith.constant 1 : index
    %c0_13 = arith.constant 0 : index
    %c0_14 = arith.constant 0 : index
    %17 = vector.load %arg2[%c1, %c0_13, %c0_14] : memref<8x16x8xbf16, #tpu.memory_space<vmem>>, vector<1x16x8xbf16>
    %18 = vector.shape_cast %17 : vector<1x16x8xbf16> to vector<16x8xbf16>
    %cst_15 = arith.constant dense<0.000000e+00> : vector<16x16xf32>
    %19 = tpu.matmul %18, %0, %cst_15 {dimension_numbers = #tpu.dot_dimension_numbers<[1], [0], [0], [1], [0, 0, 1, 1], [], []>} : vector<16x8xbf16>, vector<8x16xbf16>, vector<16x16xf32> -> vector<16x16xf32>
    %20 = vector.broadcast %2 : vector<1x16xf32> to vector<16x16xf32>
    %21 = arith.addf %19, %20 : vector<16x16xf32>
    %cst_16 = arith.constant 0.000000e+00 : f32
    %22 = vector.broadcast %cst_16 : f32 to vector<16x16xf32>
    %23 = arith.maximumf %21, %22 : vector<16x16xf32>
    %24 = arith.truncf %23 : vector<16x16xf32> to vector<16x16xbf16>
    %cst_17 = arith.constant dense<0.000000e+00> : vector<16x32xf32>
    %25 = tpu.matmul %24, %1, %cst_17 {dimension_numbers = #tpu.dot_dimension_numbers<[1], [0], [0], [1], [0, 0, 1, 1], [], []>} : vector<16x16xbf16>, vector<16x32xbf16>, vector<16x32xf32> -> vector<16x32xf32>
    %26 = vector.broadcast %3 : vector<1x32xf32> to vector<16x32xf32>
    %27 = arith.addf %25, %26 : vector<16x32xf32>
    %cst_18 = arith.constant 0.000000e+00 : f32
    %28 = vector.broadcast %cst_18 : f32 to vector<16x32xf32>
    %29 = arith.maximumf %27, %28 : vector<16x32xf32>
    %30 = arith.maximumf %16, %29 : vector<16x32xf32>
    %c2 = arith.constant 2 : index
    %c0_19 = arith.constant 0 : index
    %c0_20 = arith.constant 0 : index
    %31 = vector.load %arg2[%c2, %c0_19, %c0_20] : memref<8x16x8xbf16, #tpu.memory_space<vmem>>, vector<1x16x8xbf16>
    %32 = vector.shape_cast %31 : vector<1x16x8xbf16> to vector<16x8xbf16>
    %cst_21 = arith.constant dense<0.000000e+00> : vector<16x16xf32>
    %33 = tpu.matmul %32, %0, %cst_21 {dimension_numbers = #tpu.dot_dimension_numbers<[1], [0], [0], [1], [0, 0, 1, 1], [], []>} : vector<16x8xbf16>, vector<8x16xbf16>, vector<16x16xf32> -> vector<16x16xf32>
    %34 = vector.broadcast %2 : vector<1x16xf32> to vector<16x16xf32>
    %35 = arith.addf %33, %34 : vector<16x16xf32>
    %cst_22 = arith.constant 0.000000e+00 : f32
    %36 = vector.broadcast %cst_22 : f32 to vector<16x16xf32>
    %37 = arith.maximumf %35, %36 : vector<16x16xf32>
    %38 = arith.truncf %37 : vector<16x16xf32> to vector<16x16xbf16>
    %cst_23 = arith.constant dense<0.000000e+00> : vector<16x32xf32>
    %39 = tpu.matmul %38, %1, %cst_23 {dimension_numbers = #tpu.dot_dimension_numbers<[1], [0], [0], [1], [0, 0, 1, 1], [], []>} : vector<16x16xbf16>, vector<16x32xbf16>, vector<16x32xf32> -> vector<16x32xf32>
    %40 = vector.broadcast %3 : vector<1x32xf32> to vector<16x32xf32>
    %41 = arith.addf %39, %40 : vector<16x32xf32>
    %cst_24 = arith.constant 0.000000e+00 : f32
    %42 = vector.broadcast %cst_24 : f32 to vector<16x32xf32>
    %43 = arith.maximumf %41, %42 : vector<16x32xf32>
    %44 = arith.maximumf %30, %43 : vector<16x32xf32>
    %c3 = arith.constant 3 : index
    %c0_25 = arith.constant 0 : index
    %c0_26 = arith.constant 0 : index
    %45 = vector.load %arg2[%c3, %c0_25, %c0_26] : memref<8x16x8xbf16, #tpu.memory_space<vmem>>, vector<1x16x8xbf16>
    %46 = vector.shape_cast %45 : vector<1x16x8xbf16> to vector<16x8xbf16>
    %cst_27 = arith.constant dense<0.000000e+00> : vector<16x16xf32>
    %47 = tpu.matmul %46, %0, %cst_27 {dimension_numbers = #tpu.dot_dimension_numbers<[1], [0], [0], [1], [0, 0, 1, 1], [], []>} : vector<16x8xbf16>, vector<8x16xbf16>, vector<16x16xf32> -> vector<16x16xf32>
    %48 = vector.broadcast %2 : vector<1x16xf32> to vector<16x16xf32>
    %49 = arith.addf %47, %48 : vector<16x16xf32>
    %cst_28 = arith.constant 0.000000e+00 : f32
    %50 = vector.broadcast %cst_28 : f32 to vector<16x16xf32>
    %51 = arith.maximumf %49, %50 : vector<16x16xf32>
    %52 = arith.truncf %51 : vector<16x16xf32> to vector<16x16xbf16>
    %cst_29 = arith.constant dense<0.000000e+00> : vector<16x32xf32>
    %53 = tpu.matmul %52, %1, %cst_29 {dimension_numbers = #tpu.dot_dimension_numbers<[1], [0], [0], [1], [0, 0, 1, 1], [], []>} : vector<16x16xbf16>, vector<16x32xbf16>, vector<16x32xf32> -> vector<16x32xf32>
    %54 = vector.broadcast %3 : vector<1x32xf32> to vector<16x32xf32>
    %55 = arith.addf %53, %54 : vector<16x32xf32>
    %cst_30 = arith.constant 0.000000e+00 : f32
    %56 = vector.broadcast %cst_30 : f32 to vector<16x32xf32>
    %57 = arith.maximumf %55, %56 : vector<16x32xf32>
    %58 = arith.maximumf %44, %57 : vector<16x32xf32>
    %c4 = arith.constant 4 : index
    %c0_31 = arith.constant 0 : index
    %c0_32 = arith.constant 0 : index
    %59 = vector.load %arg2[%c4, %c0_31, %c0_32] : memref<8x16x8xbf16, #tpu.memory_space<vmem>>, vector<1x16x8xbf16>
    %60 = vector.shape_cast %59 : vector<1x16x8xbf16> to vector<16x8xbf16>
    %cst_33 = arith.constant dense<0.000000e+00> : vector<16x16xf32>
    %61 = tpu.matmul %60, %0, %cst_33 {dimension_numbers = #tpu.dot_dimension_numbers<[1], [0], [0], [1], [0, 0, 1, 1], [], []>} : vector<16x8xbf16>, vector<8x16xbf16>, vector<16x16xf32> -> vector<16x16xf32>
    %62 = vector.broadcast %2 : vector<1x16xf32> to vector<16x16xf32>
    %63 = arith.addf %61, %62 : vector<16x16xf32>
    %cst_34 = arith.constant 0.000000e+00 : f32
    %64 = vector.broadcast %cst_34 : f32 to vector<16x16xf32>
    %65 = arith.maximumf %63, %64 : vector<16x16xf32>
    %66 = arith.truncf %65 : vector<16x16xf32> to vector<16x16xbf16>
    %cst_35 = arith.constant dense<0.000000e+00> : vector<16x32xf32>
    %67 = tpu.matmul %66, %1, %cst_35 {dimension_numbers = #tpu.dot_dimension_numbers<[1], [0], [0], [1], [0, 0, 1, 1], [], []>} : vector<16x16xbf16>, vector<16x32xbf16>, vector<16x32xf32> -> vector<16x32xf32>
    %68 = vector.broadcast %3 : vector<1x32xf32> to vector<16x32xf32>
    %69 = arith.addf %67, %68 : vector<16x32xf32>
    %cst_36 = arith.constant 0.000000e+00 : f32
    %70 = vector.broadcast %cst_36 : f32 to vector<16x32xf32>
    %71 = arith.maximumf %69, %70 : vector<16x32xf32>
    %72 = arith.maximumf %58, %71 : vector<16x32xf32>
    %c5 = arith.constant 5 : index
    %c0_37 = arith.constant 0 : index
    %c0_38 = arith.constant 0 : index
    %73 = vector.load %arg2[%c5, %c0_37, %c0_38] : memref<8x16x8xbf16, #tpu.memory_space<vmem>>, vector<1x16x8xbf16>
    %74 = vector.shape_cast %73 : vector<1x16x8xbf16> to vector<16x8xbf16>
    %cst_39 = arith.constant dense<0.000000e+00> : vector<16x16xf32>
    %75 = tpu.matmul %74, %0, %cst_39 {dimension_numbers = #tpu.dot_dimension_numbers<[1], [0], [0], [1], [0, 0, 1, 1], [], []>} : vector<16x8xbf16>, vector<8x16xbf16>, vector<16x16xf32> -> vector<16x16xf32>
    %76 = vector.broadcast %2 : vector<1x16xf32> to vector<16x16xf32>
    %77 = arith.addf %75, %76 : vector<16x16xf32>
    %cst_40 = arith.constant 0.000000e+00 : f32
    %78 = vector.broadcast %cst_40 : f32 to vector<16x16xf32>
    %79 = arith.maximumf %77, %78 : vector<16x16xf32>
    %80 = arith.truncf %79 : vector<16x16xf32> to vector<16x16xbf16>
    %cst_41 = arith.constant dense<0.000000e+00> : vector<16x32xf32>
    %81 = tpu.matmul %80, %1, %cst_41 {dimension_numbers = #tpu.dot_dimension_numbers<[1], [0], [0], [1], [0, 0, 1, 1], [], []>} : vector<16x16xbf16>, vector<16x32xbf16>, vector<16x32xf32> -> vector<16x32xf32>
    %82 = vector.broadcast %3 : vector<1x32xf32> to vector<16x32xf32>
    %83 = arith.addf %81, %82 : vector<16x32xf32>
    %cst_42 = arith.constant 0.000000e+00 : f32
    %84 = vector.broadcast %cst_42 : f32 to vector<16x32xf32>
    %85 = arith.maximumf %83, %84 : vector<16x32xf32>
    %86 = arith.maximumf %72, %85 : vector<16x32xf32>
    %c6 = arith.constant 6 : index
    %c0_43 = arith.constant 0 : index
    %c0_44 = arith.constant 0 : index
    %87 = vector.load %arg2[%c6, %c0_43, %c0_44] : memref<8x16x8xbf16, #tpu.memory_space<vmem>>, vector<1x16x8xbf16>
    %88 = vector.shape_cast %87 : vector<1x16x8xbf16> to vector<16x8xbf16>
    %cst_45 = arith.constant dense<0.000000e+00> : vector<16x16xf32>
    %89 = tpu.matmul %88, %0, %cst_45 {dimension_numbers = #tpu.dot_dimension_numbers<[1], [0], [0], [1], [0, 0, 1, 1], [], []>} : vector<16x8xbf16>, vector<8x16xbf16>, vector<16x16xf32> -> vector<16x16xf32>
    %90 = vector.broadcast %2 : vector<1x16xf32> to vector<16x16xf32>
    %91 = arith.addf %89, %90 : vector<16x16xf32>
    %cst_46 = arith.constant 0.000000e+00 : f32
    %92 = vector.broadcast %cst_46 : f32 to vector<16x16xf32>
    %93 = arith.maximumf %91, %92 : vector<16x16xf32>
    %94 = arith.truncf %93 : vector<16x16xf32> to vector<16x16xbf16>
    %cst_47 = arith.constant dense<0.000000e+00> : vector<16x32xf32>
    %95 = tpu.matmul %94, %1, %cst_47 {dimension_numbers = #tpu.dot_dimension_numbers<[1], [0], [0], [1], [0, 0, 1, 1], [], []>} : vector<16x16xbf16>, vector<16x32xbf16>, vector<16x32xf32> -> vector<16x32xf32>
    %96 = vector.broadcast %3 : vector<1x32xf32> to vector<16x32xf32>
    %97 = arith.addf %95, %96 : vector<16x32xf32>
    %cst_48 = arith.constant 0.000000e+00 : f32
    %98 = vector.broadcast %cst_48 : f32 to vector<16x32xf32>
    %99 = arith.maximumf %97, %98 : vector<16x32xf32>
    %100 = arith.maximumf %86, %99 : vector<16x32xf32>
    %c7 = arith.constant 7 : index
    %c0_49 = arith.constant 0 : index
    %c0_50 = arith.constant 0 : index
    %101 = vector.load %arg2[%c7, %c0_49, %c0_50] : memref<8x16x8xbf16, #tpu.memory_space<vmem>>, vector<1x16x8xbf16>
    %102 = vector.shape_cast %101 : vector<1x16x8xbf16> to vector<16x8xbf16>
    %cst_51 = arith.constant dense<0.000000e+00> : vector<16x16xf32>
    %103 = tpu.matmul %102, %0, %cst_51 {dimension_numbers = #tpu.dot_dimension_numbers<[1], [0], [0], [1], [0, 0, 1, 1], [], []>} : vector<16x8xbf16>, vector<8x16xbf16>, vector<16x16xf32> -> vector<16x16xf32>
    %104 = vector.broadcast %2 : vector<1x16xf32> to vector<16x16xf32>
    %105 = arith.addf %103, %104 : vector<16x16xf32>
    %cst_52 = arith.constant 0.000000e+00 : f32
    %106 = vector.broadcast %cst_52 : f32 to vector<16x16xf32>
    %107 = arith.maximumf %105, %106 : vector<16x16xf32>
    %108 = arith.truncf %107 : vector<16x16xf32> to vector<16x16xbf16>
    %cst_53 = arith.constant dense<0.000000e+00> : vector<16x32xf32>
    %109 = tpu.matmul %108, %1, %cst_53 {dimension_numbers = #tpu.dot_dimension_numbers<[1], [0], [0], [1], [0, 0, 1, 1], [], []>} : vector<16x16xbf16>, vector<16x32xbf16>, vector<16x32xf32> -> vector<16x32xf32>
    %110 = vector.broadcast %3 : vector<1x32xf32> to vector<16x32xf32>
    %111 = arith.addf %109, %110 : vector<16x32xf32>
    %cst_54 = arith.constant 0.000000e+00 : f32
    %112 = vector.broadcast %cst_54 : f32 to vector<16x32xf32>
    %113 = arith.maximumf %111, %112 : vector<16x32xf32>
    %114 = arith.maximumf %100, %113 : vector<16x32xf32>
    %c0_i32 = arith.constant 0 : i32
    %115 = arith.cmpi eq, %arg1, %c0_i32 : i32
    %116 = arith.extui %115 : i1 to i32
    %c0_i32_55 = arith.constant 0 : i32
    %117 = arith.cmpi ne, %116, %c0_i32_55 : i32
    scf.if %117 {
      %c0_58 = arith.constant 0 : index
      %c0_59 = arith.constant 0 : index
      %121 = vector.load %arg7[%c0_58, %c0_59] : memref<16x32xf32, #tpu.memory_space<vmem>>, vector<16x32xf32>
      tpu.vector_store %arg7[%c0_58, %c0_59], %114 {strides = array<i32>} : memref<16x32xf32, #tpu.memory_space<vmem>>, vector<16x32xf32>,
    } else {
    }
    %c0_i32_56 = arith.constant 0 : i32
    %118 = arith.cmpi sgt, %arg1, %c0_i32_56 : i32
    %119 = arith.extui %118 : i1 to i32
    %c0_i32_57 = arith.constant 0 : i32
    %120 = arith.cmpi ne, %119, %c0_i32_57 : i32
    scf.if %120 {
      %c0_58 = arith.constant 0 : index
      %c0_59 = arith.constant 0 : index
      %121 = vector.load %arg7[%c0_58, %c0_59] : memref<16x32xf32, #tpu.memory_space<vmem>>, vector<16x32xf32>
      %122 = arith.maximumf %121, %114 : vector<16x32xf32>
      %c0_60 = arith.constant 0 : index
      %c0_61 = arith.constant 0 : index
      %123 = vector.load %arg7[%c0_60, %c0_61] : memref<16x32xf32, #tpu.memory_space<vmem>>, vector<16x32xf32>
      tpu.vector_store %arg7[%c0_60, %c0_61], %122 {strides = array<i32>} : memref<16x32xf32, #tpu.memory_space<vmem>>, vector<16x32xf32>,
    } else {
    }
    return
  }
  func.func @transform_0(%arg0: i32, %arg1: i32) -> (i32, i32, i32) {
    %c0_i32 = arith.constant 0 : i32
    %c0_i32_0 = arith.constant 0 : i32
    return %arg1, %arg0, %c0_i32 : i32, i32, i32
  }
  func.func @transform_1(%arg0: i32, %arg1: i32) -> (i32, i32) {
    %c0_i32 = arith.constant 0 : i32
    %c0_i32_0 = arith.constant 0 : i32
    %c0_i32_1 = arith.constant 0 : i32
    return %c0_i32, %c0_i32_0 : i32, i32
  }
  func.func @transform_2(%arg0: i32, %arg1: i32) -> (i32, i32) {
    %c0_i32 = arith.constant 0 : i32
    %c0_i32_0 = arith.constant 0 : i32
    %c0_i32_1 = arith.constant 0 : i32
    return %c0_i32, %c0_i32_0 : i32, i32
  }
  func.func @transform_3(%arg0: i32, %arg1: i32) -> (i32, i32) {
    %c0_i32 = arith.constant 0 : i32
    %c0_i32_0 = arith.constant 0 : i32
    %c0_i32_1 = arith.constant 0 : i32
    return %c0_i32, %c0_i32_0 : i32, i32
  }
  func.func @transform_4(%arg0: i32, %arg1: i32) -> (i32, i32) {
    %c0_i32 = arith.constant 0 : i32
    %c0_i32_0 = arith.constant 0 : i32
    %c0_i32_1 = arith.constant 0 : i32
    return %c0_i32, %c0_i32_0 : i32, i32
  }
  func.func @transform_5(%arg0: i32, %arg1: i32) -> (i32, i32) {
    %c0_i32 = arith.constant 0 : i32
    %c0_i32_0 = arith.constant 0 : i32
    return %arg0, %c0_i32 : i32, i32
  }
}

</mosaic_0001>

<llo_original>
// kernel: custom-call.14
$region0: #{custom-call.14}
  %s0 = inlined_call_operand.vmem [shape: f32[2,64], index: 0, kind: output, shape index: {}]

// kernel: fwd.2
$region0: #{fwd.2}
  #allocation0 [shape = 'u32[]', space=smem, size = 0x4, offset = 0x4, fixed_abs, tag = 'smem constant byte address 0x4 - core index']
  #allocation1 [shape = 'u32[144,128]{1,0:T(1,128)}', space=vmem, size = 0x12000, scoped, tag = 'internal scratch']
  %s0 = inlined_call_operand.vmem [shape: bf16[8,32,8], index: 0, kind: input, shape index: {}]
  %s1 = inlined_call_operand.vmem [shape: bf16[8,16], index: 1, kind: input, shape index: {}]
  %s2 = inlined_call_operand.vmem [shape: f32[1,16], index: 2, kind: input, shape index: {}]
  %s3 = inlined_call_operand.vmem [shape: bf16[16,32], index: 3, kind: input, shape index: {}]
  %s4 = inlined_call_operand.vmem [shape: f32[1,32], index: 4, kind: input, shape index: {}]
  %s5 = inlined_call_operand.vmem [shape: f32[32,32], index: 5, kind: output, shape index: {}]
  %s6 = sld [smem:[#allocation0]]
  $region102: #{fwd.2} parent=0
    _
  %s8 = ssub.s32 1, %s6
  %s9 = scalar_select 0, %s8, %s6
  $region1: #{fwd.2} parent=0
    #allocation2 [shape = 'u8[65536]{0}', space=vmem, size = 0x10000, scoped, tag = 'input window, operand 0']
    loop: start=0, step=1, limit=4
    $region2: #{fwd.2} parent=1 // loop_pre_header
      _
    $region3: #{fwd.2} parent=1 // loop_header
      %s11 = sphi 0, %s15
      %p12 = scmp.ge.s32.totalorder %s11, 4
      %s18 = sphi 0, %s30
      %s19 = sphi 0, %s26
      %s20 = sphi 0, %s18
      %s21 = sphi 0, %s19
      %s22 = sphi 0, %s20
      %s23 = sphi 0, %s21
      %s35 = sphi 0, %s37
      %s38 = sphi 0, %s35
      %s39 = sphi 0, %s38
      %s55 = sphi 0, %s39
      %s59 = sphi 0, %s59
      %s61 = sphi 0, %s59
      %s62 = sphi 0, %s61
      %s76 = sphi 0, %s62
      %s80 = sphi 0, %s80
      %s82 = sphi 0, %s80
      %s83 = sphi 0, %s82
      %s97 = sphi 0, %s83
      %s101 = sphi 0, %s101
      %s103 = sphi 0, %s101
      %s104 = sphi 0, %s103
      %s118 = sphi 0, %s104
      %s122 = sphi 0, %s122
      %s124 = sphi 0, %s122
      %s125 = sphi 0, %s124
      %s139 = sphi 0, %s125
      %s145 = sphi 0, %s147
      %s148 = sphi 0, %s145
      %s149 = sphi 0, %s148
      %s165 = sphi 0, %s149
    $region4: #{fwd.2} parent=1 // loop_header_branch
      %14 = sbr.rel (%p12) target = $region8
    $region5: #{fwd.2} parent=1 // loop_body
      %s16 = ssub.s32 %s11, 1
      %s17 = ssub.s32 %s11, 2
      %s24 = sadd.s32 1, %s19
      %p25 = scmp.ge.s32.totalorder %s24, 1
      %s26 = scalar_select %p25, 0, %s24
      %s27 = sadd.s32 1, %s18
      %s28 = scalar_select %p25, %s27, %s18
      %p29 = scmp.ge.s32.totalorder %s28, 2
      %s30 = scalar_select %p29, 0, %s28
      %s31 = ssub.s32 %s19, %s26
      %s32 = ssub.s32 %s18, %s30
      %s33 = sor.u32 %s31, %s32
      %p34 = scmp.eq.s32.totalorder %s33, 0
      %s36 = sadd.s32 %s35, 1
      %s37 = scalar_select %p34, %s35, %s36
      %p40 = pneg %p34
      %p41 = scmp.eq.s32.totalorder %s11, 1
      %p42 = por %p40, %p41
      %p43 = scmp.ne.s32.totalorder %s35, %s38
      %p44 = scmp.eq.s32.totalorder %s11, 0
      %p45 = por %p43, %p44
      %p46 = scmp.ne.s32.totalorder %s35, %s38
      %p47 = scmp.eq.s32.totalorder %s16, 1
      %p48 = por %p46, %p47
      %p49 = scmp.ne.s32.totalorder %s38, %s39
      %p50 = scmp.eq.s32.totalorder %s16, 0
      %p51 = por %p49, %p50
      %p52 = scmp.ne.s32.totalorder %s38, %s39
      %p53 = scmp.eq.s32.totalorder %s17, 1
      %p54 = por %p52, %p53
      %p56 = scmp.ne.s32.totalorder %s39, %s55
      %p57 = scmp.eq.s32.totalorder %s17, 0
      %p58 = por %p56, %p57
      %s60 = sadd.s32 %s59, 1
      %p63 = scmp.eq.s32.totalorder %s11, 1
      %p64 = scmp.ne.s32.totalorder %s59, %s61
      %p65 = scmp.eq.s32.totalorder %s11, 0
      %p66 = por %p64, %p65
      %p67 = scmp.ne.s32.totalorder %s59, %s61
      %p68 = scmp.eq.s32.totalorder %s16, 1
      %p69 = por %p67, %p68
      %p70 = scmp.ne.s32.totalorder %s61, %s62
      %p71 = scmp.eq.s32.totalorder %s16, 0
      %p72 = por %p70, %p71
      %p73 = scmp.ne.s32.totalorder %s61, %s62
      %p74 = scmp.eq.s32.totalorder %s17, 1
      %p75 = por %p73, %p74
      %p77 = scmp.ne.s32.totalorder %s62, %s76
      %p78 = scmp.eq.s32.totalorder %s17, 0
      %p79 = por %p77, %p78
      %s81 = sadd.s32 %s80, 1
      %p84 = scmp.eq.s32.totalorder %s11, 1
      %p85 = scmp.ne.s32.totalorder %s80, %s82
      %p86 = scmp.eq.s32.totalorder %s11, 0
      %p87 = por %p85, %p86
      %p88 = scmp.ne.s32.totalorder %s80, %s82
      %p89 = scmp.eq.s32.totalorder %s16, 1
      %p90 = por %p88, %p89
      %p91 = scmp.ne.s32.totalorder %s82, %s83
      %p92 = scmp.eq.s32.totalorder %s16, 0
      %p93 = por %p91, %p92
      %p94 = scmp.ne.s32.totalorder %s82, %s83
      %p95 = scmp.eq.s32.totalorder %s17, 1
      %p96 = por %p94, %p95
      %p98 = scmp.ne.s32.totalorder %s83, %s97
      %p99 = scmp.eq.s32.totalorder %s17, 0
      %p100 = por %p98, %p99
      %s102 = sadd.s32 %s101, 1
      %p105 = scmp.eq.s32.totalorder %s11, 1
      %p106 = scmp.ne.s32.totalorder %s101, %s103
      %p107 = scmp.eq.s32.totalorder %s11, 0
      %p108 = por %p106, %p107
      %p109 = scmp.ne.s32.totalorder %s101, %s103
      %p110 = scmp.eq.s32.totalorder %s16, 1
      %p111 = por %p109, %p110
      %p112 = scmp.ne.s32.totalorder %s103, %s104
      %p113 = scmp.eq.s32.totalorder %s16, 0
      %p114 = por %p112, %p113
      %p115 = scmp.ne.s32.totalorder %s103, %s104
      %p116 = scmp.eq.s32.totalorder %s17, 1
      %p117 = por %p115, %p116
      %p119 = scmp.ne.s32.totalorder %s104, %s118
      %p120 = scmp.eq.s32.totalorder %s17, 0
      %p121 = por %p119, %p120
      %s123 = sadd.s32 %s122, 1
      %p126 = scmp.eq.s32.totalorder %s11, 1
      %p127 = scmp.ne.s32.totalorder %s122, %s124
      %p128 = scmp.eq.s32.totalorder %s11, 0
      %p129 = por %p127, %p128
      %p130 = scmp.ne.s32.totalorder %s122, %s124
      %p131 = scmp.eq.s32.totalorder %s16, 1
      %p132 = por %p130, %p131
      %p133 = scmp.ne.s32.totalorder %s124, %s125
      %p134 = scmp.eq.s32.totalorder %s16, 0
      %p135 = por %p133, %p134
      %p136 = scmp.ne.s32.totalorder %s124, %s125
      %p137 = scmp.eq.s32.totalorder %s17, 1
      %p138 = por %p136, %p137
      %p140 = scmp.ne.s32.totalorder %s125, %s139
      %p141 = scmp.eq.s32.totalorder %s17, 0
      %p142 = por %p140, %p141
      %s143 = ssub.s32 %s18, %s30
      %p144 = scmp.eq.s32.totalorder %s143, 0
      %s146 = sadd.s32 %s145, 1
      %s147 = scalar_select %p144, %s145, %s146
      %p150 = pneg %p144
      %p151 = scmp.eq.s32.totalorder %s11, 1
      %p152 = por %p150, %p151
      %p153 = scmp.ne.s32.totalorder %s145, %s148
      %p154 = scmp.eq.s32.totalorder %s11, 0
      %p155 = por %p153, %p154
      %p156 = scmp.ne.s32.totalorder %s145, %s148
      %p157 = scmp.eq.s32.totalorder %s16, 1
      %p158 = por %p156, %p157
      %p159 = scmp.ne.s32.totalorder %s148, %s149
      %p160 = scmp.eq.s32.totalorder %s16, 0
      %p161 = por %p159, %p160
      %p162 = scmp.ne.s32.totalorder %s148, %s149
      %p163 = scmp.eq.s32.totalorder %s17, 1
      %p164 = por %p162, %p163
      %p166 = scmp.ne.s32.totalorder %s149, %s165
      %p167 = scmp.eq.s32.totalorder %s17, 0
      %p168 = por %p166, %p167
      %p169 = scmp.le.s32.totalorder 1, %s11
      %p170 = scmp.lt.s32.totalorder %s11, 3
      %p171 = pnand %p169, %p170
      %p172 = pneg %p171
      // Predicated region
      $region9: #{fwd.2} parent=5 // pred_check
        _
      $region10: #{fwd.2} parent=5 // pred_check_branch
        %174 = sbr.rel (%p171) target = $region12
      $region11: #{fwd.2} parent=5 // pred_region
        %s175 = ssub.s32 %s11, 1
        // Predicated region
        $region13: #{fwd.2} parent=11 // pred_check
          %p176 = pneg %p72
        $region14: #{fwd.2} parent=11 // pred_check_branch
          %178 = sbr.rel (%p176) target = $region16
        $region15: #{fwd.2} parent=11 // pred_region
          _
        $region16: #{fwd.2} parent=11 // pred_fallthru
          _
        // Predicated region
        $region17: #{fwd.2} parent=11 // pred_check
          %p179 = pneg %p93
        $region18: #{fwd.2} parent=11 // pred_check_branch
          %181 = sbr.rel (%p179) target = $region20
        $region19: #{fwd.2} parent=11 // pred_region
          _
        $region20: #{fwd.2} parent=11 // pred_fallthru
          _
        // Predicated region
        $region21: #{fwd.2} parent=11 // pred_check
          %p182 = pneg %p114
        $region22: #{fwd.2} parent=11 // pred_check_branch
          %184 = sbr.rel (%p182) target = $region24
        $region23: #{fwd.2} parent=11 // pred_region
          _
        $region24: #{fwd.2} parent=11 // pred_fallthru
          _
        // Predicated region
        $region25: #{fwd.2} parent=11 // pred_check
          %p185 = pneg %p135
        $region26: #{fwd.2} parent=11 // pred_check_branch
          %187 = sbr.rel (%p185) target = $region28
        $region27: #{fwd.2} parent=11 // pred_region
          _
        $region28: #{fwd.2} parent=11 // pred_fallthru
          _
      $region12: #{fwd.2} parent=5 // pred_fallthru
        _
      %p188 = scmp.lt.s32.totalorder %s11, 2
      // Predicated region
      $region29: #{fwd.2} parent=5 // pred_check
        %p189 = pneg %p188
      $region30: #{fwd.2} parent=5 // pred_check_branch
        %191 = sbr.rel (%p189) target = $region32
      $region31: #{fwd.2} parent=5 // pred_region
        // Predicated region
        $region33: #{fwd.2} parent=31 // pred_check
          %p192 = pneg %p45
        $region34: #{fwd.2} parent=31 // pred_check_branch
          %194 = sbr.rel (%p192) target = $region36
        $region35: #{fwd.2} parent=31 // pred_region
          %s195 = sand.u32 %s35, 1
          %s196 = sand.u32 %s35, 1
          %s197 = smul.addr %s196, 64
          %s198 = scalar_lea.vmem [#allocation2], %s197
          %s199 = smul.u32 8, %s19
          %s200 = smul.u32 2, %s18
          %s201 = smul.addr %s199, 4
          %s202 = sadd.s32 %s200, %s201
          %s203 = smul.addr %s202, 4
          %s204 = scalar_lea.vmem %s0, %s203
          // Predicated region
          $region37: #{fwd.2} parent=35 // pred_check
            _
          $region38: #{fwd.2} parent=35 // pred_check_branch
            %206 = sbr.rel (0) target = $region40
          $region39: #{fwd.2} parent=35 // pred_region
            // Predicated region
            $region41: #{fwd.2} parent=39 // pred_check
              _
            $region42: #{fwd.2} parent=39 // pred_check_branch
              %208 = sbr.rel target = $region44
            $region43: #{fwd.2} parent=39 // pred_region
              // Predicated region
              $region56: #{fwd.2} parent=43 // pred_check
                _
              $region57: #{fwd.2} parent=43 // pred_check_branch
                %254 = sbr.rel (0) target = $region59
              $region58: #{fwd.2} parent=43 // pred_region
                loop: start=0, step=1, limit=1
                $region60: #{fwd.2} parent=58 // loop_pre_header
                  _
                $region61: #{fwd.2} parent=58 // loop_header
                  %s256 = sphi 0, %s260
                  %p257 = scmp.ge.s32.totalorder %s256, 1
                  %s261 = sphi %s204, %s204
                  %s262 = sphi %s198, %s198
                $region62: #{fwd.2} parent=58 // loop_header_branch
                  %259 = sbr.rel (%p257) target = $region66
                $region63: #{fwd.2} parent=58 // loop_body
                  _
                $region64: #{fwd.2} parent=58 // loop_footer
                  %s260 = sadd.s32 1, %s256
                $region65: #{fwd.2} parent=58 // loop_footer_branch
                  %255 = sbr.rel target = $region61
                $region66: #{fwd.2} parent=58 // loop_exit
                  _
                %s264 = ssub.s32 16, 1
                loop: start=0, step=1, limit=1
                $region67: #{fwd.2} parent=58 // loop_pre_header
                  _
                $region68: #{fwd.2} parent=58 // loop_header
                  %s266 = sphi 0, %s270
                  %p267 = scmp.ge.s32.totalorder %s266, 1
                  %s271 = sphi %s204, %s204
                  %s272 = sphi %s198, %s198
                $region69: #{fwd.2} parent=58 // loop_header_branch
                  %269 = sbr.rel (%p267) target = $region73
                $region70: #{fwd.2} parent=58 // loop_body
                  %v273 = vld [vmem:[%s271] sm:%s264]
                  %274 = vst [vmem:[%s272] sm:%s264] %v273
                  %v275 = vld [vmem:[%s271 + $0x4] sm:%s264]
                  %276 = vst [vmem:[%s272 + $0x4] sm:%s264] %v275
                  %v277 = vld [vmem:[%s271 + $0x10] sm:%s264]
                  %278 = vst [vmem:[%s272 + $0x8] sm:%s264] %v277
                  %v279 = vld [vmem:[%s271 + $0x14] sm:%s264]
                  %280 = vst [vmem:[%s272 + $0xc] sm:%s264] %v279
                  %v281 = vld [vmem:[%s271 + $0x20] sm:%s264]
                  %282 = vst [vmem:[%s272 + $0x10] sm:%s264] %v281
                  %v283 = vld [vmem:[%s271 + $0x24] sm:%s264]
                  %284 = vst [vmem:[%s272 + $0x14] sm:%s264] %v283
                  %v285 = vld [vmem:[%s271 + $0x30] sm:%s264]
                  %286 = vst [vmem:[%s272 + $0x18] sm:%s264] %v285
                  %v287 = vld [vmem:[%s271 + $0x34] sm:%s264]
                  %288 = vst [vmem:[%s272 + $0x1c] sm:%s264] %v287
                  %v289 = vld [vmem:[%s271 + $0x40] sm:%s264]
                  %290 = vst [vmem:[%s272 + $0x20] sm:%s264] %v289
                  %v291 = vld [vmem:[%s271 + $0x44] sm:%s264]
                  %292 = vst [vmem:[%s272 + $0x24] sm:%s264] %v291
                  %v293 = vld [vmem:[%s271 + $0x50] sm:%s264]
                  %294 = vst [vmem:[%s272 + $0x28] sm:%s264] %v293
                  %v295 = vld [vmem:[%s271 + $0x54] sm:%s264]
                  %296 = vst [vmem:[%s272 + $0x2c] sm:%s264] %v295
                  %v297 = vld [vmem:[%s271 + $0x60] sm:%s264]
                  %298 = vst [vmem:[%s272 + $0x30] sm:%s264] %v297
                  %v299 = vld [vmem:[%s271 + $0x64] sm:%s264]
                  %300 = vst [vmem:[%s272 + $0x34] sm:%s264] %v299
                  %v301 = vld [vmem:[%s271 + $0x70] sm:%s264]
                  %302 = vst [vmem:[%s272 + $0x38] sm:%s264] %v301
                  %v303 = vld [vmem:[%s271 + $0x74] sm:%s264]
                  %304 = vst [vmem:[%s272 + $0x3c] sm:%s264] %v303
                $region71: #{fwd.2} parent=58 // loop_footer
                  %s270 = sadd.s32 1, %s266
                $region72: #{fwd.2} parent=58 // loop_footer_branch
                  %265 = sbr.rel target = $region68
                $region73: #{fwd.2} parent=58 // loop_exit
                  _
              $region59: #{fwd.2} parent=43 // pred_fallthru
                _
            $region44: #{fwd.2} parent=39 // pred_fallthru
              _
            // Predicated region
            $region45: #{fwd.2} parent=39 // pred_check
              _
            $region46: #{fwd.2} parent=39 // pred_check_branch
              %210 = sbr.rel (0) target = $region48
            $region47: #{fwd.2} parent=39 // pred_region
              %s212 = ssub.s32 16, 1
              loop: start=0, step=1, limit=1
              $region49: #{fwd.2} parent=47 // loop_pre_header
                _
              $region50: #{fwd.2} parent=47 // loop_header
                %s214 = sphi 0, %s218
                %p215 = scmp.ge.s32.totalorder %s214, 1
                %s219 = sphi %s204, %s204
                %s220 = sphi %s198, %s198
              $region51: #{fwd.2} parent=47 // loop_header_branch
                %217 = sbr.rel (%p215) target = $region55
              $region52: #{fwd.2} parent=47 // loop_body
                %v221 = vld [vmem:[%s219] sm:%s212]
                %222 = vst [vmem:[%s220] sm:%s212] %v221
                %v223 = vld [vmem:[%s219 + $0x4] sm:%s212]
                %224 = vst [vmem:[%s220 + $0x4] sm:%s212] %v223
                %v225 = vld [vmem:[%s219 + $0x10] sm:%s212]
                %226 = vst [vmem:[%s220 + $0x8] sm:%s212] %v225
                %v227 = vld [vmem:[%s219 + $0x14] sm:%s212]
                %228 = vst [vmem:[%s220 + $0xc] sm:%s212] %v227
                %v229 = vld [vmem:[%s219 + $0x20] sm:%s212]
                %230 = vst [vmem:[%s220 + $0x10] sm:%s212] %v229
                %v231 = vld [vmem:[%s219 + $0x24] sm:%s212]
                %232 = vst [vmem:[%s220 + $0x14] sm:%s212] %v231
                %v233 = vld [vmem:[%s219 + $0x30] sm:%s212]
                %234 = vst [vmem:[%s220 + $0x18] sm:%s212] %v233
                %v235 = vld [vmem:[%s219 + $0x34] sm:%s212]
                %236 = vst [vmem:[%s220 + $0x1c] sm:%s212] %v235
                %v237 = vld [vmem:[%s219 + $0x40] sm:%s212]
                %238 = vst [vmem:[%s220 + $0x20] sm:%s212] %v237
                %v239 = vld [vmem:[%s219 + $0x44] sm:%s212]
                %240 = vst [vmem:[%s220 + $0x24] sm:%s212] %v239
                %v241 = vld [vmem:[%s219 + $0x50] sm:%s212]
                %242 = vst [vmem:[%s220 + $0x28] sm:%s212] %v241
                %v243 = vld [vmem:[%s219 + $0x54] sm:%s212]
                %244 = vst [vmem:[%s220 + $0x2c] sm:%s212] %v243
                %v245 = vld [vmem:[%s219 + $0x60] sm:%s212]
                %246 = vst [vmem:[%s220 + $0x30] sm:%s212] %v245
                %v247 = vld [vmem:[%s219 + $0x64] sm:%s212]
                %248 = vst [vmem:[%s220 + $0x34] sm:%s212] %v247
                %v249 = vld [vmem:[%s219 + $0x70] sm:%s212]
                %250 = vst [vmem:[%s220 + $0x38] sm:%s212] %v249
                %v251 = vld [vmem:[%s219 + $0x74] sm:%s212]
                %252 = vst [vmem:[%s220 + $0x3c] sm:%s212] %v251
              $region53: #{fwd.2} parent=47 // loop_footer
                %s218 = sadd.s32 1, %s214
              $region54: #{fwd.2} parent=47 // loop_footer_branch
                %213 = sbr.rel target = $region50
              $region55: #{fwd.2} parent=47 // loop_exit
                _
            $region48: #{fwd.2} parent=39 // pred_fallthru
              _
          $region40: #{fwd.2} parent=35 // pred_fallthru
            _
          %305 = vnop
        $region36: #{fwd.2} parent=31 // pred_fallthru
          _
      $region32: #{fwd.2} parent=5 // pred_fallthru
        _
      %p306 = scmp.le.s32.totalorder 1, %s11
      %p307 = scmp.lt.s32.totalorder %s11, 3
      %p308 = pnand %p306, %p307
      %p309 = pneg %p308
      // Predicated region
      $region74: #{fwd.2} parent=5 // pred_check
        _
      $region75: #{fwd.2} parent=5 // pred_check_branch
        %311 = sbr.rel (%p308) target = $region77
      $region76: #{fwd.2} parent=5 // pred_region
        %s312 = ssub.s32 %s11, 1
        %s313 = sand.u32 %s38, 1
        %s314 = sand.u32 %s38, 1
        %s315 = smul.addr %s314, 64
        %s316 = scalar_lea.vmem [#allocation2], %s315
        // Predicated region
        $region78: #{fwd.2} parent=76 // pred_check
          %p317 = pneg %p51
        $region79: #{fwd.2} parent=76 // pred_check_branch
          %319 = sbr.rel (%p317) target = $region81
        $region80: #{fwd.2} parent=76 // pred_region
          _
        $region81: #{fwd.2} parent=76 // pred_fallthru
          _
        %s320 = sand.u32 %s38, 1
        %s321 = sand.u32 %s38, 1
        %s322 = smul.addr %s321, 64
        %s323 = scalar_lea.vmem [#allocation2], %s322
        %p324 = pneg %p51
        %p325 = pneg %p48
        %p326 = pneg %p72
        %p327 = pneg %p69
        %p328 = pneg %p93
        %p329 = pneg %p90
        %p330 = pneg %p114
        %p331 = pneg %p111
        %p332 = pneg %p135
        %p333 = pneg %p132
        %p334 = pneg %p161
        %p335 = pneg %p158
        %s336 = smul.u32 2, %s20
        %p337 = scmp.lt.s32.totalorder %s336, 3
        %s338 = scalar_select %p337, %s336, 3
        %s339 = smul.addr %s338, 8
        %s340 = scalar_lea.vmem %s5, %s339
        %s341 = smul.u32 8, %s21
        %s342 = smul.u32 2, %s20
        %s343 = smul.u32 2, %s20
        %p344 = scmp.lt.s32.totalorder %s343, 3
        %s345 = scalar_select %p344, %s343, 3
        %s346 = smul.addr %s345, 8
        %s347 = scalar_lea.vmem %s5, %s346
        %s348 = smul.u32 2, %s20
        %v350 = vld [vmem:[%s1] sm:$0xf]
        %v351 = vld [vmem:[%s3] sm:$0xf]
        %v352 = vld [vmem:[%s3 + $0x4] sm:$0xf]
        %v353 = vld [vmem:[%s2] sm:$0x1]
        %v354 = vld [vmem:[%s4] sm:$0x1]
        %v355 = vld [vmem:[%s316] sm:$0xf]
        %v356 = vld [vmem:[%s316 + $0x4] sm:$0xf]
        %v358 = vlaneseq
        %v359 = vshrl.u32 %v358, 7
        %v360 = vsub.s32 0, %v359
        %v361 = vrot.slane %v353, %v360
        %v365 = vunpack.c.l.b16 %v355
        %v366 = vunpack.c.l.b16 %v356
        %v367 = vpack.c.b16 %v366, %v365
        %vm368 = vcmask 64512
        %v370 = vsel %vm368, %v367, 0
        %vm372 = vcmask 1043456
        %v374 = vsel %vm372, %v350, 0
        %376 = vmatprep.subr.bf16.mxu0 0
        %377 = vmatpush1.bf16.msra.mxu0 0
        %378 = vmatprep.subr.bf16.mxu0 0
        %379 = vmatpush1.bf16.msra.mxu0 0
        %380 = vmatprep.subr.bf16.mxu0 0
        %381 = vmatpush1.bf16.msra.mxu0 0
        %382 = vmatprep.subr.bf16.mxu0 0
        %383 = vmatpush1.bf16.msra.mxu0 0
        %384 = vmatprep.subr.bf16.mxu0 0
        %385 = vmatpush1.bf16.msra.mxu0 0
        %386 = vmatprep.subr.bf16.mxu0 0
        %387 = vmatpush1.bf16.msra.mxu0 0
        %388 = vmatprep.subr.bf16.mxu0 0
        %389 = vmatpush1.bf16.msra.mxu0 0
        %390 = vmatprep.subr.bf16.mxu0 0
        %391 = vmatpush1.bf16.msra.mxu0 %v374
        %392 = vmatprep.subr.bf16.mxu0 0
        %393 = vmatpush2.bf16.msra.mxu0 0
        %394 = vmatprep.subr.bf16.mxu0 0
        %395 = vmatpush2.bf16.msra.mxu0 0
        %396 = vmatprep.subr.bf16.mxu0 0
        %397 = vmatpush2.bf16.msra.mxu0 0
        %398 = vmatprep.subr.bf16.mxu0 0
        %399 = vmatpush2.bf16.msra.mxu0 0
        %400 = vmatprep.subr.bf16.mxu0 0
        %401 = vmatpush2.bf16.msra.mxu0 0
        %402 = vmatprep.subr.bf16.mxu0 0
        %403 = vmatpush2.bf16.msra.mxu0 0
        %404 = vmatprep.subr.bf16.mxu0 0
        %405 = vmatpush2.bf16.msra.mxu0 0
        %406 = vmatprep.subr.bf16.mxu0 0
        %407 = vmatpush2.bf16.msra.mxu0 0
        %408 = vmatprep.mubr.bf16.mxu0 0
        %409 = vmatmul.mubr.bf16.gmra.mxu0 %v370
        %v410 = vpop.f32.mrf.mxu0
        %v411 = vadd.f32 %v361, %v410
        %v412 = vpop.f32.mrf.mxu0
        %v413 = vpop.f32.mrf.mxu0
        %v414 = vadd.f32 %v361, %v413
        %v415 = vpop.f32.mrf.mxu0
        %416 = vdwg.mxu0
        %v417 = vmax.f32 %v411, 0.0
        %v418 = vmax.f32 %v414, 0.0
        %v419 = vpack.c.bf16 %v418, %v417
        %v421 = vlaneseq
        %v422 = vshrl.u32 %v421, 7
        %v423 = vsub.s32 0, %v422
        %v424 = vrot.slane %v354, %v423
        %v428 = vunpack.c.l.b16 %v351
        %v429 = vunpack.c.l.b16 %v352
        %v430 = vpack.c.b16 %v429, %v428
        %vm432 = vcmask 130048
        %v434 = vsel %vm432, %v419, 0
        %436 = vmatprep.subr.bf16.mxu0 0
        %437 = vmatpush1.bf16.msra.mxu0 0
        %438 = vmatprep.subr.bf16.mxu0 0
        %439 = vmatpush1.bf16.msra.mxu0 0
        %440 = vmatprep.subr.bf16.mxu0 0
        %441 = vmatpush1.bf16.msra.mxu0 0
        %442 = vmatprep.subr.bf16.mxu0 0
        %443 = vmatpush1.bf16.msra.mxu0 0
        %444 = vmatprep.subr.bf16.mxu0 0
        %445 = vmatpush1.bf16.msra.mxu0 0
        %446 = vmatprep.subr.bf16.mxu0 0
        %447 = vmatpush1.bf16.msra.mxu0 0
        %448 = vmatprep.subr.bf16.mxu0 0
        %449 = vmatpush1.bf16.msra.mxu0 0
        %450 = vmatprep.subr.bf16.mxu0 0
        %451 = vmatpush1.bf16.msra.mxu0 %v430
        %452 = vmatprep.subr.bf16.mxu0 0
        %453 = vmatpush2.bf16.msra.mxu0 0
        %454 = vmatprep.subr.bf16.mxu0 0
        %455 = vmatpush2.bf16.msra.mxu0 0
        %456 = vmatprep.subr.bf16.mxu0 0
        %457 = vmatpush2.bf16.msra.mxu0 0
        %458 = vmatprep.subr.bf16.mxu0 0
        %459 = vmatpush2.bf16.msra.mxu0 0
        %460 = vmatprep.subr.bf16.mxu0 0
        %461 = vmatpush2.bf16.msra.mxu0 0
        %462 = vmatprep.subr.bf16.mxu0 0
        %463 = vmatpush2.bf16.msra.mxu0 0
        %464 = vmatprep.subr.bf16.mxu0 0
        %465 = vmatpush2.bf16.msra.mxu0 0
        %466 = vmatprep.subr.bf16.mxu0 0
        %467 = vmatpush2.bf16.msra.mxu0 0
        %468 = vmatprep.mubr.bf16.mxu0 0
        %469 = vmatmul.mubr.bf16.gmra.mxu0 %v434
        %v470 = vpop.f32.mrf.mxu0
        %v471 = vadd.f32 %v424, %v470
        %v472 = vpop.f32.mrf.mxu0
        %v473 = vpop.f32.mrf.mxu0
        %v474 = vadd.f32 %v424, %v473
        %v475 = vpop.f32.mrf.mxu0
        %476 = vdwg.mxu0
        %v477 = vmax.f32 %v471, 0.0
        %v478 = vmax.f32 %v474, 0.0
        %s479 = scalar_lea.vmem %s316, 8 [#allocation2]
        %v480 = vld [vmem:[%s479] sm:$0xf]
        %v481 = vld [vmem:[%s479 + $0x4] sm:$0xf]
        %v484 = vunpack.c.l.b16 %v480
        %v485 = vunpack.c.l.b16 %v481
        %v486 = vpack.c.b16 %v485, %v484
        %v488 = vsel %vm368, %v486, 0
        %490 = vmatprep.subr.bf16.mxu0 0
        %491 = vmatpush1.bf16.msra.mxu0 0
        %492 = vmatprep.subr.bf16.mxu0 0
        %493 = vmatpush1.bf16.msra.mxu0 0
        %494 = vmatprep.subr.bf16.mxu0 0
        %495 = vmatpush1.bf16.msra.mxu0 0
        %496 = vmatprep.subr.bf16.mxu0 0
        %497 = vmatpush1.bf16.msra.mxu0 0
        %498 = vmatprep.subr.bf16.mxu0 0
        %499 = vmatpush1.bf16.msra.mxu0 0
        %500 = vmatprep.subr.bf16.mxu0 0
        %501 = vmatpush1.bf16.msra.mxu0 0
        %502 = vmatprep.subr.bf16.mxu0 0
        %503 = vmatpush1.bf16.msra.mxu0 0
        %504 = vmatprep.subr.bf16.mxu0 0
        %505 = vmatpush1.bf16.msra.mxu0 %v374
        %506 = vmatprep.subr.bf16.mxu0 0
        %507 = vmatpush2.bf16.msra.mxu0 0
        %508 = vmatprep.subr.bf16.mxu0 0
        %509 = vmatpush2.bf16.msra.mxu0 0
        %510 = vmatprep.subr.bf16.mxu0 0
        %511 = vmatpush2.bf16.msra.mxu0 0
        %512 = vmatprep.subr.bf16.mxu0 0
        %513 = vmatpush2.bf16.msra.mxu0 0
        %514 = vmatprep.subr.bf16.mxu0 0
        %515 = vmatpush2.bf16.msra.mxu0 0
        %516 = vmatprep.subr.bf16.mxu0 0
        %517 = vmatpush2.bf16.msra.mxu0 0
        %518 = vmatprep.subr.bf16.mxu0 0
        %519 = vmatpush2.bf16.msra.mxu0 0
        %520 = vmatprep.subr.bf16.mxu0 0
        %521 = vmatpush2.bf16.msra.mxu0 0
        %522 = vmatprep.mubr.bf16.mxu0 0
        %523 = vmatmul.mubr.bf16.gmra.mxu0 %v488
        %v524 = vpop.f32.mrf.mxu0
        %v525 = vadd.f32 %v361, %v524
        %v526 = vpop.f32.mrf.mxu0
        %v527 = vpop.f32.mrf.mxu0
        %v528 = vadd.f32 %v361, %v527
        %v529 = vpop.f32.mrf.mxu0
        %530 = vdwg.mxu0
        %v531 = vmax.f32 %v525, 0.0
        %v532 = vmax.f32 %v528, 0.0
        %v533 = vpack.c.bf16 %v532, %v531
        %v535 = vsel %vm432, %v533, 0
        %537 = vmatprep.subr.bf16.mxu0 0
        %538 = vmatpush1.bf16.msra.mxu0 0
        %539 = vmatprep.subr.bf16.mxu0 0
        %540 = vmatpush1.bf16.msra.mxu0 0
        %541 = vmatprep.subr.bf16.mxu0 0
        %542 = vmatpush1.bf16.msra.mxu0 0
        %543 = vmatprep.subr.bf16.mxu0 0
        %544 = vmatpush1.bf16.msra.mxu0 0
        %545 = vmatprep.subr.bf16.mxu0 0
        %546 = vmatpush1.bf16.msra.mxu0 0
        %547 = vmatprep.subr.bf16.mxu0 0
        %548 = vmatpush1.bf16.msra.mxu0 0
        %549 = vmatprep.subr.bf16.mxu0 0
        %550 = vmatpush1.bf16.msra.mxu0 0
        %551 = vmatprep.subr.bf16.mxu0 0
        %552 = vmatpush1.bf16.msra.mxu0 %v430
        %553 = vmatprep.subr.bf16.mxu0 0
        %554 = vmatpush2.bf16.msra.mxu0 0
        %555 = vmatprep.subr.bf16.mxu0 0
        %556 = vmatpush2.bf16.msra.mxu0 0
        %557 = vmatprep.subr.bf16.mxu0 0
        %558 = vmatpush2.bf16.msra.mxu0 0
        %559 = vmatprep.subr.bf16.mxu0 0
        %560 = vmatpush2.bf16.msra.mxu0 0
        %561 = vmatprep.subr.bf16.mxu0 0
        %562 = vmatpush2.bf16.msra.mxu0 0
        %563 = vmatprep.subr.bf16.mxu0 0
        %564 = vmatpush2.bf16.msra.mxu0 0
        %565 = vmatprep.subr.bf16.mxu0 0
        %566 = vmatpush2.bf16.msra.mxu0 0
        %567 = vmatprep.subr.bf16.mxu0 0
        %568 = vmatpush2.bf16.msra.mxu0 0
        %569 = vmatprep.mubr.bf16.mxu0 0
        %570 = vmatmul.mubr.bf16.gmra.mxu0 %v535
        %v571 = vpop.f32.mrf.mxu0
        %v572 = vadd.f32 %v424, %v571
        %v573 = vpop.f32.mrf.mxu0
        %v574 = vpop.f32.mrf.mxu0
        %v575 = vadd.f32 %v424, %v574
        %v576 = vpop.f32.mrf.mxu0
        %577 = vdwg.mxu0
        %v578 = vmax.f32 %v572, 0.0
        %v579 = vmax.f32 %v575, 0.0
        %v580 = vmax.f32 %v477, %v578
        %v581 = vmax.f32 %v478, %v579
        %s582 = scalar_lea.vmem %s316, 16 [#allocation2]
        %v583 = vld [vmem:[%s582] sm:$0xf]
        %v584 = vld [vmem:[%s582 + $0x4] sm:$0xf]
        %v587 = vunpack.c.l.b16 %v583
        %v588 = vunpack.c.l.b16 %v584
        %v589 = vpack.c.b16 %v588, %v587
        %v591 = vsel %vm368, %v589, 0
        %593 = vmatprep.subr.bf16.mxu0 0
        %594 = vmatpush1.bf16.msra.mxu0 0
        %595 = vmatprep.subr.bf16.mxu0 0
        %596 = vmatpush1.bf16.msra.mxu0 0
        %597 = vmatprep.subr.bf16.mxu0 0
        %598 = vmatpush1.bf16.msra.mxu0 0
        %599 = vmatprep.subr.bf16.mxu0 0
        %600 = vmatpush1.bf16.msra.mxu0 0
        %601 = vmatprep.subr.bf16.mxu0 0
        %602 = vmatpush1.bf16.msra.mxu0 0
        %603 = vmatprep.subr.bf16.mxu0 0
        %604 = vmatpush1.bf16.msra.mxu0 0
        %605 = vmatprep.subr.bf16.mxu0 0
        %606 = vmatpush1.bf16.msra.mxu0 0
        %607 = vmatprep.subr.bf16.mxu0 0
        %608 = vmatpush1.bf16.msra.mxu0 %v374
        %609 = vmatprep.subr.bf16.mxu0 0
        %610 = vmatpush2.bf16.msra.mxu0 0
        %611 = vmatprep.subr.bf16.mxu0 0
        %612 = vmatpush2.bf16.msra.mxu0 0
        %613 = vmatprep.subr.bf16.mxu0 0
        %614 = vmatpush2.bf16.msra.mxu0 0
        %615 = vmatprep.subr.bf16.mxu0 0
        %616 = vmatpush2.bf16.msra.mxu0 0
        %617 = vmatprep.subr.bf16.mxu0 0
        %618 = vmatpush2.bf16.msra.mxu0 0
        %619 = vmatprep.subr.bf16.mxu0 0
        %620 = vmatpush2.bf16.msra.mxu0 0
        %621 = vmatprep.subr.bf16.mxu0 0
        %622 = vmatpush2.bf16.msra.mxu0 0
        %623 = vmatprep.subr.bf16.mxu0 0
        %624 = vmatpush2.bf16.msra.mxu0 0
        %625 = vmatprep.mubr.bf16.mxu0 0
        %626 = vmatmul.mubr.bf16.gmra.mxu0 %v591
        %v627 = vpop.f32.mrf.mxu0
        %v628 = vadd.f32 %v361, %v627
        %v629 = vpop.f32.mrf.mxu0
        %v630 = vpop.f32.mrf.mxu0
        %v631 = vadd.f32 %v361, %v630
        %v632 = vpop.f32.mrf.mxu0
        %633 = vdwg.mxu0
        %v634 = vmax.f32 %v628, 0.0
        %v635 = vmax.f32 %v631, 0.0
        %v636 = vpack.c.bf16 %v635, %v634
        %v638 = vsel %vm432, %v636, 0
        %640 = vmatprep.subr.bf16.mxu0 0
        %641 = vmatpush1.bf16.msra.mxu0 0
        %642 = vmatprep.subr.bf16.mxu0 0
        %643 = vmatpush1.bf16.msra.mxu0 0
        %644 = vmatprep.subr.bf16.mxu0 0
        %645 = vmatpush1.bf16.msra.mxu0 0
        %646 = vmatprep.subr.bf16.mxu0 0
        %647 = vmatpush1.bf16.msra.mxu0 0
        %648 = vmatprep.subr.bf16.mxu0 0
        %649 = vmatpush1.bf16.msra.mxu0 0
        %650 = vmatprep.subr.bf16.mxu0 0
        %651 = vmatpush1.bf16.msra.mxu0 0
        %652 = vmatprep.subr.bf16.mxu0 0
        %653 = vmatpush1.bf16.msra.mxu0 0
        %654 = vmatprep.subr.bf16.mxu0 0
        %655 = vmatpush1.bf16.msra.mxu0 %v430
        %656 = vmatprep.subr.bf16.mxu0 0
        %657 = vmatpush2.bf16.msra.mxu0 0
        %658 = vmatprep.subr.bf16.mxu0 0
        %659 = vmatpush2.bf16.msra.mxu0 0
        %660 = vmatprep.subr.bf16.mxu0 0
        %661 = vmatpush2.bf16.msra.mxu0 0
        %662 = vmatprep.subr.bf16.mxu0 0
        %663 = vmatpush2.bf16.msra.mxu0 0
        %664 = vmatprep.subr.bf16.mxu0 0
        %665 = vmatpush2.bf16.msra.mxu0 0
        %666 = vmatprep.subr.bf16.mxu0 0
        %667 = vmatpush2.bf16.msra.mxu0 0
        %668 = vmatprep.subr.bf16.mxu0 0
        %669 = vmatpush2.bf16.msra.mxu0 0
        %670 = vmatprep.subr.bf16.mxu0 0
        %671 = vmatpush2.bf16.msra.mxu0 0
        %672 = vmatprep.mubr.bf16.mxu0 0
        %673 = vmatmul.mubr.bf16.gmra.mxu0 %v638
        %v674 = vpop.f32.mrf.mxu0
        %v675 = vadd.f32 %v424, %v674
        %v676 = vpop.f32.mrf.mxu0
        %v677 = vpop.f32.mrf.mxu0
        %v678 = vadd.f32 %v424, %v677
        %v679 = vpop.f32.mrf.mxu0
        %680 = vdwg.mxu0
        %v681 = vmax.f32 %v675, 0.0
        %v682 = vmax.f32 %v678, 0.0
        %v683 = vmax.f32 %v580, %v681
        %v684 = vmax.f32 %v581, %v682
        %s685 = scalar_lea.vmem %s316, 24 [#allocation2]
        %v686 = vld [vmem:[%s685] sm:$0xf]
        %v687 = vld [vmem:[%s685 + $0x4] sm:$0xf]
        %v690 = vunpack.c.l.b16 %v686
        %v691 = vunpack.c.l.b16 %v687
        %v692 = vpack.c.b16 %v691, %v690
        %v694 = vsel %vm368, %v692, 0
        %696 = vmatprep.subr.bf16.mxu0 0
        %697 = vmatpush1.bf16.msra.mxu0 0
        %698 = vmatprep.subr.bf16.mxu0 0
        %699 = vmatpush1.bf16.msra.mxu0 0
        %700 = vmatprep.subr.bf16.mxu0 0
        %701 = vmatpush1.bf16.msra.mxu0 0
        %702 = vmatprep.subr.bf16.mxu0 0
        %703 = vmatpush1.bf16.msra.mxu0 0
        %704 = vmatprep.subr.bf16.mxu0 0
        %705 = vmatpush1.bf16.msra.mxu0 0
        %706 = vmatprep.subr.bf16.mxu0 0
        %707 = vmatpush1.bf16.msra.mxu0 0
        %708 = vmatprep.subr.bf16.mxu0 0
        %709 = vmatpush1.bf16.msra.mxu0 0
        %710 = vmatprep.subr.bf16.mxu0 0
        %711 = vmatpush1.bf16.msra.mxu0 %v374
        %712 = vmatprep.subr.bf16.mxu0 0
        %713 = vmatpush2.bf16.msra.mxu0 0
        %714 = vmatprep.subr.bf16.mxu0 0
        %715 = vmatpush2.bf16.msra.mxu0 0
        %716 = vmatprep.subr.bf16.mxu0 0
        %717 = vmatpush2.bf16.msra.mxu0 0
        %718 = vmatprep.subr.bf16.mxu0 0
        %719 = vmatpush2.bf16.msra.mxu0 0
        %720 = vmatprep.subr.bf16.mxu0 0
        %721 = vmatpush2.bf16.msra.mxu0 0
        %722 = vmatprep.subr.bf16.mxu0 0
        %723 = vmatpush2.bf16.msra.mxu0 0
        %724 = vmatprep.subr.bf16.mxu0 0
        %725 = vmatpush2.bf16.msra.mxu0 0
        %726 = vmatprep.subr.bf16.mxu0 0
        %727 = vmatpush2.bf16.msra.mxu0 0
        %728 = vmatprep.mubr.bf16.mxu0 0
        %729 = vmatmul.mubr.bf16.gmra.mxu0 %v694
        %v730 = vpop.f32.mrf.mxu0
        %v731 = vadd.f32 %v361, %v730
        %v732 = vpop.f32.mrf.mxu0
        %v733 = vpop.f32.mrf.mxu0
        %v734 = vadd.f32 %v361, %v733
        %v735 = vpop.f32.mrf.mxu0
        %736 = vdwg.mxu0
        %v737 = vmax.f32 %v731, 0.0
        %v738 = vmax.f32 %v734, 0.0
        %v739 = vpack.c.bf16 %v738, %v737
        %v741 = vsel %vm432, %v739, 0
        %743 = vmatprep.subr.bf16.mxu0 0
        %744 = vmatpush1.bf16.msra.mxu0 0
        %745 = vmatprep.subr.bf16.mxu0 0
        %746 = vmatpush1.bf16.msra.mxu0 0
        %747 = vmatprep.subr.bf16.mxu0 0
        %748 = vmatpush1.bf16.msra.mxu0 0
        %749 = vmatprep.subr.bf16.mxu0 0
        %750 = vmatpush1.bf16.msra.mxu0 0
        %751 = vmatprep.subr.bf16.mxu0 0
        %752 = vmatpush1.bf16.msra.mxu0 0
        %753 = vmatprep.subr.bf16.mxu0 0
        %754 = vmatpush1.bf16.msra.mxu0 0
        %755 = vmatprep.subr.bf16.mxu0 0
        %756 = vmatpush1.bf16.msra.mxu0 0
        %757 = vmatprep.subr.bf16.mxu0 0
        %758 = vmatpush1.bf16.msra.mxu0 %v430
        %759 = vmatprep.subr.bf16.mxu0 0
        %760 = vmatpush2.bf16.msra.mxu0 0
        %761 = vmatprep.subr.bf16.mxu0 0
        %762 = vmatpush2.bf16.msra.mxu0 0
        %763 = vmatprep.subr.bf16.mxu0 0
        %764 = vmatpush2.bf16.msra.mxu0 0
        %765 = vmatprep.subr.bf16.mxu0 0
        %766 = vmatpush2.bf16.msra.mxu0 0
        %767 = vmatprep.subr.bf16.mxu0 0
        %768 = vmatpush2.bf16.msra.mxu0 0
        %769 = vmatprep.subr.bf16.mxu0 0
        %770 = vmatpush2.bf16.msra.mxu0 0
        %771 = vmatprep.subr.bf16.mxu0 0
        %772 = vmatpush2.bf16.msra.mxu0 0
        %773 = vmatprep.subr.bf16.mxu0 0
        %774 = vmatpush2.bf16.msra.mxu0 0
        %775 = vmatprep.mubr.bf16.mxu0 0
        %776 = vmatmul.mubr.bf16.gmra.mxu0 %v741
        %v777 = vpop.f32.mrf.mxu0
        %v778 = vadd.f32 %v424, %v777
        %v779 = vpop.f32.mrf.mxu0
        %v780 = vpop.f32.mrf.mxu0
        %v781 = vadd.f32 %v424, %v780
        %v782 = vpop.f32.mrf.mxu0
        %783 = vdwg.mxu0
        %v784 = vmax.f32 %v778, 0.0
        %v785 = vmax.f32 %v781, 0.0
        %v786 = vmax.f32 %v683, %v784
        %v787 = vmax.f32 %v684, %v785
        %s788 = scalar_lea.vmem %s316, 32 [#allocation2]
        %v789 = vld [vmem:[%s788] sm:$0xf]
        %v790 = vld [vmem:[%s788 + $0x4] sm:$0xf]
        %v793 = vunpack.c.l.b16 %v789
        %v794 = vunpack.c.l.b16 %v790
        %v795 = vpack.c.b16 %v794, %v793
        %v797 = vsel %vm368, %v795, 0
        %799 = vmatprep.subr.bf16.mxu0 0
        %800 = vmatpush1.bf16.msra.mxu0 0
        %801 = vmatprep.subr.bf16.mxu0 0
        %802 = vmatpush1.bf16.msra.mxu0 0
        %803 = vmatprep.subr.bf16.mxu0 0
        %804 = vmatpush1.bf16.msra.mxu0 0
        %805 = vmatprep.subr.bf16.mxu0 0
        %806 = vmatpush1.bf16.msra.mxu0 0
        %807 = vmatprep.subr.bf16.mxu0 0
        %808 = vmatpush1.bf16.msra.mxu0 0
        %809 = vmatprep.subr.bf16.mxu0 0
        %810 = vmatpush1.bf16.msra.mxu0 0
        %811 = vmatprep.subr.bf16.mxu0 0
        %812 = vmatpush1.bf16.msra.mxu0 0
        %813 = vmatprep.subr.bf16.mxu0 0
        %814 = vmatpush1.bf16.msra.mxu0 %v374
        %815 = vmatprep.subr.bf16.mxu0 0
        %816 = vmatpush2.bf16.msra.mxu0 0
        %817 = vmatprep.subr.bf16.mxu0 0
        %818 = vmatpush2.bf16.msra.mxu0 0
        %819 = vmatprep.subr.bf16.mxu0 0
        %820 = vmatpush2.bf16.msra.mxu0 0
        %821 = vmatprep.subr.bf16.mxu0 0
        %822 = vmatpush2.bf16.msra.mxu0 0
        %823 = vmatprep.subr.bf16.mxu0 0
        %824 = vmatpush2.bf16.msra.mxu0 0
        %825 = vmatprep.subr.bf16.mxu0 0
        %826 = vmatpush2.bf16.msra.mxu0 0
        %827 = vmatprep.subr.bf16.mxu0 0
        %828 = vmatpush2.bf16.msra.mxu0 0
        %829 = vmatprep.subr.bf16.mxu0 0
        %830 = vmatpush2.bf16.msra.mxu0 0
        %831 = vmatprep.mubr.bf16.mxu0 0
        %832 = vmatmul.mubr.bf16.gmra.mxu0 %v797
        %v833 = vpop.f32.mrf.mxu0
        %v834 = vadd.f32 %v361, %v833
        %v835 = vpop.f32.mrf.mxu0
        %v836 = vpop.f32.mrf.mxu0
        %v837 = vadd.f32 %v361, %v836
        %v838 = vpop.f32.mrf.mxu0
        %839 = vdwg.mxu0
        %v840 = vmax.f32 %v834, 0.0
        %v841 = vmax.f32 %v837, 0.0
        %v842 = vpack.c.bf16 %v841, %v840
        %v844 = vsel %vm432, %v842, 0
        %846 = vmatprep.subr.bf16.mxu0 0
        %847 = vmatpush1.bf16.msra.mxu0 0
        %848 = vmatprep.subr.bf16.mxu0 0
        %849 = vmatpush1.bf16.msra.mxu0 0
        %850 = vmatprep.subr.bf16.mxu0 0
        %851 = vmatpush1.bf16.msra.mxu0 0
        %852 = vmatprep.subr.bf16.mxu0 0
        %853 = vmatpush1.bf16.msra.mxu0 0
        %854 = vmatprep.subr.bf16.mxu0 0
        %855 = vmatpush1.bf16.msra.mxu0 0
        %856 = vmatprep.subr.bf16.mxu0 0
        %857 = vmatpush1.bf16.msra.mxu0 0
        %858 = vmatprep.subr.bf16.mxu0 0
        %859 = vmatpush1.bf16.msra.mxu0 0
        %860 = vmatprep.subr.bf16.mxu0 0
        %861 = vmatpush1.bf16.msra.mxu0 %v430
        %862 = vmatprep.subr.bf16.mxu0 0
        %863 = vmatpush2.bf16.msra.mxu0 0
        %864 = vmatprep.subr.bf16.mxu0 0
        %865 = vmatpush2.bf16.msra.mxu0 0
        %866 = vmatprep.subr.bf16.mxu0 0
        %867 = vmatpush2.bf16.msra.mxu0 0
        %868 = vmatprep.subr.bf16.mxu0 0
        %869 = vmatpush2.bf16.msra.mxu0 0
        %870 = vmatprep.subr.bf16.mxu0 0
        %871 = vmatpush2.bf16.msra.mxu0 0
        %872 = vmatprep.subr.bf16.mxu0 0
        %873 = vmatpush2.bf16.msra.mxu0 0
        %874 = vmatprep.subr.bf16.mxu0 0
        %875 = vmatpush2.bf16.msra.mxu0 0
        %876 = vmatprep.subr.bf16.mxu0 0
        %877 = vmatpush2.bf16.msra.mxu0 0
        %878 = vmatprep.mubr.bf16.mxu0 0
        %879 = vmatmul.mubr.bf16.gmra.mxu0 %v844
        %v880 = vpop.f32.mrf.mxu0
        %v881 = vadd.f32 %v424, %v880
        %v882 = vpop.f32.mrf.mxu0
        %v883 = vpop.f32.mrf.mxu0
        %v884 = vadd.f32 %v424, %v883
        %v885 = vpop.f32.mrf.mxu0
        %886 = vdwg.mxu0
        %v887 = vmax.f32 %v881, 0.0
        %v888 = vmax.f32 %v884, 0.0
        %v889 = vmax.f32 %v786, %v887
        %v890 = vmax.f32 %v787, %v888
        %s891 = scalar_lea.vmem %s316, 40 [#allocation2]
        %v892 = vld [vmem:[%s891] sm:$0xf]
        %v893 = vld [vmem:[%s891 + $0x4] sm:$0xf]
        %v896 = vunpack.c.l.b16 %v892
        %v897 = vunpack.c.l.b16 %v893
        %v898 = vpack.c.b16 %v897, %v896
        %v900 = vsel %vm368, %v898, 0
        %902 = vmatprep.subr.bf16.mxu0 0
        %903 = vmatpush1.bf16.msra.mxu0 0
        %904 = vmatprep.subr.bf16.mxu0 0
        %905 = vmatpush1.bf16.msra.mxu0 0
        %906 = vmatprep.subr.bf16.mxu0 0
        %907 = vmatpush1.bf16.msra.mxu0 0
        %908 = vmatprep.subr.bf16.mxu0 0
        %909 = vmatpush1.bf16.msra.mxu0 0
        %910 = vmatprep.subr.bf16.mxu0 0
        %911 = vmatpush1.bf16.msra.mxu0 0
        %912 = vmatprep.subr.bf16.mxu0 0
        %913 = vmatpush1.bf16.msra.mxu0 0
        %914 = vmatprep.subr.bf16.mxu0 0
        %915 = vmatpush1.bf16.msra.mxu0 0
        %916 = vmatprep.subr.bf16.mxu0 0
        %917 = vmatpush1.bf16.msra.mxu0 %v374
        %918 = vmatprep.subr.bf16.mxu0 0
        %919 = vmatpush2.bf16.msra.mxu0 0
        %920 = vmatprep.subr.bf16.mxu0 0
        %921 = vmatpush2.bf16.msra.mxu0 0
        %922 = vmatprep.subr.bf16.mxu0 0
        %923 = vmatpush2.bf16.msra.mxu0 0
        %924 = vmatprep.subr.bf16.mxu0 0
        %925 = vmatpush2.bf16.msra.mxu0 0
        %926 = vmatprep.subr.bf16.mxu0 0
        %927 = vmatpush2.bf16.msra.mxu0 0
        %928 = vmatprep.subr.bf16.mxu0 0
        %929 = vmatpush2.bf16.msra.mxu0 0
        %930 = vmatprep.subr.bf16.mxu0 0
        %931 = vmatpush2.bf16.msra.mxu0 0
        %932 = vmatprep.subr.bf16.mxu0 0
        %933 = vmatpush2.bf16.msra.mxu0 0
        %934 = vmatprep.mubr.bf16.mxu0 0
        %935 = vmatmul.mubr.bf16.gmra.mxu0 %v900
        %v936 = vpop.f32.mrf.mxu0
        %v937 = vadd.f32 %v361, %v936
        %v938 = vpop.f32.mrf.mxu0
        %v939 = vpop.f32.mrf.mxu0
        %v940 = vadd.f32 %v361, %v939
        %v941 = vpop.f32.mrf.mxu0
        %942 = vdwg.mxu0
        %v943 = vmax.f32 %v937, 0.0
        %v944 = vmax.f32 %v940, 0.0
        %v945 = vpack.c.bf16 %v944, %v943
        %v947 = vsel %vm432, %v945, 0
        %949 = vmatprep.subr.bf16.mxu0 0
        %950 = vmatpush1.bf16.msra.mxu0 0
        %951 = vmatprep.subr.bf16.mxu0 0
        %952 = vmatpush1.bf16.msra.mxu0 0
        %953 = vmatprep.subr.bf16.mxu0 0
        %954 = vmatpush1.bf16.msra.mxu0 0
        %955 = vmatprep.subr.bf16.mxu0 0
        %956 = vmatpush1.bf16.msra.mxu0 0
        %957 = vmatprep.subr.bf16.mxu0 0
        %958 = vmatpush1.bf16.msra.mxu0 0
        %959 = vmatprep.subr.bf16.mxu0 0
        %960 = vmatpush1.bf16.msra.mxu0 0
        %961 = vmatprep.subr.bf16.mxu0 0
        %962 = vmatpush1.bf16.msra.mxu0 0
        %963 = vmatprep.subr.bf16.mxu0 0
        %964 = vmatpush1.bf16.msra.mxu0 %v430
        %965 = vmatprep.subr.bf16.mxu0 0
        %966 = vmatpush2.bf16.msra.mxu0 0
        %967 = vmatprep.subr.bf16.mxu0 0
        %968 = vmatpush2.bf16.msra.mxu0 0
        %969 = vmatprep.subr.bf16.mxu0 0
        %970 = vmatpush2.bf16.msra.mxu0 0
        %971 = vmatprep.subr.bf16.mxu0 0
        %972 = vmatpush2.bf16.msra.mxu0 0
        %973 = vmatprep.subr.bf16.mxu0 0
        %974 = vmatpush2.bf16.msra.mxu0 0
        %975 = vmatprep.subr.bf16.mxu0 0
        %976 = vmatpush2.bf16.msra.mxu0 0
        %977 = vmatprep.subr.bf16.mxu0 0
        %978 = vmatpush2.bf16.msra.mxu0 0
        %979 = vmatprep.subr.bf16.mxu0 0
        %980 = vmatpush2.bf16.msra.mxu0 0
        %981 = vmatprep.mubr.bf16.mxu0 0
        %982 = vmatmul.mubr.bf16.gmra.mxu0 %v947
        %v983 = vpop.f32.mrf.mxu0
        %v984 = vadd.f32 %v424, %v983
        %v985 = vpop.f32.mrf.mxu0
        %v986 = vpop.f32.mrf.mxu0
        %v987 = vadd.f32 %v424, %v986
        %v988 = vpop.f32.mrf.mxu0
        %989 = vdwg.mxu0
        %v990 = vmax.f32 %v984, 0.0
        %v991 = vmax.f32 %v987, 0.0
        %v992 = vmax.f32 %v889, %v990
        %v993 = vmax.f32 %v890, %v991
        %s994 = scalar_lea.vmem %s316, 48 [#allocation2]
        %v995 = vld [vmem:[%s994] sm:$0xf]
        %v996 = vld [vmem:[%s994 + $0x4] sm:$0xf]
        %v999 = vunpack.c.l.b16 %v995
        %v1000 = vunpack.c.l.b16 %v996
        %v1001 = vpack.c.b16 %v1000, %v999
        %v1003 = vsel %vm368, %v1001, 0
        %1005 = vmatprep.subr.bf16.mxu0 0
        %1006 = vmatpush1.bf16.msra.mxu0 0
        %1007 = vmatprep.subr.bf16.mxu0 0
        %1008 = vmatpush1.bf16.msra.mxu0 0
        %1009 = vmatprep.subr.bf16.mxu0 0
        %1010 = vmatpush1.bf16.msra.mxu0 0
        %1011 = vmatprep.subr.bf16.mxu0 0
        %1012 = vmatpush1.bf16.msra.mxu0 0
        %1013 = vmatprep.subr.bf16.mxu0 0
        %1014 = vmatpush1.bf16.msra.mxu0 0
        %1015 = vmatprep.subr.bf16.mxu0 0
        %1016 = vmatpush1.bf16.msra.mxu0 0
        %1017 = vmatprep.subr.bf16.mxu0 0
        %1018 = vmatpush1.bf16.msra.mxu0 0
        %1019 = vmatprep.subr.bf16.mxu0 0
        %1020 = vmatpush1.bf16.msra.mxu0 %v374
        %1021 = vmatprep.subr.bf16.mxu0 0
        %1022 = vmatpush2.bf16.msra.mxu0 0
        %1023 = vmatprep.subr.bf16.mxu0 0
        %1024 = vmatpush2.bf16.msra.mxu0 0
        %1025 = vmatprep.subr.bf16.mxu0 0
        %1026 = vmatpush2.bf16.msra.mxu0 0
        %1027 = vmatprep.subr.bf16.mxu0 0
        %1028 = vmatpush2.bf16.msra.mxu0 0
        %1029 = vmatprep.subr.bf16.mxu0 0
        %1030 = vmatpush2.bf16.msra.mxu0 0
        %1031 = vmatprep.subr.bf16.mxu0 0
        %1032 = vmatpush2.bf16.msra.mxu0 0
        %1033 = vmatprep.subr.bf16.mxu0 0
        %1034 = vmatpush2.bf16.msra.mxu0 0
        %1035 = vmatprep.subr.bf16.mxu0 0
        %1036 = vmatpush2.bf16.msra.mxu0 0
        %1037 = vmatprep.mubr.bf16.mxu0 0
        %1038 = vmatmul.mubr.bf16.gmra.mxu0 %v1003
        %v1039 = vpop.f32.mrf.mxu0
        %v1040 = vadd.f32 %v361, %v1039
        %v1041 = vpop.f32.mrf.mxu0
        %v1042 = vpop.f32.mrf.mxu0
        %v1043 = vadd.f32 %v361, %v1042
        %v1044 = vpop.f32.mrf.mxu0
        %1045 = vdwg.mxu0
        %v1046 = vmax.f32 %v1040, 0.0
        %v1047 = vmax.f32 %v1043, 0.0
        %v1048 = vpack.c.bf16 %v1047, %v1046
        %v1050 = vsel %vm432, %v1048, 0
        %1052 = vmatprep.subr.bf16.mxu0 0
        %1053 = vmatpush1.bf16.msra.mxu0 0
        %1054 = vmatprep.subr.bf16.mxu0 0
        %1055 = vmatpush1.bf16.msra.mxu0 0
        %1056 = vmatprep.subr.bf16.mxu0 0
        %1057 = vmatpush1.bf16.msra.mxu0 0
        %1058 = vmatprep.subr.bf16.mxu0 0
        %1059 = vmatpush1.bf16.msra.mxu0 0
        %1060 = vmatprep.subr.bf16.mxu0 0
        %1061 = vmatpush1.bf16.msra.mxu0 0
        %1062 = vmatprep.subr.bf16.mxu0 0
        %1063 = vmatpush1.bf16.msra.mxu0 0
        %1064 = vmatprep.subr.bf16.mxu0 0
        %1065 = vmatpush1.bf16.msra.mxu0 0
        %1066 = vmatprep.subr.bf16.mxu0 0
        %1067 = vmatpush1.bf16.msra.mxu0 %v430
        %1068 = vmatprep.subr.bf16.mxu0 0
        %1069 = vmatpush2.bf16.msra.mxu0 0
        %1070 = vmatprep.subr.bf16.mxu0 0
        %1071 = vmatpush2.bf16.msra.mxu0 0
        %1072 = vmatprep.subr.bf16.mxu0 0
        %1073 = vmatpush2.bf16.msra.mxu0 0
        %1074 = vmatprep.subr.bf16.mxu0 0
        %1075 = vmatpush2.bf16.msra.mxu0 0
        %1076 = vmatprep.subr.bf16.mxu0 0
        %1077 = vmatpush2.bf16.msra.mxu0 0
        %1078 = vmatprep.subr.bf16.mxu0 0
        %1079 = vmatpush2.bf16.msra.mxu0 0
        %1080 = vmatprep.subr.bf16.mxu0 0
        %1081 = vmatpush2.bf16.msra.mxu0 0
        %1082 = vmatprep.subr.bf16.mxu0 0
        %1083 = vmatpush2.bf16.msra.mxu0 0
        %1084 = vmatprep.mubr.bf16.mxu0 0
        %1085 = vmatmul.mubr.bf16.gmra.mxu0 %v1050
        %v1086 = vpop.f32.mrf.mxu0
        %v1087 = vadd.f32 %v424, %v1086
        %v1088 = vpop.f32.mrf.mxu0
        %v1089 = vpop.f32.mrf.mxu0
        %v1090 = vadd.f32 %v424, %v1089
        %v1091 = vpop.f32.mrf.mxu0
        %1092 = vdwg.mxu0
        %v1093 = vmax.f32 %v1087, 0.0
        %v1094 = vmax.f32 %v1090, 0.0
        %v1095 = vmax.f32 %v992, %v1093
        %v1096 = vmax.f32 %v993, %v1094
        %s1097 = scalar_lea.vmem %s316, 56 [#allocation2]
        %v1098 = vld [vmem:[%s1097] sm:$0xf]
        %v1099 = vld [vmem:[%s1097 + $0x4] sm:$0xf]
        %v1102 = vunpack.c.l.b16 %v1098
        %v1103 = vunpack.c.l.b16 %v1099
        %v1104 = vpack.c.b16 %v1103, %v1102
        %v1106 = vsel %vm368, %v1104, 0
        %1108 = vmatprep.subr.bf16.mxu0 0
        %1109 = vmatpush1.bf16.msra.mxu0 0
        %1110 = vmatprep.subr.bf16.mxu0 0
        %1111 = vmatpush1.bf16.msra.mxu0 0
        %1112 = vmatprep.subr.bf16.mxu0 0
        %1113 = vmatpush1.bf16.msra.mxu0 0
        %1114 = vmatprep.subr.bf16.mxu0 0
        %1115 = vmatpush1.bf16.msra.mxu0 0
        %1116 = vmatprep.subr.bf16.mxu0 0
        %1117 = vmatpush1.bf16.msra.mxu0 0
        %1118 = vmatprep.subr.bf16.mxu0 0
        %1119 = vmatpush1.bf16.msra.mxu0 0
        %1120 = vmatprep.subr.bf16.mxu0 0
        %1121 = vmatpush1.bf16.msra.mxu0 0
        %1122 = vmatprep.subr.bf16.mxu0 0
        %1123 = vmatpush1.bf16.msra.mxu0 %v374
        %1124 = vmatprep.subr.bf16.mxu0 0
        %1125 = vmatpush2.bf16.msra.mxu0 0
        %1126 = vmatprep.subr.bf16.mxu0 0
        %1127 = vmatpush2.bf16.msra.mxu0 0
        %1128 = vmatprep.subr.bf16.mxu0 0
        %1129 = vmatpush2.bf16.msra.mxu0 0
        %1130 = vmatprep.subr.bf16.mxu0 0
        %1131 = vmatpush2.bf16.msra.mxu0 0
        %1132 = vmatprep.subr.bf16.mxu0 0
        %1133 = vmatpush2.bf16.msra.mxu0 0
        %1134 = vmatprep.subr.bf16.mxu0 0
        %1135 = vmatpush2.bf16.msra.mxu0 0
        %1136 = vmatprep.subr.bf16.mxu0 0
        %1137 = vmatpush2.bf16.msra.mxu0 0
        %1138 = vmatprep.subr.bf16.mxu0 0
        %1139 = vmatpush2.bf16.msra.mxu0 0
        %1140 = vmatprep.mubr.bf16.mxu0 0
        %1141 = vmatmul.mubr.bf16.gmra.mxu0 %v1106
        %v1142 = vpop.f32.mrf.mxu0
        %v1143 = vadd.f32 %v361, %v1142
        %v1144 = vpop.f32.mrf.mxu0
        %v1145 = vpop.f32.mrf.mxu0
        %v1146 = vadd.f32 %v361, %v1145
        %v1147 = vpop.f32.mrf.mxu0
        %1148 = vdwg.mxu0
        %v1149 = vmax.f32 %v1143, 0.0
        %v1150 = vmax.f32 %v1146, 0.0
        %v1151 = vpack.c.bf16 %v1150, %v1149
        %v1153 = vsel %vm432, %v1151, 0
        %1155 = vmatprep.subr.bf16.mxu0 0
        %1156 = vmatpush1.bf16.msra.mxu0 0
        %1157 = vmatprep.subr.bf16.mxu0 0
        %1158 = vmatpush1.bf16.msra.mxu0 0
        %1159 = vmatprep.subr.bf16.mxu0 0
        %1160 = vmatpush1.bf16.msra.mxu0 0
        %1161 = vmatprep.subr.bf16.mxu0 0
        %1162 = vmatpush1.bf16.msra.mxu0 0
        %1163 = vmatprep.subr.bf16.mxu0 0
        %1164 = vmatpush1.bf16.msra.mxu0 0
        %1165 = vmatprep.subr.bf16.mxu0 0
        %1166 = vmatpush1.bf16.msra.mxu0 0
        %1167 = vmatprep.subr.bf16.mxu0 0
        %1168 = vmatpush1.bf16.msra.mxu0 0
        %1169 = vmatprep.subr.bf16.mxu0 0
        %1170 = vmatpush1.bf16.msra.mxu0 %v430
        %1171 = vmatprep.subr.bf16.mxu0 0
        %1172 = vmatpush2.bf16.msra.mxu0 0
        %1173 = vmatprep.subr.bf16.mxu0 0
        %1174 = vmatpush2.bf16.msra.mxu0 0
        %1175 = vmatprep.subr.bf16.mxu0 0
        %1176 = vmatpush2.bf16.msra.mxu0 0
        %1177 = vmatprep.subr.bf16.mxu0 0
        %1178 = vmatpush2.bf16.msra.mxu0 0
        %1179 = vmatprep.subr.bf16.mxu0 0
        %1180 = vmatpush2.bf16.msra.mxu0 0
        %1181 = vmatprep.subr.bf16.mxu0 0
        %1182 = vmatpush2.bf16.msra.mxu0 0
        %1183 = vmatprep.subr.bf16.mxu0 0
        %1184 = vmatpush2.bf16.msra.mxu0 0
        %1185 = vmatprep.subr.bf16.mxu0 0
        %1186 = vmatpush2.bf16.msra.mxu0 0
        %1187 = vmatprep.mubr.bf16.mxu0 0
        %1188 = vmatmul.mubr.bf16.gmra.mxu0 %v1153
        %v1189 = vpop.f32.mrf.mxu0
        %v1190 = vadd.f32 %v424, %v1189
        %v1191 = vpop.f32.mrf.mxu0
        %v1192 = vpop.f32.mrf.mxu0
        %v1193 = vadd.f32 %v424, %v1192
        %v1194 = vpop.f32.mrf.mxu0
        %1195 = vdwg.mxu0
        %v1196 = vmax.f32 %v1190, 0.0
        %v1197 = vmax.f32 %v1193, 0.0
        %v1198 = vmax.f32 %v1095, %v1196
        %v1199 = vmax.f32 %v1096, %v1197
        %p1200 = scmp.eq.s32.totalorder %s21, 0
        // Predicated region
        $region82: #{fwd.2} parent=76 // pred_check
          %p1201 = pneg %p1200
        $region83: #{fwd.2} parent=76 // pred_check_branch
          %1203 = sbr.rel (%p1201) target = $region85
        $region84: #{fwd.2} parent=76 // pred_region
          %vm1204 = vcmask 261120
          %1205 = vst.msk [vmem:[%s347] sm:$0xff] %vm1204, %v1198
          %1206 = vst.msk [vmem:[%s347 + $0x8] sm:$0xff] %vm1204, %v1199
        $region85: #{fwd.2} parent=76 // pred_fallthru
          _
        %p1207 = scmp.gt.s32.totalorder %s21, 0
        // Predicated region
        $region86: #{fwd.2} parent=76 // pred_check
          %p1208 = pneg %p1207
        $region87: #{fwd.2} parent=76 // pred_check_branch
          %1210 = sbr.rel (%p1208) target = $region89
        $region88: #{fwd.2} parent=76 // pred_region
          %v1211 = vld [vmem:[%s347] sm:$0xff]
          %v1212 = vld [vmem:[%s347 + $0x8] sm:$0xff]
          %v1213 = vmax.f32 %v1211, %v1198
          %v1214 = vmax.f32 %v1212, %v1199
          %vm1215 = vcmask 261120
          %1216 = vst.msk [vmem:[%s347] sm:$0xff] %vm1215, %v1213
          %1217 = vst.msk [vmem:[%s347 + $0x8] sm:$0xff] %vm1215, %v1214
        $region89: #{fwd.2} parent=76 // pred_fallthru
          _
        %s1218 = smul.u32 2, %s20
        %p1219 = scmp.lt.s32.totalorder %s1218, 3
        %s1220 = scalar_select %p1219, %s1218, 3
        %s1221 = smul.addr %s1220, 8
        %s1222 = scalar_lea.vmem %s5, %s1221
        // Predicated region
        $region90: #{fwd.2} parent=76 // pred_check
          %p1223 = pneg %p158
        $region91: #{fwd.2} parent=76 // pred_check_branch
          %1225 = sbr.rel (%p1223) target = $region93
        $region92: #{fwd.2} parent=76 // pred_region
          %s1226 = smul.u32 2, %s20
        $region93: #{fwd.2} parent=76 // pred_fallthru
          _
      $region77: #{fwd.2} parent=5 // pred_fallthru
        _
      %p1227 = scmp.le.s32.totalorder 2, %s11
      // Predicated region
      $region94: #{fwd.2} parent=5 // pred_check
        %p1228 = pneg %p1227
      $region95: #{fwd.2} parent=5 // pred_check_branch
        %1230 = sbr.rel (%p1228) target = $region97
      $region96: #{fwd.2} parent=5 // pred_region
        %s1231 = ssub.s32 %s11, 2
        // Predicated region
        $region98: #{fwd.2} parent=96 // pred_check
          %p1232 = pneg %p164
        $region99: #{fwd.2} parent=96 // pred_check_branch
          %1234 = sbr.rel (%p1232) target = $region101
        $region100: #{fwd.2} parent=96 // pred_region
          %s1235 = smul.u32 2, %s22
          %p1236 = scmp.lt.s32.totalorder %s1235, 3
          %s1237 = scalar_select %p1236, %s1235, 3
          %s1238 = smul.addr %s1237, 8
          %s1239 = scalar_lea.vmem %s5, %s1238
        $region101: #{fwd.2} parent=96 // pred_fallthru
          _
      $region97: #{fwd.2} parent=5 // pred_fallthru
        _
    $region6: #{fwd.2} parent=1 // loop_footer
      %s15 = sadd.s32 1, %s11
    $region7: #{fwd.2} parent=1 // loop_footer_branch
      %10 = sbr.rel target = $region3
    $region8: #{fwd.2} parent=1 // loop_exit
      _

// kernel: fwd.3
$region0: #{fwd.3}
  #allocation0 [shape = 'u32[]', space=smem, size = 0x4, offset = 0x4, fixed_abs, tag = 'smem constant byte address 0x4 - core index']
  #allocation1 [shape = 'u32[144,128]{1,0:T(1,128)}', space=vmem, size = 0x12000, scoped, tag = 'internal scratch']
  %s0 = inlined_call_operand.vmem [shape: bf16[16,32,8], index: 0, kind: input, shape index: {}]
  %s1 = inlined_call_operand.vmem [shape: bf16[8,16], index: 1, kind: input, shape index: {}]
  %s2 = inlined_call_operand.vmem [shape: f32[1,16], index: 2, kind: input, shape index: {}]
  %s3 = inlined_call_operand.vmem [shape: bf16[16,32], index: 3, kind: input, shape index: {}]
  %s4 = inlined_call_operand.vmem [shape: f32[1,32], index: 4, kind: input, shape index: {}]
  %s5 = inlined_call_operand.vmem [shape: f32[32,32], index: 5, kind: output, shape index: {}]
  %s6 = sld [smem:[#allocation0]]
  $region102: #{fwd.3} parent=0
    _
  %s8 = ssub.s32 1, %s6
  %s9 = scalar_select 0, %s8, %s6
  $region1: #{fwd.3} parent=0
    #allocation2 [shape = 'u8[65536]{0}', space=vmem, size = 0x10000, scoped, tag = 'input window, operand 0']
    loop: start=0, step=1, limit=6
    $region2: #{fwd.3} parent=1 // loop_pre_header
      _
    $region3: #{fwd.3} parent=1 // loop_header
      %s11 = sphi 0, %s15
      %p12 = scmp.ge.s32.totalorder %s11, 6
      %s18 = sphi 0, %s30
      %s19 = sphi 0, %s26
      %s20 = sphi 0, %s18
      %s21 = sphi 0, %s19
      %s22 = sphi 0, %s20
      %s23 = sphi 0, %s21
      %s35 = sphi 0, %s37
      %s38 = sphi 0, %s35
      %s39 = sphi 0, %s38
      %s55 = sphi 0, %s39
      %s59 = sphi 0, %s59
      %s61 = sphi 0, %s59
      %s62 = sphi 0, %s61
      %s76 = sphi 0, %s62
      %s80 = sphi 0, %s80
      %s82 = sphi 0, %s80
      %s83 = sphi 0, %s82
      %s97 = sphi 0, %s83
      %s101 = sphi 0, %s101
      %s103 = sphi 0, %s101
      %s104 = sphi 0, %s103
      %s118 = sphi 0, %s104
      %s122 = sphi 0, %s122
      %s124 = sphi 0, %s122
      %s125 = sphi 0, %s124
      %s139 = sphi 0, %s125
      %s145 = sphi 0, %s147
      %s148 = sphi 0, %s145
      %s149 = sphi 0, %s148
      %s165 = sphi 0, %s149
    $region4: #{fwd.3} parent=1 // loop_header_branch
      %14 = sbr.rel (%p12) target = $region8
    $region5: #{fwd.3} parent=1 // loop_body
      %s16 = ssub.s32 %s11, 1
      %s17 = ssub.s32 %s11, 2
      %s24 = sadd.s32 1, %s19
      %p25 = scmp.ge.s32.totalorder %s24, 2
      %s26 = scalar_select %p25, 0, %s24
      %s27 = sadd.s32 1, %s18
      %s28 = scalar_select %p25, %s27, %s18
      %p29 = scmp.ge.s32.totalorder %s28, 2
      %s30 = scalar_select %p29, 0, %s28
      %s31 = ssub.s32 %s19, %s26
      %s32 = ssub.s32 %s18, %s30
      %s33 = sor.u32 %s31, %s32
      %p34 = scmp.eq.s32.totalorder %s33, 0
      %s36 = sadd.s32 %s35, 1
      %s37 = scalar_select %p34, %s35, %s36
      %p40 = pneg %p34
      %p41 = scmp.eq.s32.totalorder %s11, 3
      %p42 = por %p40, %p41
      %p43 = scmp.ne.s32.totalorder %s35, %s38
      %p44 = scmp.eq.s32.totalorder %s11, 0
      %p45 = por %p43, %p44
      %p46 = scmp.ne.s32.totalorder %s35, %s38
      %p47 = scmp.eq.s32.totalorder %s16, 3
      %p48 = por %p46, %p47
      %p49 = scmp.ne.s32.totalorder %s38, %s39
      %p50 = scmp.eq.s32.totalorder %s16, 0
      %p51 = por %p49, %p50
      %p52 = scmp.ne.s32.totalorder %s38, %s39
      %p53 = scmp.eq.s32.totalorder %s17, 3
      %p54 = por %p52, %p53
      %p56 = scmp.ne.s32.totalorder %s39, %s55
      %p57 = scmp.eq.s32.totalorder %s17, 0
      %p58 = por %p56, %p57
      %s60 = sadd.s32 %s59, 1
      %p63 = scmp.eq.s32.totalorder %s11, 3
      %p64 = scmp.ne.s32.totalorder %s59, %s61
      %p65 = scmp.eq.s32.totalorder %s11, 0
      %p66 = por %p64, %p65
      %p67 = scmp.ne.s32.totalorder %s59, %s61
      %p68 = scmp.eq.s32.totalorder %s16, 3
      %p69 = por %p67, %p68
      %p70 = scmp.ne.s32.totalorder %s61, %s62
      %p71 = scmp.eq.s32.totalorder %s16, 0
      %p72 = por %p70, %p71
      %p73 = scmp.ne.s32.totalorder %s61, %s62
      %p74 = scmp.eq.s32.totalorder %s17, 3
      %p75 = por %p73, %p74
      %p77 = scmp.ne.s32.totalorder %s62, %s76
      %p78 = scmp.eq.s32.totalorder %s17, 0
      %p79 = por %p77, %p78
      %s81 = sadd.s32 %s80, 1
      %p84 = scmp.eq.s32.totalorder %s11, 3
      %p85 = scmp.ne.s32.totalorder %s80, %s82
      %p86 = scmp.eq.s32.totalorder %s11, 0
      %p87 = por %p85, %p86
      %p88 = scmp.ne.s32.totalorder %s80, %s82
      %p89 = scmp.eq.s32.totalorder %s16, 3
      %p90 = por %p88, %p89
      %p91 = scmp.ne.s32.totalorder %s82, %s83
      %p92 = scmp.eq.s32.totalorder %s16, 0
      %p93 = por %p91, %p92
      %p94 = scmp.ne.s32.totalorder %s82, %s83
      %p95 = scmp.eq.s32.totalorder %s17, 3
      %p96 = por %p94, %p95
      %p98 = scmp.ne.s32.totalorder %s83, %s97
      %p99 = scmp.eq.s32.totalorder %s17, 0
      %p100 = por %p98, %p99
      %s102 = sadd.s32 %s101, 1
      %p105 = scmp.eq.s32.totalorder %s11, 3
      %p106 = scmp.ne.s32.totalorder %s101, %s103
      %p107 = scmp.eq.s32.totalorder %s11, 0
      %p108 = por %p106, %p107
      %p109 = scmp.ne.s32.totalorder %s101, %s103
      %p110 = scmp.eq.s32.totalorder %s16, 3
      %p111 = por %p109, %p110
      %p112 = scmp.ne.s32.totalorder %s103, %s104
      %p113 = scmp.eq.s32.totalorder %s16, 0
      %p114 = por %p112, %p113
      %p115 = scmp.ne.s32.totalorder %s103, %s104
      %p116 = scmp.eq.s32.totalorder %s17, 3
      %p117 = por %p115, %p116
      %p119 = scmp.ne.s32.totalorder %s104, %s118
      %p120 = scmp.eq.s32.totalorder %s17, 0
      %p121 = por %p119, %p120
      %s123 = sadd.s32 %s122, 1
      %p126 = scmp.eq.s32.totalorder %s11, 3
      %p127 = scmp.ne.s32.totalorder %s122, %s124
      %p128 = scmp.eq.s32.totalorder %s11, 0
      %p129 = por %p127, %p128
      %p130 = scmp.ne.s32.totalorder %s122, %s124
      %p131 = scmp.eq.s32.totalorder %s16, 3
      %p132 = por %p130, %p131
      %p133 = scmp.ne.s32.totalorder %s124, %s125
      %p134 = scmp.eq.s32.totalorder %s16, 0
      %p135 = por %p133, %p134
      %p136 = scmp.ne.s32.totalorder %s124, %s125
      %p137 = scmp.eq.s32.totalorder %s17, 3
      %p138 = por %p136, %p137
      %p140 = scmp.ne.s32.totalorder %s125, %s139
      %p141 = scmp.eq.s32.totalorder %s17, 0
      %p142 = por %p140, %p141
      %s143 = ssub.s32 %s18, %s30
      %p144 = scmp.eq.s32.totalorder %s143, 0
      %s146 = sadd.s32 %s145, 1
      %s147 = scalar_select %p144, %s145, %s146
      %p150 = pneg %p144
      %p151 = scmp.eq.s32.totalorder %s11, 3
      %p152 = por %p150, %p151
      %p153 = scmp.ne.s32.totalorder %s145, %s148
      %p154 = scmp.eq.s32.totalorder %s11, 0
      %p155 = por %p153, %p154
      %p156 = scmp.ne.s32.totalorder %s145, %s148
      %p157 = scmp.eq.s32.totalorder %s16, 3
      %p158 = por %p156, %p157
      %p159 = scmp.ne.s32.totalorder %s148, %s149
      %p160 = scmp.eq.s32.totalorder %s16, 0
      %p161 = por %p159, %p160
      %p162 = scmp.ne.s32.totalorder %s148, %s149
      %p163 = scmp.eq.s32.totalorder %s17, 3
      %p164 = por %p162, %p163
      %p166 = scmp.ne.s32.totalorder %s149, %s165
      %p167 = scmp.eq.s32.totalorder %s17, 0
      %p168 = por %p166, %p167
      %p169 = scmp.le.s32.totalorder 1, %s11
      %p170 = scmp.lt.s32.totalorder %s11, 5
      %p171 = pnand %p169, %p170
      %p172 = pneg %p171
      // Predicated region
      $region9: #{fwd.3} parent=5 // pred_check
        _
      $region10: #{fwd.3} parent=5 // pred_check_branch
        %174 = sbr.rel (%p171) target = $region12
      $region11: #{fwd.3} parent=5 // pred_region
        %s175 = ssub.s32 %s11, 1
        // Predicated region
        $region13: #{fwd.3} parent=11 // pred_check
          %p176 = pneg %p72
        $region14: #{fwd.3} parent=11 // pred_check_branch
          %178 = sbr.rel (%p176) target = $region16
        $region15: #{fwd.3} parent=11 // pred_region
          _
        $region16: #{fwd.3} parent=11 // pred_fallthru
          _
        // Predicated region
        $region17: #{fwd.3} parent=11 // pred_check
          %p179 = pneg %p93
        $region18: #{fwd.3} parent=11 // pred_check_branch
          %181 = sbr.rel (%p179) target = $region20
        $region19: #{fwd.3} parent=11 // pred_region
          _
        $region20: #{fwd.3} parent=11 // pred_fallthru
          _
        // Predicated region
        $region21: #{fwd.3} parent=11 // pred_check
          %p182 = pneg %p114
        $region22: #{fwd.3} parent=11 // pred_check_branch
          %184 = sbr.rel (%p182) target = $region24
        $region23: #{fwd.3} parent=11 // pred_region
          _
        $region24: #{fwd.3} parent=11 // pred_fallthru
          _
        // Predicated region
        $region25: #{fwd.3} parent=11 // pred_check
          %p185 = pneg %p135
        $region26: #{fwd.3} parent=11 // pred_check_branch
          %187 = sbr.rel (%p185) target = $region28
        $region27: #{fwd.3} parent=11 // pred_region
          _
        $region28: #{fwd.3} parent=11 // pred_fallthru
          _
      $region12: #{fwd.3} parent=5 // pred_fallthru
        _
      %p188 = scmp.lt.s32.totalorder %s11, 4
      // Predicated region
      $region29: #{fwd.3} parent=5 // pred_check
        %p189 = pneg %p188
      $region30: #{fwd.3} parent=5 // pred_check_branch
        %191 = sbr.rel (%p189) target = $region32
      $region31: #{fwd.3} parent=5 // pred_region
        // Predicated region
        $region33: #{fwd.3} parent=31 // pred_check
          %p192 = pneg %p45
        $region34: #{fwd.3} parent=31 // pred_check_branch
          %194 = sbr.rel (%p192) target = $region36
        $region35: #{fwd.3} parent=31 // pred_region
          %s195 = sand.u32 %s35, 1
          %s196 = sand.u32 %s35, 1
          %s197 = smul.addr %s196, 64
          %s198 = scalar_lea.vmem [#allocation2], %s197
          %s199 = smul.u32 8, %s19
          %s200 = smul.u32 2, %s18
          %s201 = smul.addr %s199, 4
          %s202 = sadd.s32 %s200, %s201
          %s203 = smul.addr %s202, 4
          %s204 = scalar_lea.vmem %s0, %s203
          // Predicated region
          $region37: #{fwd.3} parent=35 // pred_check
            _
          $region38: #{fwd.3} parent=35 // pred_check_branch
            %206 = sbr.rel (0) target = $region40
          $region39: #{fwd.3} parent=35 // pred_region
            // Predicated region
            $region41: #{fwd.3} parent=39 // pred_check
              _
            $region42: #{fwd.3} parent=39 // pred_check_branch
              %208 = sbr.rel target = $region44
            $region43: #{fwd.3} parent=39 // pred_region
              // Predicated region
              $region56: #{fwd.3} parent=43 // pred_check
                _
              $region57: #{fwd.3} parent=43 // pred_check_branch
                %254 = sbr.rel (0) target = $region59
              $region58: #{fwd.3} parent=43 // pred_region
                loop: start=0, step=1, limit=1
                $region60: #{fwd.3} parent=58 // loop_pre_header
                  _
                $region61: #{fwd.3} parent=58 // loop_header
                  %s256 = sphi 0, %s260
                  %p257 = scmp.ge.s32.totalorder %s256, 1
                  %s261 = sphi %s204, %s204
                  %s262 = sphi %s198, %s198
                $region62: #{fwd.3} parent=58 // loop_header_branch
                  %259 = sbr.rel (%p257) target = $region66
                $region63: #{fwd.3} parent=58 // loop_body
                  _
                $region64: #{fwd.3} parent=58 // loop_footer
                  %s260 = sadd.s32 1, %s256
                $region65: #{fwd.3} parent=58 // loop_footer_branch
                  %255 = sbr.rel target = $region61
                $region66: #{fwd.3} parent=58 // loop_exit
                  _
                %s264 = ssub.s32 16, 1
                loop: start=0, step=1, limit=1
                $region67: #{fwd.3} parent=58 // loop_pre_header
                  _
                $region68: #{fwd.3} parent=58 // loop_header
                  %s266 = sphi 0, %s270
                  %p267 = scmp.ge.s32.totalorder %s266, 1
                  %s271 = sphi %s204, %s204
                  %s272 = sphi %s198, %s198
                $region69: #{fwd.3} parent=58 // loop_header_branch
                  %269 = sbr.rel (%p267) target = $region73
                $region70: #{fwd.3} parent=58 // loop_body
                  %v273 = vld [vmem:[%s271] sm:%s264]
                  %274 = vst [vmem:[%s272] sm:%s264] %v273
                  %v275 = vld [vmem:[%s271 + $0x4] sm:%s264]
                  %276 = vst [vmem:[%s272 + $0x4] sm:%s264] %v275
                  %v277 = vld [vmem:[%s271 + $0x10] sm:%s264]
                  %278 = vst [vmem:[%s272 + $0x8] sm:%s264] %v277
                  %v279 = vld [vmem:[%s271 + $0x14] sm:%s264]
                  %280 = vst [vmem:[%s272 + $0xc] sm:%s264] %v279
                  %v281 = vld [vmem:[%s271 + $0x20] sm:%s264]
                  %282 = vst [vmem:[%s272 + $0x10] sm:%s264] %v281
                  %v283 = vld [vmem:[%s271 + $0x24] sm:%s264]
                  %284 = vst [vmem:[%s272 + $0x14] sm:%s264] %v283
                  %v285 = vld [vmem:[%s271 + $0x30] sm:%s264]
                  %286 = vst [vmem:[%s272 + $0x18] sm:%s264] %v285
                  %v287 = vld [vmem:[%s271 + $0x34] sm:%s264]
                  %288 = vst [vmem:[%s272 + $0x1c] sm:%s264] %v287
                  %v289 = vld [vmem:[%s271 + $0x40] sm:%s264]
                  %290 = vst [vmem:[%s272 + $0x20] sm:%s264] %v289
                  %v291 = vld [vmem:[%s271 + $0x44] sm:%s264]
                  %292 = vst [vmem:[%s272 + $0x24] sm:%s264] %v291
                  %v293 = vld [vmem:[%s271 + $0x50] sm:%s264]
                  %294 = vst [vmem:[%s272 + $0x28] sm:%s264] %v293
                  %v295 = vld [vmem:[%s271 + $0x54] sm:%s264]
                  %296 = vst [vmem:[%s272 + $0x2c] sm:%s264] %v295
                  %v297 = vld [vmem:[%s271 + $0x60] sm:%s264]
                  %298 = vst [vmem:[%s272 + $0x30] sm:%s264] %v297
                  %v299 = vld [vmem:[%s271 + $0x64] sm:%s264]
                  %300 = vst [vmem:[%s272 + $0x34] sm:%s264] %v299
                  %v301 = vld [vmem:[%s271 + $0x70] sm:%s264]
                  %302 = vst [vmem:[%s272 + $0x38] sm:%s264] %v301
                  %v303 = vld [vmem:[%s271 + $0x74] sm:%s264]
                  %304 = vst [vmem:[%s272 + $0x3c] sm:%s264] %v303
                $region71: #{fwd.3} parent=58 // loop_footer
                  %s270 = sadd.s32 1, %s266
                $region72: #{fwd.3} parent=58 // loop_footer_branch
                  %265 = sbr.rel target = $region68
                $region73: #{fwd.3} parent=58 // loop_exit
                  _
              $region59: #{fwd.3} parent=43 // pred_fallthru
                _
            $region44: #{fwd.3} parent=39 // pred_fallthru
              _
            // Predicated region
            $region45: #{fwd.3} parent=39 // pred_check
              _
            $region46: #{fwd.3} parent=39 // pred_check_branch
              %210 = sbr.rel (0) target = $region48
            $region47: #{fwd.3} parent=39 // pred_region
              %s212 = ssub.s32 16, 1
              loop: start=0, step=1, limit=1
              $region49: #{fwd.3} parent=47 // loop_pre_header
                _
              $region50: #{fwd.3} parent=47 // loop_header
                %s214 = sphi 0, %s218
                %p215 = scmp.ge.s32.totalorder %s214, 1
                %s219 = sphi %s204, %s204
                %s220 = sphi %s198, %s198
              $region51: #{fwd.3} parent=47 // loop_header_branch
                %217 = sbr.rel (%p215) target = $region55
              $region52: #{fwd.3} parent=47 // loop_body
                %v221 = vld [vmem:[%s219] sm:%s212]
                %222 = vst [vmem:[%s220] sm:%s212] %v221
                %v223 = vld [vmem:[%s219 + $0x4] sm:%s212]
                %224 = vst [vmem:[%s220 + $0x4] sm:%s212] %v223
                %v225 = vld [vmem:[%s219 + $0x10] sm:%s212]
                %226 = vst [vmem:[%s220 + $0x8] sm:%s212] %v225
                %v227 = vld [vmem:[%s219 + $0x14] sm:%s212]
                %228 = vst [vmem:[%s220 + $0xc] sm:%s212] %v227
                %v229 = vld [vmem:[%s219 + $0x20] sm:%s212]
                %230 = vst [vmem:[%s220 + $0x10] sm:%s212] %v229
                %v231 = vld [vmem:[%s219 + $0x24] sm:%s212]
                %232 = vst [vmem:[%s220 + $0x14] sm:%s212] %v231
                %v233 = vld [vmem:[%s219 + $0x30] sm:%s212]
                %234 = vst [vmem:[%s220 + $0x18] sm:%s212] %v233
                %v235 = vld [vmem:[%s219 + $0x34] sm:%s212]
                %236 = vst [vmem:[%s220 + $0x1c] sm:%s212] %v235
                %v237 = vld [vmem:[%s219 + $0x40] sm:%s212]
                %238 = vst [vmem:[%s220 + $0x20] sm:%s212] %v237
                %v239 = vld [vmem:[%s219 + $0x44] sm:%s212]
                %240 = vst [vmem:[%s220 + $0x24] sm:%s212] %v239
                %v241 = vld [vmem:[%s219 + $0x50] sm:%s212]
                %242 = vst [vmem:[%s220 + $0x28] sm:%s212] %v241
                %v243 = vld [vmem:[%s219 + $0x54] sm:%s212]
                %244 = vst [vmem:[%s220 + $0x2c] sm:%s212] %v243
                %v245 = vld [vmem:[%s219 + $0x60] sm:%s212]
                %246 = vst [vmem:[%s220 + $0x30] sm:%s212] %v245
                %v247 = vld [vmem:[%s219 + $0x64] sm:%s212]
                %248 = vst [vmem:[%s220 + $0x34] sm:%s212] %v247
                %v249 = vld [vmem:[%s219 + $0x70] sm:%s212]
                %250 = vst [vmem:[%s220 + $0x38] sm:%s212] %v249
                %v251 = vld [vmem:[%s219 + $0x74] sm:%s212]
                %252 = vst [vmem:[%s220 + $0x3c] sm:%s212] %v251
              $region53: #{fwd.3} parent=47 // loop_footer
                %s218 = sadd.s32 1, %s214
              $region54: #{fwd.3} parent=47 // loop_footer_branch
                %213 = sbr.rel target = $region50
              $region55: #{fwd.3} parent=47 // loop_exit
                _
            $region48: #{fwd.3} parent=39 // pred_fallthru
              _
          $region40: #{fwd.3} parent=35 // pred_fallthru
            _
          %305 = vnop
        $region36: #{fwd.3} parent=31 // pred_fallthru
          _
      $region32: #{fwd.3} parent=5 // pred_fallthru
        _
      %p306 = scmp.le.s32.totalorder 1, %s11
      %p307 = scmp.lt.s32.totalorder %s11, 5
      %p308 = pnand %p306, %p307
      %p309 = pneg %p308
      // Predicated region
      $region74: #{fwd.3} parent=5 // pred_check
        _
      $region75: #{fwd.3} parent=5 // pred_check_branch
        %311 = sbr.rel (%p308) target = $region77
      $region76: #{fwd.3} parent=5 // pred_region
        %s312 = ssub.s32 %s11, 1
        %s313 = sand.u32 %s38, 1
        %s314 = sand.u32 %s38, 1
        %s315 = smul.addr %s314, 64
        %s316 = scalar_lea.vmem [#allocation2], %s315
        // Predicated region
        $region78: #{fwd.3} parent=76 // pred_check
          %p317 = pneg %p51
        $region79: #{fwd.3} parent=76 // pred_check_branch
          %319 = sbr.rel (%p317) target = $region81
        $region80: #{fwd.3} parent=76 // pred_region
          _
        $region81: #{fwd.3} parent=76 // pred_fallthru
          _
        %s320 = sand.u32 %s38, 1
        %s321 = sand.u32 %s38, 1
        %s322 = smul.addr %s321, 64
        %s323 = scalar_lea.vmem [#allocation2], %s322
        %p324 = pneg %p51
        %p325 = pneg %p48
        %p326 = pneg %p72
        %p327 = pneg %p69
        %p328 = pneg %p93
        %p329 = pneg %p90
        %p330 = pneg %p114
        %p331 = pneg %p111
        %p332 = pneg %p135
        %p333 = pneg %p132
        %p334 = pneg %p161
        %p335 = pneg %p158
        %s336 = smul.u32 2, %s20
        %p337 = scmp.lt.s32.totalorder %s336, 3
        %s338 = scalar_select %p337, %s336, 3
        %s339 = smul.addr %s338, 8
        %s340 = scalar_lea.vmem %s5, %s339
        %s341 = smul.u32 8, %s21
        %s342 = smul.u32 2, %s20
        %s343 = smul.u32 2, %s20
        %p344 = scmp.lt.s32.totalorder %s343, 3
        %s345 = scalar_select %p344, %s343, 3
        %s346 = smul.addr %s345, 8
        %s347 = scalar_lea.vmem %s5, %s346
        %s348 = smul.u32 2, %s20
        %v350 = vld [vmem:[%s1] sm:$0xf]
        %v351 = vld [vmem:[%s3] sm:$0xf]
        %v352 = vld [vmem:[%s3 + $0x4] sm:$0xf]
        %v353 = vld [vmem:[%s2] sm:$0x1]
        %v354 = vld [vmem:[%s4] sm:$0x1]
        %v355 = vld [vmem:[%s316] sm:$0xf]
        %v356 = vld [vmem:[%s316 + $0x4] sm:$0xf]
        %v358 = vlaneseq
        %v359 = vshrl.u32 %v358, 7
        %v360 = vsub.s32 0, %v359
        %v361 = vrot.slane %v353, %v360
        %v365 = vunpack.c.l.b16 %v355
        %v366 = vunpack.c.l.b16 %v356
        %v367 = vpack.c.b16 %v366, %v365
        %vm368 = vcmask 64512
        %v370 = vsel %vm368, %v367, 0
        %vm372 = vcmask 1043456
        %v374 = vsel %vm372, %v350, 0
        %376 = vmatprep.subr.bf16.mxu0 0
        %377 = vmatpush1.bf16.msra.mxu0 0
        %378 = vmatprep.subr.bf16.mxu0 0
        %379 = vmatpush1.bf16.msra.mxu0 0
        %380 = vmatprep.subr.bf16.mxu0 0
        %381 = vmatpush1.bf16.msra.mxu0 0
        %382 = vmatprep.subr.bf16.mxu0 0
        %383 = vmatpush1.bf16.msra.mxu0 0
        %384 = vmatprep.subr.bf16.mxu0 0
        %385 = vmatpush1.bf16.msra.mxu0 0
        %386 = vmatprep.subr.bf16.mxu0 0
        %387 = vmatpush1.bf16.msra.mxu0 0
        %388 = vmatprep.subr.bf16.mxu0 0
        %389 = vmatpush1.bf16.msra.mxu0 0
        %390 = vmatprep.subr.bf16.mxu0 0
        %391 = vmatpush1.bf16.msra.mxu0 %v374
        %392 = vmatprep.subr.bf16.mxu0 0
        %393 = vmatpush2.bf16.msra.mxu0 0
        %394 = vmatprep.subr.bf16.mxu0 0
        %395 = vmatpush2.bf16.msra.mxu0 0
        %396 = vmatprep.subr.bf16.mxu0 0
        %397 = vmatpush2.bf16.msra.mxu0 0
        %398 = vmatprep.subr.bf16.mxu0 0
        %399 = vmatpush2.bf16.msra.mxu0 0
        %400 = vmatprep.subr.bf16.mxu0 0
        %401 = vmatpush2.bf16.msra.mxu0 0
        %402 = vmatprep.subr.bf16.mxu0 0
        %403 = vmatpush2.bf16.msra.mxu0 0
        %404 = vmatprep.subr.bf16.mxu0 0
        %405 = vmatpush2.bf16.msra.mxu0 0
        %406 = vmatprep.subr.bf16.mxu0 0
        %407 = vmatpush2.bf16.msra.mxu0 0
        %408 = vmatprep.mubr.bf16.mxu0 0
        %409 = vmatmul.mubr.bf16.gmra.mxu0 %v370
        %v410 = vpop.f32.mrf.mxu0
        %v411 = vadd.f32 %v361, %v410
        %v412 = vpop.f32.mrf.mxu0
        %v413 = vpop.f32.mrf.mxu0
        %v414 = vadd.f32 %v361, %v413
        %v415 = vpop.f32.mrf.mxu0
        %416 = vdwg.mxu0
        %v417 = vmax.f32 %v411, 0.0
        %v418 = vmax.f32 %v414, 0.0
        %v419 = vpack.c.bf16 %v418, %v417
        %v421 = vlaneseq
        %v422 = vshrl.u32 %v421, 7
        %v423 = vsub.s32 0, %v422
        %v424 = vrot.slane %v354, %v423
        %v428 = vunpack.c.l.b16 %v351
        %v429 = vunpack.c.l.b16 %v352
        %v430 = vpack.c.b16 %v429, %v428
        %vm432 = vcmask 130048
        %v434 = vsel %vm432, %v419, 0
        %436 = vmatprep.subr.bf16.mxu0 0
        %437 = vmatpush1.bf16.msra.mxu0 0
        %438 = vmatprep.subr.bf16.mxu0 0
        %439 = vmatpush1.bf16.msra.mxu0 0
        %440 = vmatprep.subr.bf16.mxu0 0
        %441 = vmatpush1.bf16.msra.mxu0 0
        %442 = vmatprep.subr.bf16.mxu0 0
        %443 = vmatpush1.bf16.msra.mxu0 0
        %444 = vmatprep.subr.bf16.mxu0 0
        %445 = vmatpush1.bf16.msra.mxu0 0
        %446 = vmatprep.subr.bf16.mxu0 0
        %447 = vmatpush1.bf16.msra.mxu0 0
        %448 = vmatprep.subr.bf16.mxu0 0
        %449 = vmatpush1.bf16.msra.mxu0 0
        %450 = vmatprep.subr.bf16.mxu0 0
        %451 = vmatpush1.bf16.msra.mxu0 %v430
        %452 = vmatprep.subr.bf16.mxu0 0
        %453 = vmatpush2.bf16.msra.mxu0 0
        %454 = vmatprep.subr.bf16.mxu0 0
        %455 = vmatpush2.bf16.msra.mxu0 0
        %456 = vmatprep.subr.bf16.mxu0 0
        %457 = vmatpush2.bf16.msra.mxu0 0
        %458 = vmatprep.subr.bf16.mxu0 0
        %459 = vmatpush2.bf16.msra.mxu0 0
        %460 = vmatprep.subr.bf16.mxu0 0
        %461 = vmatpush2.bf16.msra.mxu0 0
        %462 = vmatprep.subr.bf16.mxu0 0
        %463 = vmatpush2.bf16.msra.mxu0 0
        %464 = vmatprep.subr.bf16.mxu0 0
        %465 = vmatpush2.bf16.msra.mxu0 0
        %466 = vmatprep.subr.bf16.mxu0 0
        %467 = vmatpush2.bf16.msra.mxu0 0
        %468 = vmatprep.mubr.bf16.mxu0 0
        %469 = vmatmul.mubr.bf16.gmra.mxu0 %v434
        %v470 = vpop.f32.mrf.mxu0
        %v471 = vadd.f32 %v424, %v470
        %v472 = vpop.f32.mrf.mxu0
        %v473 = vpop.f32.mrf.mxu0
        %v474 = vadd.f32 %v424, %v473
        %v475 = vpop.f32.mrf.mxu0
        %476 = vdwg.mxu0
        %v477 = vmax.f32 %v471, 0.0
        %v478 = vmax.f32 %v474, 0.0
        %s479 = scalar_lea.vmem %s316, 8 [#allocation2]
        %v480 = vld [vmem:[%s479] sm:$0xf]
        %v481 = vld [vmem:[%s479 + $0x4] sm:$0xf]
        %v484 = vunpack.c.l.b16 %v480
        %v485 = vunpack.c.l.b16 %v481
        %v486 = vpack.c.b16 %v485, %v484
        %v488 = vsel %vm368, %v486, 0
        %490 = vmatprep.subr.bf16.mxu0 0
        %491 = vmatpush1.bf16.msra.mxu0 0
        %492 = vmatprep.subr.bf16.mxu0 0
        %493 = vmatpush1.bf16.msra.mxu0 0
        %494 = vmatprep.subr.bf16.mxu0 0
        %495 = vmatpush1.bf16.msra.mxu0 0
        %496 = vmatprep.subr.bf16.mxu0 0
        %497 = vmatpush1.bf16.msra.mxu0 0
        %498 = vmatprep.subr.bf16.mxu0 0
        %499 = vmatpush1.bf16.msra.mxu0 0
        %500 = vmatprep.subr.bf16.mxu0 0
        %501 = vmatpush1.bf16.msra.mxu0 0
        %502 = vmatprep.subr.bf16.mxu0 0
        %503 = vmatpush1.bf16.msra.mxu0 0
        %504 = vmatprep.subr.bf16.mxu0 0
        %505 = vmatpush1.bf16.msra.mxu0 %v374
        %506 = vmatprep.subr.bf16.mxu0 0
        %507 = vmatpush2.bf16.msra.mxu0 0
        %508 = vmatprep.subr.bf16.mxu0 0
        %509 = vmatpush2.bf16.msra.mxu0 0
        %510 = vmatprep.subr.bf16.mxu0 0
        %511 = vmatpush2.bf16.msra.mxu0 0
        %512 = vmatprep.subr.bf16.mxu0 0
        %513 = vmatpush2.bf16.msra.mxu0 0
        %514 = vmatprep.subr.bf16.mxu0 0
        %515 = vmatpush2.bf16.msra.mxu0 0
        %516 = vmatprep.subr.bf16.mxu0 0
        %517 = vmatpush2.bf16.msra.mxu0 0
        %518 = vmatprep.subr.bf16.mxu0 0
        %519 = vmatpush2.bf16.msra.mxu0 0
        %520 = vmatprep.subr.bf16.mxu0 0
        %521 = vmatpush2.bf16.msra.mxu0 0
        %522 = vmatprep.mubr.bf16.mxu0 0
        %523 = vmatmul.mubr.bf16.gmra.mxu0 %v488
        %v524 = vpop.f32.mrf.mxu0
        %v525 = vadd.f32 %v361, %v524
        %v526 = vpop.f32.mrf.mxu0
        %v527 = vpop.f32.mrf.mxu0
        %v528 = vadd.f32 %v361, %v527
        %v529 = vpop.f32.mrf.mxu0
        %530 = vdwg.mxu0
        %v531 = vmax.f32 %v525, 0.0
        %v532 = vmax.f32 %v528, 0.0
        %v533 = vpack.c.bf16 %v532, %v531
        %v535 = vsel %vm432, %v533, 0
        %537 = vmatprep.subr.bf16.mxu0 0
        %538 = vmatpush1.bf16.msra.mxu0 0
        %539 = vmatprep.subr.bf16.mxu0 0
        %540 = vmatpush1.bf16.msra.mxu0 0
        %541 = vmatprep.subr.bf16.mxu0 0
        %542 = vmatpush1.bf16.msra.mxu0 0
        %543 = vmatprep.subr.bf16.mxu0 0
        %544 = vmatpush1.bf16.msra.mxu0 0
        %545 = vmatprep.subr.bf16.mxu0 0
        %546 = vmatpush1.bf16.msra.mxu0 0
        %547 = vmatprep.subr.bf16.mxu0 0
        %548 = vmatpush1.bf16.msra.mxu0 0
        %549 = vmatprep.subr.bf16.mxu0 0
        %550 = vmatpush1.bf16.msra.mxu0 0
        %551 = vmatprep.subr.bf16.mxu0 0
        %552 = vmatpush1.bf16.msra.mxu0 %v430
        %553 = vmatprep.subr.bf16.mxu0 0
        %554 = vmatpush2.bf16.msra.mxu0 0
        %555 = vmatprep.subr.bf16.mxu0 0
        %556 = vmatpush2.bf16.msra.mxu0 0
        %557 = vmatprep.subr.bf16.mxu0 0
        %558 = vmatpush2.bf16.msra.mxu0 0
        %559 = vmatprep.subr.bf16.mxu0 0
        %560 = vmatpush2.bf16.msra.mxu0 0
        %561 = vmatprep.subr.bf16.mxu0 0
        %562 = vmatpush2.bf16.msra.mxu0 0
        %563 = vmatprep.subr.bf16.mxu0 0
        %564 = vmatpush2.bf16.msra.mxu0 0
        %565 = vmatprep.subr.bf16.mxu0 0
        %566 = vmatpush2.bf16.msra.mxu0 0
        %567 = vmatprep.subr.bf16.mxu0 0
        %568 = vmatpush2.bf16.msra.mxu0 0
        %569 = vmatprep.mubr.bf16.mxu0 0
        %570 = vmatmul.mubr.bf16.gmra.mxu0 %v535
        %v571 = vpop.f32.mrf.mxu0
        %v572 = vadd.f32 %v424, %v571
        %v573 = vpop.f32.mrf.mxu0
        %v574 = vpop.f32.mrf.mxu0
        %v575 = vadd.f32 %v424, %v574
        %v576 = vpop.f32.mrf.mxu0
        %577 = vdwg.mxu0
        %v578 = vmax.f32 %v572, 0.0
        %v579 = vmax.f32 %v575, 0.0
        %v580 = vmax.f32 %v477, %v578
        %v581 = vmax.f32 %v478, %v579
        %s582 = scalar_lea.vmem %s316, 16 [#allocation2]
        %v583 = vld [vmem:[%s582] sm:$0xf]
        %v584 = vld [vmem:[%s582 + $0x4] sm:$0xf]
        %v587 = vunpack.c.l.b16 %v583
        %v588 = vunpack.c.l.b16 %v584
        %v589 = vpack.c.b16 %v588, %v587
        %v591 = vsel %vm368, %v589, 0
        %593 = vmatprep.subr.bf16.mxu0 0
        %594 = vmatpush1.bf16.msra.mxu0 0
        %595 = vmatprep.subr.bf16.mxu0 0
        %596 = vmatpush1.bf16.msra.mxu0 0
        %597 = vmatprep.subr.bf16.mxu0 0
        %598 = vmatpush1.bf16.msra.mxu0 0
        %599 = vmatprep.subr.bf16.mxu0 0
        %600 = vmatpush1.bf16.msra.mxu0 0
        %601 = vmatprep.subr.bf16.mxu0 0
        %602 = vmatpush1.bf16.msra.mxu0 0
        %603 = vmatprep.subr.bf16.mxu0 0
        %604 = vmatpush1.bf16.msra.mxu0 0
        %605 = vmatprep.subr.bf16.mxu0 0
        %606 = vmatpush1.bf16.msra.mxu0 0
        %607 = vmatprep.subr.bf16.mxu0 0
        %608 = vmatpush1.bf16.msra.mxu0 %v374
        %609 = vmatprep.subr.bf16.mxu0 0
        %610 = vmatpush2.bf16.msra.mxu0 0
        %611 = vmatprep.subr.bf16.mxu0 0
        %612 = vmatpush2.bf16.msra.mxu0 0
        %613 = vmatprep.subr.bf16.mxu0 0
        %614 = vmatpush2.bf16.msra.mxu0 0
        %615 = vmatprep.subr.bf16.mxu0 0
        %616 = vmatpush2.bf16.msra.mxu0 0
        %617 = vmatprep.subr.bf16.mxu0 0
        %618 = vmatpush2.bf16.msra.mxu0 0
        %619 = vmatprep.subr.bf16.mxu0 0
        %620 = vmatpush2.bf16.msra.mxu0 0
        %621 = vmatprep.subr.bf16.mxu0 0
        %622 = vmatpush2.bf16.msra.mxu0 0
        %623 = vmatprep.subr.bf16.mxu0 0
        %624 = vmatpush2.bf16.msra.mxu0 0
        %625 = vmatprep.mubr.bf16.mxu0 0
        %626 = vmatmul.mubr.bf16.gmra.mxu0 %v591
        %v627 = vpop.f32.mrf.mxu0
        %v628 = vadd.f32 %v361, %v627
        %v629 = vpop.f32.mrf.mxu0
        %v630 = vpop.f32.mrf.mxu0
        %v631 = vadd.f32 %v361, %v630
        %v632 = vpop.f32.mrf.mxu0
        %633 = vdwg.mxu0
        %v634 = vmax.f32 %v628, 0.0
        %v635 = vmax.f32 %v631, 0.0
        %v636 = vpack.c.bf16 %v635, %v634
        %v638 = vsel %vm432, %v636, 0
        %640 = vmatprep.subr.bf16.mxu0 0
        %641 = vmatpush1.bf16.msra.mxu0 0
        %642 = vmatprep.subr.bf16.mxu0 0
        %643 = vmatpush1.bf16.msra.mxu0 0
        %644 = vmatprep.subr.bf16.mxu0 0
        %645 = vmatpush1.bf16.msra.mxu0 0
        %646 = vmatprep.subr.bf16.mxu0 0
        %647 = vmatpush1.bf16.msra.mxu0 0
        %648 = vmatprep.subr.bf16.mxu0 0
        %649 = vmatpush1.bf16.msra.mxu0 0
        %650 = vmatprep.subr.bf16.mxu0 0
        %651 = vmatpush1.bf16.msra.mxu0 0
        %652 = vmatprep.subr.bf16.mxu0 0
        %653 = vmatpush1.bf16.msra.mxu0 0
        %654 = vmatprep.subr.bf16.mxu0 0
        %655 = vmatpush1.bf16.msra.mxu0 %v430
        %656 = vmatprep.subr.bf16.mxu0 0
        %657 = vmatpush2.bf16.msra.mxu0 0
        %658 = vmatprep.subr.bf16.mxu0 0
        %659 = vmatpush2.bf16.msra.mxu0 0
        %660 = vmatprep.subr.bf16.mxu0 0
        %661 = vmatpush2.bf16.msra.mxu0 0
        %662 = vmatprep.subr.bf16.mxu0 0
        %663 = vmatpush2.bf16.msra.mxu0 0
        %664 = vmatprep.subr.bf16.mxu0 0
        %665 = vmatpush2.bf16.msra.mxu0 0
        %666 = vmatprep.subr.bf16.mxu0 0
        %667 = vmatpush2.bf16.msra.mxu0 0
        %668 = vmatprep.subr.bf16.mxu0 0
        %669 = vmatpush2.bf16.msra.mxu0 0
        %670 = vmatprep.subr.bf16.mxu0 0
        %671 = vmatpush2.bf16.msra.mxu0 0
        %672 = vmatprep.mubr.bf16.mxu0 0
        %673 = vmatmul.mubr.bf16.gmra.mxu0 %v638
        %v674 = vpop.f32.mrf.mxu0
        %v675 = vadd.f32 %v424, %v674
        %v676 = vpop.f32.mrf.mxu0
        %v677 = vpop.f32.mrf.mxu0
        %v678 = vadd.f32 %v424, %v677
        %v679 = vpop.f32.mrf.mxu0
        %680 = vdwg.mxu0
        %v681 = vmax.f32 %v675, 0.0
        %v682 = vmax.f32 %v678, 0.0
        %v683 = vmax.f32 %v580, %v681
        %v684 = vmax.f32 %v581, %v682
        %s685 = scalar_lea.vmem %s316, 24 [#allocation2]
        %v686 = vld [vmem:[%s685] sm:$0xf]
        %v687 = vld [vmem:[%s685 + $0x4] sm:$0xf]
        %v690 = vunpack.c.l.b16 %v686
        %v691 = vunpack.c.l.b16 %v687
        %v692 = vpack.c.b16 %v691, %v690
        %v694 = vsel %vm368, %v692, 0
        %696 = vmatprep.subr.bf16.mxu0 0
        %697 = vmatpush1.bf16.msra.mxu0 0
        %698 = vmatprep.subr.bf16.mxu0 0
        %699 = vmatpush1.bf16.msra.mxu0 0
        %700 = vmatprep.subr.bf16.mxu0 0
        %701 = vmatpush1.bf16.msra.mxu0 0
        %702 = vmatprep.subr.bf16.mxu0 0
        %703 = vmatpush1.bf16.msra.mxu0 0
        %704 = vmatprep.subr.bf16.mxu0 0
        %705 = vmatpush1.bf16.msra.mxu0 0
        %706 = vmatprep.subr.bf16.mxu0 0
        %707 = vmatpush1.bf16.msra.mxu0 0
        %708 = vmatprep.subr.bf16.mxu0 0
        %709 = vmatpush1.bf16.msra.mxu0 0
        %710 = vmatprep.subr.bf16.mxu0 0
        %711 = vmatpush1.bf16.msra.mxu0 %v374
        %712 = vmatprep.subr.bf16.mxu0 0
        %713 = vmatpush2.bf16.msra.mxu0 0
        %714 = vmatprep.subr.bf16.mxu0 0
        %715 = vmatpush2.bf16.msra.mxu0 0
        %716 = vmatprep.subr.bf16.mxu0 0
        %717 = vmatpush2.bf16.msra.mxu0 0
        %718 = vmatprep.subr.bf16.mxu0 0
        %719 = vmatpush2.bf16.msra.mxu0 0
        %720 = vmatprep.subr.bf16.mxu0 0
        %721 = vmatpush2.bf16.msra.mxu0 0
        %722 = vmatprep.subr.bf16.mxu0 0
        %723 = vmatpush2.bf16.msra.mxu0 0
        %724 = vmatprep.subr.bf16.mxu0 0
        %725 = vmatpush2.bf16.msra.mxu0 0
        %726 = vmatprep.subr.bf16.mxu0 0
        %727 = vmatpush2.bf16.msra.mxu0 0
        %728 = vmatprep.mubr.bf16.mxu0 0
        %729 = vmatmul.mubr.bf16.gmra.mxu0 %v694
        %v730 = vpop.f32.mrf.mxu0
        %v731 = vadd.f32 %v361, %v730
        %v732 = vpop.f32.mrf.mxu0
        %v733 = vpop.f32.mrf.mxu0
        %v734 = vadd.f32 %v361, %v733
        %v735 = vpop.f32.mrf.mxu0
        %736 = vdwg.mxu0
        %v737 = vmax.f32 %v731, 0.0
        %v738 = vmax.f32 %v734, 0.0
        %v739 = vpack.c.bf16 %v738, %v737
        %v741 = vsel %vm432, %v739, 0
        %743 = vmatprep.subr.bf16.mxu0 0
        %744 = vmatpush1.bf16.msra.mxu0 0
        %745 = vmatprep.subr.bf16.mxu0 0
        %746 = vmatpush1.bf16.msra.mxu0 0
        %747 = vmatprep.subr.bf16.mxu0 0
        %748 = vmatpush1.bf16.msra.mxu0 0
        %749 = vmatprep.subr.bf16.mxu0 0
        %750 = vmatpush1.bf16.msra.mxu0 0
        %751 = vmatprep.subr.bf16.mxu0 0
        %752 = vmatpush1.bf16.msra.mxu0 0
        %753 = vmatprep.subr.bf16.mxu0 0
        %754 = vmatpush1.bf16.msra.mxu0 0
        %755 = vmatprep.subr.bf16.mxu0 0
        %756 = vmatpush1.bf16.msra.mxu0 0
        %757 = vmatprep.subr.bf16.mxu0 0
        %758 = vmatpush1.bf16.msra.mxu0 %v430
        %759 = vmatprep.subr.bf16.mxu0 0
        %760 = vmatpush2.bf16.msra.mxu0 0
        %761 = vmatprep.subr.bf16.mxu0 0
        %762 = vmatpush2.bf16.msra.mxu0 0
        %763 = vmatprep.subr.bf16.mxu0 0
        %764 = vmatpush2.bf16.msra.mxu0 0
        %765 = vmatprep.subr.bf16.mxu0 0
        %766 = vmatpush2.bf16.msra.mxu0 0
        %767 = vmatprep.subr.bf16.mxu0 0
        %768 = vmatpush2.bf16.msra.mxu0 0
        %769 = vmatprep.subr.bf16.mxu0 0
        %770 = vmatpush2.bf16.msra.mxu0 0
        %771 = vmatprep.subr.bf16.mxu0 0
        %772 = vmatpush2.bf16.msra.mxu0 0
        %773 = vmatprep.subr.bf16.mxu0 0
        %774 = vmatpush2.bf16.msra.mxu0 0
        %775 = vmatprep.mubr.bf16.mxu0 0
        %776 = vmatmul.mubr.bf16.gmra.mxu0 %v741
        %v777 = vpop.f32.mrf.mxu0
        %v778 = vadd.f32 %v424, %v777
        %v779 = vpop.f32.mrf.mxu0
        %v780 = vpop.f32.mrf.mxu0
        %v781 = vadd.f32 %v424, %v780
        %v782 = vpop.f32.mrf.mxu0
        %783 = vdwg.mxu0
        %v784 = vmax.f32 %v778, 0.0
        %v785 = vmax.f32 %v781, 0.0
        %v786 = vmax.f32 %v683, %v784
        %v787 = vmax.f32 %v684, %v785
        %s788 = scalar_lea.vmem %s316, 32 [#allocation2]
        %v789 = vld [vmem:[%s788] sm:$0xf]
        %v790 = vld [vmem:[%s788 + $0x4] sm:$0xf]
        %v793 = vunpack.c.l.b16 %v789
        %v794 = vunpack.c.l.b16 %v790
        %v795 = vpack.c.b16 %v794, %v793
        %v797 = vsel %vm368, %v795, 0
        %799 = vmatprep.subr.bf16.mxu0 0
        %800 = vmatpush1.bf16.msra.mxu0 0
        %801 = vmatprep.subr.bf16.mxu0 0
        %802 = vmatpush1.bf16.msra.mxu0 0
        %803 = vmatprep.subr.bf16.mxu0 0
        %804 = vmatpush1.bf16.msra.mxu0 0
        %805 = vmatprep.subr.bf16.mxu0 0
        %806 = vmatpush1.bf16.msra.mxu0 0
        %807 = vmatprep.subr.bf16.mxu0 0
        %808 = vmatpush1.bf16.msra.mxu0 0
        %809 = vmatprep.subr.bf16.mxu0 0
        %810 = vmatpush1.bf16.msra.mxu0 0
        %811 = vmatprep.subr.bf16.mxu0 0
        %812 = vmatpush1.bf16.msra.mxu0 0
        %813 = vmatprep.subr.bf16.mxu0 0
        %814 = vmatpush1.bf16.msra.mxu0 %v374
        %815 = vmatprep.subr.bf16.mxu0 0
        %816 = vmatpush2.bf16.msra.mxu0 0
        %817 = vmatprep.subr.bf16.mxu0 0
        %818 = vmatpush2.bf16.msra.mxu0 0
        %819 = vmatprep.subr.bf16.mxu0 0
        %820 = vmatpush2.bf16.msra.mxu0 0
        %821 = vmatprep.subr.bf16.mxu0 0
        %822 = vmatpush2.bf16.msra.mxu0 0
        %823 = vmatprep.subr.bf16.mxu0 0
        %824 = vmatpush2.bf16.msra.mxu0 0
        %825 = vmatprep.subr.bf16.mxu0 0
        %826 = vmatpush2.bf16.msra.mxu0 0
        %827 = vmatprep.subr.bf16.mxu0 0
        %828 = vmatpush2.bf16.msra.mxu0 0
        %829 = vmatprep.subr.bf16.mxu0 0
        %830 = vmatpush2.bf16.msra.mxu0 0
        %831 = vmatprep.mubr.bf16.mxu0 0
        %832 = vmatmul.mubr.bf16.gmra.mxu0 %v797
        %v833 = vpop.f32.mrf.mxu0
        %v834 = vadd.f32 %v361, %v833
        %v835 = vpop.f32.mrf.mxu0
        %v836 = vpop.f32.mrf.mxu0
        %v837 = vadd.f32 %v361, %v836
        %v838 = vpop.f32.mrf.mxu0
        %839 = vdwg.mxu0
        %v840 = vmax.f32 %v834, 0.0
        %v841 = vmax.f32 %v837, 0.0
        %v842 = vpack.c.bf16 %v841, %v840
        %v844 = vsel %vm432, %v842, 0
        %846 = vmatprep.subr.bf16.mxu0 0
        %847 = vmatpush1.bf16.msra.mxu0 0
        %848 = vmatprep.subr.bf16.mxu0 0
        %849 = vmatpush1.bf16.msra.mxu0 0
        %850 = vmatprep.subr.bf16.mxu0 0
        %851 = vmatpush1.bf16.msra.mxu0 0
        %852 = vmatprep.subr.bf16.mxu0 0
        %853 = vmatpush1.bf16.msra.mxu0 0
        %854 = vmatprep.subr.bf16.mxu0 0
        %855 = vmatpush1.bf16.msra.mxu0 0
        %856 = vmatprep.subr.bf16.mxu0 0
        %857 = vmatpush1.bf16.msra.mxu0 0
        %858 = vmatprep.subr.bf16.mxu0 0
        %859 = vmatpush1.bf16.msra.mxu0 0
        %860 = vmatprep.subr.bf16.mxu0 0
        %861 = vmatpush1.bf16.msra.mxu0 %v430
        %862 = vmatprep.subr.bf16.mxu0 0
        %863 = vmatpush2.bf16.msra.mxu0 0
        %864 = vmatprep.subr.bf16.mxu0 0
        %865 = vmatpush2.bf16.msra.mxu0 0
        %866 = vmatprep.subr.bf16.mxu0 0
        %867 = vmatpush2.bf16.msra.mxu0 0
        %868 = vmatprep.subr.bf16.mxu0 0
        %869 = vmatpush2.bf16.msra.mxu0 0
        %870 = vmatprep.subr.bf16.mxu0 0
        %871 = vmatpush2.bf16.msra.mxu0 0
        %872 = vmatprep.subr.bf16.mxu0 0
        %873 = vmatpush2.bf16.msra.mxu0 0
        %874 = vmatprep.subr.bf16.mxu0 0
        %875 = vmatpush2.bf16.msra.mxu0 0
        %876 = vmatprep.subr.bf16.mxu0 0
        %877 = vmatpush2.bf16.msra.mxu0 0
        %878 = vmatprep.mubr.bf16.mxu0 0
        %879 = vmatmul.mubr.bf16.gmra.mxu0 %v844
        %v880 = vpop.f32.mrf.mxu0
        %v881 = vadd.f32 %v424, %v880
        %v882 = vpop.f32.mrf.mxu0
        %v883 = vpop.f32.mrf.mxu0
        %v884 = vadd.f32 %v424, %v883
        %v885 = vpop.f32.mrf.mxu0
        %886 = vdwg.mxu0
        %v887 = vmax.f32 %v881, 0.0
        %v888 = vmax.f32 %v884, 0.0
        %v889 = vmax.f32 %v786, %v887
        %v890 = vmax.f32 %v787, %v888
        %s891 = scalar_lea.vmem %s316, 40 [#allocation2]
        %v892 = vld [vmem:[%s891] sm:$0xf]
        %v893 = vld [vmem:[%s891 + $0x4] sm:$0xf]
        %v896 = vunpack.c.l.b16 %v892
        %v897 = vunpack.c.l.b16 %v893
        %v898 = vpack.c.b16 %v897, %v896
        %v900 = vsel %vm368, %v898, 0
        %902 = vmatprep.subr.bf16.mxu0 0
        %903 = vmatpush1.bf16.msra.mxu0 0
        %904 = vmatprep.subr.bf16.mxu0 0
        %905 = vmatpush1.bf16.msra.mxu0 0
        %906 = vmatprep.subr.bf16.mxu0 0
        %907 = vmatpush1.bf16.msra.mxu0 0
        %908 = vmatprep.subr.bf16.mxu0 0
        %909 = vmatpush1.bf16.msra.mxu0 0
        %910 = vmatprep.subr.bf16.mxu0 0
        %911 = vmatpush1.bf16.msra.mxu0 0
        %912 = vmatprep.subr.bf16.mxu0 0
        %913 = vmatpush1.bf16.msra.mxu0 0
        %914 = vmatprep.subr.bf16.mxu0 0
        %915 = vmatpush1.bf16.msra.mxu0 0
        %916 = vmatprep.subr.bf16.mxu0 0
        %917 = vmatpush1.bf16.msra.mxu0 %v374
        %918 = vmatprep.subr.bf16.mxu0 0
        %919 = vmatpush2.bf16.msra.mxu0 0
        %920 = vmatprep.subr.bf16.mxu0 0
        %921 = vmatpush2.bf16.msra.mxu0 0
        %922 = vmatprep.subr.bf16.mxu0 0
        %923 = vmatpush2.bf16.msra.mxu0 0
        %924 = vmatprep.subr.bf16.mxu0 0
        %925 = vmatpush2.bf16.msra.mxu0 0
        %926 = vmatprep.subr.bf16.mxu0 0
        %927 = vmatpush2.bf16.msra.mxu0 0
        %928 = vmatprep.subr.bf16.mxu0 0
        %929 = vmatpush2.bf16.msra.mxu0 0
        %930 = vmatprep.subr.bf16.mxu0 0
        %931 = vmatpush2.bf16.msra.mxu0 0
        %932 = vmatprep.subr.bf16.mxu0 0
        %933 = vmatpush2.bf16.msra.mxu0 0
        %934 = vmatprep.mubr.bf16.mxu0 0
        %935 = vmatmul.mubr.bf16.gmra.mxu0 %v900
        %v936 = vpop.f32.mrf.mxu0
        %v937 = vadd.f32 %v361, %v936
        %v938 = vpop.f32.mrf.mxu0
        %v939 = vpop.f32.mrf.mxu0
        %v940 = vadd.f32 %v361, %v939
        %v941 = vpop.f32.mrf.mxu0
        %942 = vdwg.mxu0
        %v943 = vmax.f32 %v937, 0.0
        %v944 = vmax.f32 %v940, 0.0
        %v945 = vpack.c.bf16 %v944, %v943
        %v947 = vsel %vm432, %v945, 0
        %949 = vmatprep.subr.bf16.mxu0 0
        %950 = vmatpush1.bf16.msra.mxu0 0
        %951 = vmatprep.subr.bf16.mxu0 0
        %952 = vmatpush1.bf16.msra.mxu0 0
        %953 = vmatprep.subr.bf16.mxu0 0
        %954 = vmatpush1.bf16.msra.mxu0 0
        %955 = vmatprep.subr.bf16.mxu0 0
        %956 = vmatpush1.bf16.msra.mxu0 0
        %957 = vmatprep.subr.bf16.mxu0 0
        %958 = vmatpush1.bf16.msra.mxu0 0
        %959 = vmatprep.subr.bf16.mxu0 0
        %960 = vmatpush1.bf16.msra.mxu0 0
        %961 = vmatprep.subr.bf16.mxu0 0
        %962 = vmatpush1.bf16.msra.mxu0 0
        %963 = vmatprep.subr.bf16.mxu0 0
        %964 = vmatpush1.bf16.msra.mxu0 %v430
        %965 = vmatprep.subr.bf16.mxu0 0
        %966 = vmatpush2.bf16.msra.mxu0 0
        %967 = vmatprep.subr.bf16.mxu0 0
        %968 = vmatpush2.bf16.msra.mxu0 0
        %969 = vmatprep.subr.bf16.mxu0 0
        %970 = vmatpush2.bf16.msra.mxu0 0
        %971 = vmatprep.subr.bf16.mxu0 0
        %972 = vmatpush2.bf16.msra.mxu0 0
        %973 = vmatprep.subr.bf16.mxu0 0
        %974 = vmatpush2.bf16.msra.mxu0 0
        %975 = vmatprep.subr.bf16.mxu0 0
        %976 = vmatpush2.bf16.msra.mxu0 0
        %977 = vmatprep.subr.bf16.mxu0 0
        %978 = vmatpush2.bf16.msra.mxu0 0
        %979 = vmatprep.subr.bf16.mxu0 0
        %980 = vmatpush2.bf16.msra.mxu0 0
        %981 = vmatprep.mubr.bf16.mxu0 0
        %982 = vmatmul.mubr.bf16.gmra.mxu0 %v947
        %v983 = vpop.f32.mrf.mxu0
        %v984 = vadd.f32 %v424, %v983
        %v985 = vpop.f32.mrf.mxu0
        %v986 = vpop.f32.mrf.mxu0
        %v987 = vadd.f32 %v424, %v986
        %v988 = vpop.f32.mrf.mxu0
        %989 = vdwg.mxu0
        %v990 = vmax.f32 %v984, 0.0
        %v991 = vmax.f32 %v987, 0.0
        %v992 = vmax.f32 %v889, %v990
        %v993 = vmax.f32 %v890, %v991
        %s994 = scalar_lea.vmem %s316, 48 [#allocation2]
        %v995 = vld [vmem:[%s994] sm:$0xf]
        %v996 = vld [vmem:[%s994 + $0x4] sm:$0xf]
        %v999 = vunpack.c.l.b16 %v995
        %v1000 = vunpack.c.l.b16 %v996
        %v1001 = vpack.c.b16 %v1000, %v999
        %v1003 = vsel %vm368, %v1001, 0
        %1005 = vmatprep.subr.bf16.mxu0 0
        %1006 = vmatpush1.bf16.msra.mxu0 0
        %1007 = vmatprep.subr.bf16.mxu0 0
        %1008 = vmatpush1.bf16.msra.mxu0 0
        %1009 = vmatprep.subr.bf16.mxu0 0
        %1010 = vmatpush1.bf16.msra.mxu0 0
        %1011 = vmatprep.subr.bf16.mxu0 0
        %1012 = vmatpush1.bf16.msra.mxu0 0
        %1013 = vmatprep.subr.bf16.mxu0 0
        %1014 = vmatpush1.bf16.msra.mxu0 0
        %1015 = vmatprep.subr.bf16.mxu0 0
        %1016 = vmatpush1.bf16.msra.mxu0 0
        %1017 = vmatprep.subr.bf16.mxu0 0
        %1018 = vmatpush1.bf16.msra.mxu0 0
        %1019 = vmatprep.subr.bf16.mxu0 0
        %1020 = vmatpush1.bf16.msra.mxu0 %v374
        %1021 = vmatprep.subr.bf16.mxu0 0
        %1022 = vmatpush2.bf16.msra.mxu0 0
        %1023 = vmatprep.subr.bf16.mxu0 0
        %1024 = vmatpush2.bf16.msra.mxu0 0
        %1025 = vmatprep.subr.bf16.mxu0 0
        %1026 = vmatpush2.bf16.msra.mxu0 0
        %1027 = vmatprep.subr.bf16.mxu0 0
        %1028 = vmatpush2.bf16.msra.mxu0 0
        %1029 = vmatprep.subr.bf16.mxu0 0
        %1030 = vmatpush2.bf16.msra.mxu0 0
        %1031 = vmatprep.subr.bf16.mxu0 0
        %1032 = vmatpush2.bf16.msra.mxu0 0
        %1033 = vmatprep.subr.bf16.mxu0 0
        %1034 = vmatpush2.bf16.msra.mxu0 0
        %1035 = vmatprep.subr.bf16.mxu0 0
        %1036 = vmatpush2.bf16.msra.mxu0 0
        %1037 = vmatprep.mubr.bf16.mxu0 0
        %1038 = vmatmul.mubr.bf16.gmra.mxu0 %v1003
        %v1039 = vpop.f32.mrf.mxu0
        %v1040 = vadd.f32 %v361, %v1039
        %v1041 = vpop.f32.mrf.mxu0
        %v1042 = vpop.f32.mrf.mxu0
        %v1043 = vadd.f32 %v361, %v1042
        %v1044 = vpop.f32.mrf.mxu0
        %1045 = vdwg.mxu0
        %v1046 = vmax.f32 %v1040, 0.0
        %v1047 = vmax.f32 %v1043, 0.0
        %v1048 = vpack.c.bf16 %v1047, %v1046
        %v1050 = vsel %vm432, %v1048, 0
        %1052 = vmatprep.subr.bf16.mxu0 0
        %1053 = vmatpush1.bf16.msra.mxu0 0
        %1054 = vmatprep.subr.bf16.mxu0 0
        %1055 = vmatpush1.bf16.msra.mxu0 0
        %1056 = vmatprep.subr.bf16.mxu0 0
        %1057 = vmatpush1.bf16.msra.mxu0 0
        %1058 = vmatprep.subr.bf16.mxu0 0
        %1059 = vmatpush1.bf16.msra.mxu0 0
        %1060 = vmatprep.subr.bf16.mxu0 0
        %1061 = vmatpush1.bf16.msra.mxu0 0
        %1062 = vmatprep.subr.bf16.mxu0 0
        %1063 = vmatpush1.bf16.msra.mxu0 0
        %1064 = vmatprep.subr.bf16.mxu0 0
        %1065 = vmatpush1.bf16.msra.mxu0 0
        %1066 = vmatprep.subr.bf16.mxu0 0
        %1067 = vmatpush1.bf16.msra.mxu0 %v430
        %1068 = vmatprep.subr.bf16.mxu0 0
        %1069 = vmatpush2.bf16.msra.mxu0 0
        %1070 = vmatprep.subr.bf16.mxu0 0
        %1071 = vmatpush2.bf16.msra.mxu0 0
        %1072 = vmatprep.subr.bf16.mxu0 0
        %1073 = vmatpush2.bf16.msra.mxu0 0
        %1074 = vmatprep.subr.bf16.mxu0 0
        %1075 = vmatpush2.bf16.msra.mxu0 0
        %1076 = vmatprep.subr.bf16.mxu0 0
        %1077 = vmatpush2.bf16.msra.mxu0 0
        %1078 = vmatprep.subr.bf16.mxu0 0
        %1079 = vmatpush2.bf16.msra.mxu0 0
        %1080 = vmatprep.subr.bf16.mxu0 0
        %1081 = vmatpush2.bf16.msra.mxu0 0
        %1082 = vmatprep.subr.bf16.mxu0 0
        %1083 = vmatpush2.bf16.msra.mxu0 0
        %1084 = vmatprep.mubr.bf16.mxu0 0
        %1085 = vmatmul.mubr.bf16.gmra.mxu0 %v1050
        %v1086 = vpop.f32.mrf.mxu0
        %v1087 = vadd.f32 %v424, %v1086
        %v1088 = vpop.f32.mrf.mxu0
        %v1089 = vpop.f32.mrf.mxu0
        %v1090 = vadd.f32 %v424, %v1089
        %v1091 = vpop.f32.mrf.mxu0
        %1092 = vdwg.mxu0
        %v1093 = vmax.f32 %v1087, 0.0
        %v1094 = vmax.f32 %v1090, 0.0
        %v1095 = vmax.f32 %v992, %v1093
        %v1096 = vmax.f32 %v993, %v1094
        %s1097 = scalar_lea.vmem %s316, 56 [#allocation2]
        %v1098 = vld [vmem:[%s1097] sm:$0xf]
        %v1099 = vld [vmem:[%s1097 + $0x4] sm:$0xf]
        %v1102 = vunpack.c.l.b16 %v1098
        %v1103 = vunpack.c.l.b16 %v1099
        %v1104 = vpack.c.b16 %v1103, %v1102
        %v1106 = vsel %vm368, %v1104, 0
        %1108 = vmatprep.subr.bf16.mxu0 0
        %1109 = vmatpush1.bf16.msra.mxu0 0
        %1110 = vmatprep.subr.bf16.mxu0 0
        %1111 = vmatpush1.bf16.msra.mxu0 0
        %1112 = vmatprep.subr.bf16.mxu0 0
        %1113 = vmatpush1.bf16.msra.mxu0 0
        %1114 = vmatprep.subr.bf16.mxu0 0
        %1115 = vmatpush1.bf16.msra.mxu0 0
        %1116 = vmatprep.subr.bf16.mxu0 0
        %1117 = vmatpush1.bf16.msra.mxu0 0
        %1118 = vmatprep.subr.bf16.mxu0 0
        %1119 = vmatpush1.bf16.msra.mxu0 0
        %1120 = vmatprep.subr.bf16.mxu0 0
        %1121 = vmatpush1.bf16.msra.mxu0 0
        %1122 = vmatprep.subr.bf16.mxu0 0
        %1123 = vmatpush1.bf16.msra.mxu0 %v374
        %1124 = vmatprep.subr.bf16.mxu0 0
        %1125 = vmatpush2.bf16.msra.mxu0 0
        %1126 = vmatprep.subr.bf16.mxu0 0
        %1127 = vmatpush2.bf16.msra.mxu0 0
        %1128 = vmatprep.subr.bf16.mxu0 0
        %1129 = vmatpush2.bf16.msra.mxu0 0
        %1130 = vmatprep.subr.bf16.mxu0 0
        %1131 = vmatpush2.bf16.msra.mxu0 0
        %1132 = vmatprep.subr.bf16.mxu0 0
        %1133 = vmatpush2.bf16.msra.mxu0 0
        %1134 = vmatprep.subr.bf16.mxu0 0
        %1135 = vmatpush2.bf16.msra.mxu0 0
        %1136 = vmatprep.subr.bf16.mxu0 0
        %1137 = vmatpush2.bf16.msra.mxu0 0
        %1138 = vmatprep.subr.bf16.mxu0 0
        %1139 = vmatpush2.bf16.msra.mxu0 0
        %1140 = vmatprep.mubr.bf16.mxu0 0
        %1141 = vmatmul.mubr.bf16.gmra.mxu0 %v1106
        %v1142 = vpop.f32.mrf.mxu0
        %v1143 = vadd.f32 %v361, %v1142
        %v1144 = vpop.f32.mrf.mxu0
        %v1145 = vpop.f32.mrf.mxu0
        %v1146 = vadd.f32 %v361, %v1145
        %v1147 = vpop.f32.mrf.mxu0
        %1148 = vdwg.mxu0
        %v1149 = vmax.f32 %v1143, 0.0
        %v1150 = vmax.f32 %v1146, 0.0
        %v1151 = vpack.c.bf16 %v1150, %v1149
        %v1153 = vsel %vm432, %v1151, 0
        %1155 = vmatprep.subr.bf16.mxu0 0
        %1156 = vmatpush1.bf16.msra.mxu0 0
        %1157 = vmatprep.subr.bf16.mxu0 0
        %1158 = vmatpush1.bf16.msra.mxu0 0
        %1159 = vmatprep.subr.bf16.mxu0 0
        %1160 = vmatpush1.bf16.msra.mxu0 0
        %1161 = vmatprep.subr.bf16.mxu0 0
        %1162 = vmatpush1.bf16.msra.mxu0 0
        %1163 = vmatprep.subr.bf16.mxu0 0
        %1164 = vmatpush1.bf16.msra.mxu0 0
        %1165 = vmatprep.subr.bf16.mxu0 0
        %1166 = vmatpush1.bf16.msra.mxu0 0
        %1167 = vmatprep.subr.bf16.mxu0 0
        %1168 = vmatpush1.bf16.msra.mxu0 0
        %1169 = vmatprep.subr.bf16.mxu0 0
        %1170 = vmatpush1.bf16.msra.mxu0 %v430
        %1171 = vmatprep.subr.bf16.mxu0 0
        %1172 = vmatpush2.bf16.msra.mxu0 0
        %1173 = vmatprep.subr.bf16.mxu0 0
        %1174 = vmatpush2.bf16.msra.mxu0 0
        %1175 = vmatprep.subr.bf16.mxu0 0
        %1176 = vmatpush2.bf16.msra.mxu0 0
        %1177 = vmatprep.subr.bf16.mxu0 0
        %1178 = vmatpush2.bf16.msra.mxu0 0
        %1179 = vmatprep.subr.bf16.mxu0 0
        %1180 = vmatpush2.bf16.msra.mxu0 0
        %1181 = vmatprep.subr.bf16.mxu0 0
        %1182 = vmatpush2.bf16.msra.mxu0 0
        %1183 = vmatprep.subr.bf16.mxu0 0
        %1184 = vmatpush2.bf16.msra.mxu0 0
        %1185 = vmatprep.subr.bf16.mxu0 0
        %1186 = vmatpush2.bf16.msra.mxu0 0
        %1187 = vmatprep.mubr.bf16.mxu0 0
        %1188 = vmatmul.mubr.bf16.gmra.mxu0 %v1153
        %v1189 = vpop.f32.mrf.mxu0
        %v1190 = vadd.f32 %v424, %v1189
        %v1191 = vpop.f32.mrf.mxu0
        %v1192 = vpop.f32.mrf.mxu0
        %v1193 = vadd.f32 %v424, %v1192
        %v1194 = vpop.f32.mrf.mxu0
        %1195 = vdwg.mxu0
        %v1196 = vmax.f32 %v1190, 0.0
        %v1197 = vmax.f32 %v1193, 0.0
        %v1198 = vmax.f32 %v1095, %v1196
        %v1199 = vmax.f32 %v1096, %v1197
        %p1200 = scmp.eq.s32.totalorder %s21, 0
        // Predicated region
        $region82: #{fwd.3} parent=76 // pred_check
          %p1201 = pneg %p1200
        $region83: #{fwd.3} parent=76 // pred_check_branch
          %1203 = sbr.rel (%p1201) target = $region85
        $region84: #{fwd.3} parent=76 // pred_region
          %vm1204 = vcmask 261120
          %1205 = vst.msk [vmem:[%s347] sm:$0xff] %vm1204, %v1198
          %1206 = vst.msk [vmem:[%s347 + $0x8] sm:$0xff] %vm1204, %v1199
        $region85: #{fwd.3} parent=76 // pred_fallthru
          _
        %p1207 = scmp.gt.s32.totalorder %s21, 0
        // Predicated region
        $region86: #{fwd.3} parent=76 // pred_check
          %p1208 = pneg %p1207
        $region87: #{fwd.3} parent=76 // pred_check_branch
          %1210 = sbr.rel (%p1208) target = $region89
        $region88: #{fwd.3} parent=76 // pred_region
          %v1211 = vld [vmem:[%s347] sm:$0xff]
          %v1212 = vld [vmem:[%s347 + $0x8] sm:$0xff]
          %v1213 = vmax.f32 %v1211, %v1198
          %v1214 = vmax.f32 %v1212, %v1199
          %vm1215 = vcmask 261120
          %1216 = vst.msk [vmem:[%s347] sm:$0xff] %vm1215, %v1213
          %1217 = vst.msk [vmem:[%s347 + $0x8] sm:$0xff] %vm1215, %v1214
        $region89: #{fwd.3} parent=76 // pred_fallthru
          _
        %s1218 = smul.u32 2, %s20
        %p1219 = scmp.lt.s32.totalorder %s1218, 3
        %s1220 = scalar_select %p1219, %s1218, 3
        %s1221 = smul.addr %s1220, 8
        %s1222 = scalar_lea.vmem %s5, %s1221
        // Predicated region
        $region90: #{fwd.3} parent=76 // pred_check
          %p1223 = pneg %p158
        $region91: #{fwd.3} parent=76 // pred_check_branch
          %1225 = sbr.rel (%p1223) target = $region93
        $region92: #{fwd.3} parent=76 // pred_region
          %s1226 = smul.u32 2, %s20
        $region93: #{fwd.3} parent=76 // pred_fallthru
          _
      $region77: #{fwd.3} parent=5 // pred_fallthru
        _
      %p1227 = scmp.le.s32.totalorder 2, %s11
      // Predicated region
      $region94: #{fwd.3} parent=5 // pred_check
        %p1228 = pneg %p1227
      $region95: #{fwd.3} parent=5 // pred_check_branch
        %1230 = sbr.rel (%p1228) target = $region97
      $region96: #{fwd.3} parent=5 // pred_region
        %s1231 = ssub.s32 %s11, 2
        // Predicated region
        $region98: #{fwd.3} parent=96 // pred_check
          %p1232 = pneg %p164
        $region99: #{fwd.3} parent=96 // pred_check_branch
          %1234 = sbr.rel (%p1232) target = $region101
        $region100: #{fwd.3} parent=96 // pred_region
          %s1235 = smul.u32 2, %s22
          %p1236 = scmp.lt.s32.totalorder %s1235, 3
          %s1237 = scalar_select %p1236, %s1235, 3
          %s1238 = smul.addr %s1237, 8
          %s1239 = scalar_lea.vmem %s5, %s1238
        $region101: #{fwd.3} parent=96 // pred_fallthru
          _
      $region97: #{fwd.3} parent=5 // pred_fallthru
        _
    $region6: #{fwd.3} parent=1 // loop_footer
      %s15 = sadd.s32 1, %s11
    $region7: #{fwd.3} parent=1 // loop_footer_branch
      %10 = sbr.rel target = $region3
    $region8: #{fwd.3} parent=1 // loop_exit
      _

</llo_original>
